<compile_context>
chip_gen: v5e
topology: v5e:2x2
jax: 0.10.0
libtpu: 0.0.40
codegen_flags: <defaults>
</compile_context>

<pallas_src>
import jax
import jax.numpy as jnp
from jax.experimental import pallas as pl
from jax.experimental.pallas import tpu as pltpu

# ----------------------------- hyper-parameters -----------------------------
B = 2            # batch
N = 64           # number of feature tokens
FD = 32          # feature_dim
D = 32           # object_dim == kvq_dim (n_heads = 1)
S = 8            # number of slots (from conditioning)
K = 16           # pool.codebook_size (num_entries)
R = 8            # LoRA rank
H = 4 * D        # ff_mlp hidden width
ITERS = 3
EPS = 1e-8       # slot-attention eps
LN_EPS = 1e-5    # nn.LayerNorm default eps
SCALE = D ** -0.5
LORA_SCALE = 8.0 / R   # lora_scale / rank
KR = K * R             # 128

# ------------------------------ slab layouts ---------------------------------
SEG = 128  # every segment starts at a 128-lane-aligned column

# 32-row weight slab columns (each segment padded to SEG columns)
W32_WQ, W32_WO, W32_WKV, W32_W1, W32_A1, W32_WDEC, W32_CBT = (i * SEG for i in range(7))
W32_COLS = 7 * SEG

# 128-row weight slab columns
W128_B1, W128_A2, W128_W2, W128_B2 = (i * SEG for i in range(4))
W128_COLS = 4 * SEG

# (8, 128) vector slab rows
V_LN_IN_G, V_LN_IN_B, V_LN_S_G, V_LN_S_B, V_LN_F_G, V_LN_F_B, V_B1, V_B2 = range(8)

# packed lane-dense output slab columns
O_SLOTS = 0
O_PRE_SLOTS = O_SLOTS + D          # 32
O_POST_DEC = O_PRE_SLOTS + D       # 64
O_PRE_DEC = O_POST_DEC + FD        # 96
O_ATTN = O_PRE_DEC + FD            # 128
O_PRE_ATTN = O_ATTN + N            # 192
O_COLS = O_PRE_ATTN + N            # 256


# ------------------------------ Pallas kernel --------------------------------
def _ln(x, g, b):
    mu = jnp.mean(x, axis=-1, keepdims=True)
    var = jnp.mean((x - mu) ** 2, axis=-1, keepdims=True)
    return (x - mu) * jax.lax.rsqrt(var + LN_EPS) * g + b


def fused_kernel(feat_ref, slots0_ref, vec_ref, w32_ref, w128_ref,
                 out_main_ref, out_idx_ref, out_commit_ref):
    f32 = jnp.float32

    # ---- unpack the parameter slabs (static, lane-aligned slices) ----
    ln_in_g = vec_ref[V_LN_IN_G:V_LN_IN_G + 1, :FD]
    ln_in_b = vec_ref[V_LN_IN_B:V_LN_IN_B + 1, :FD]
    ln_s_g = vec_ref[V_LN_S_G:V_LN_S_G + 1, :D]
    ln_s_b = vec_ref[V_LN_S_B:V_LN_S_B + 1, :D]
    ln_f_g = vec_ref[V_LN_F_G:V_LN_F_G + 1, :D]
    ln_f_b = vec_ref[V_LN_F_B:V_LN_F_B + 1, :D]
    b1 = vec_ref[V_B1:V_B1 + 1, :H]
    b2 = vec_ref[V_B2:V_B2 + 1, :D]

    wq = w32_ref[:, W32_WQ:W32_WQ + D]
    wo = w32_ref[:, W32_WO:W32_WO + D]
    w1 = w32_ref[:, W32_W1:W32_W1 + H]
    a1f = w32_ref[:, W32_A1:W32_A1 + KR]          # (D, K*R)
    w2 = w128_ref[:, W128_W2:W128_W2 + D]         # (H, D)
    b2f = w128_ref[:, W128_B2:W128_B2 + D]        # (K*R, D)

    # ---- shared input norm + fused k/v projection (same for both passes) ----
    x = _ln(feat_ref[0], ln_in_g, ln_in_b)                                 # (N, FD)
    kv = jnp.dot(x, w32_ref[:, W32_WKV:W32_WKV + 2 * D],
                 preferred_element_type=f32)                               # (N, 2D)
    k = kv[:, :D]
    v = kv[:, D:]

    slots0 = slots0_ref[0]                                                 # (S, D)

    def sa_pass(slots, lora_mask):
        # lora_mask is None (pass 1, all cond_loras are ZeroModule) or a
        # (S, K*R) block-column selector for the per-slot codebook entry.
        attn_before = None
        for _ in range(ITERS):                          # statically unrolled
            slots_prev = slots
            s_n = _ln(slots, ln_s_g, ln_s_b)
            q = jnp.dot(s_n, wq, preferred_element_type=f32)               # (S, D)

            # dots = einsum('bihd,bjhd->bihj') * scale, h = 1
            dots = jax.lax.dot_general(
                q, k, (((1,), (1,)), ((), ())),
                preferred_element_type=f32) * SCALE                        # (S, N)
            # TODO(synk): slot_mask masked_fill(-inf) not implemented — masks is None here.

            # softmax over slots (competition among slots per feature token)
            m = jnp.max(dots, axis=0, keepdims=True)
            e = jnp.exp(dots - m)
            attn = e * pl.reciprocal(jnp.sum(e, axis=0, keepdims=True), approx=True)
            attn_before = attn                          # attn_before_reweighting
            attn = attn + EPS
            attn = attn * pl.reciprocal(jnp.sum(attn, axis=-1, keepdims=True),
                                        approx=True)

            # updates = einsum('bjhd,bihj->bihd')
            updates = jnp.dot(attn, v, preferred_element_type=f32)         # (S, D)

            # use_o=True: slots = to_o(updates) + o_lora(=0, mod='f') + slots_prev
            slots = jnp.dot(updates, wo, preferred_element_type=f32) + slots_prev

            # ff-MLP with per-slot LoRA (cond_lora_mlp, mod_in_f=True)
            slots_prev_ff = slots
            sf = _ln(slots, ln_f_g, ln_f_b)
            h = jnp.dot(sf, w1, preferred_element_type=f32) + b1           # (S, H)
            if lora_mask is not None:
                t1 = jnp.dot(sf, a1f, preferred_element_type=f32) * lora_mask
                h = h + jnp.dot(t1, w128_ref[:, W128_B1:W128_B1 + H],
                                preferred_element_type=f32) * LORA_SCALE
            h = jnp.maximum(h, 0.0)                     # ff_mlp[1] = ReLU
            o = jnp.dot(h, w2, preferred_element_type=f32) + b2            # (S, D)
            if lora_mask is not None:
                t2 = jnp.dot(h, w128_ref[:, W128_A2:W128_A2 + KR],
                             preferred_element_type=f32) * lora_mask
                o = o + jnp.dot(t2, b2f, preferred_element_type=f32) * LORA_SCALE
            slots = o + slots_prev_ff
        return slots, attn_before

    # ---- pass 1: indices=None -> every cond_lora is ZeroModule ----
    pre_slots, pre_attn = sa_pass(slots0, None)

    # ---- VQ pool (nearest codebook entry), in-kernel ----
    # TODO(synk): `pool` class not provided — standard nearest-neighbor VQ stand-in.
    cbT = w32_ref[:, W32_CBT:W32_CBT + K]                                  # (D, K)
    cb_sq = jnp.sum(cbT * cbT, axis=0, keepdims=True)                      # (1, K)
    dist = cb_sq - 2.0 * jnp.dot(pre_slots, cbT, preferred_element_type=f32)  # (S, K)
    min_d = jnp.min(dist, axis=-1, keepdims=True)                          # (S, 1)
    k_iota = jax.lax.broadcasted_iota(jnp.int32, (S, K), 1)
    idx = jnp.min(jnp.where(dist == min_d, k_iota, K),
                  axis=-1, keepdims=True)                                  # (S, 1) int32
    one_hot = (k_iota == idx).astype(f32)                                  # (S, K)
    quant = jax.lax.dot_general(one_hot, cbT, (((1,), (1,)), ((), ())),
                                preferred_element_type=f32)                # (S, D)
    commit = jnp.mean((pre_slots - quant) ** 2, axis=-1, keepdims=True)    # (S, 1)

    # per-slot LoRA block selector: columns [idx*R, idx*R + R) of the K*R axis
    colv = jax.lax.broadcasted_iota(jnp.int32, (S, KR), 1)
    lo = idx * R
    lora_mask = jnp.logical_and(colv >= lo, colv < lo + R).astype(f32)     # (S, K*R)

    # ---- pass 2: LoRA-modulated ff-MLP (mod_position='f', use_gumbel=False) ----
    slots, attn = sa_pass(slots0, lora_mask)

    # ---- decoder on both slot sets (eval mode) ----
    # TODO(synk): `object_decoder` class not provided — stand-in per-slot linear decoder.
    wdec = w32_ref[:, W32_WDEC:W32_WDEC + FD]
    post_dec = jnp.dot(slots, wdec, preferred_element_type=f32)            # (S, FD)
    pre_dec = jnp.dot(pre_slots, wdec, preferred_element_type=f32)         # (S, FD)

    # ---- lane-dense packed outputs ----
    out_main_ref[0, :, O_SLOTS:O_SLOTS + D] = slots
    out_main_ref[0, :, O_PRE_SLOTS:O_PRE_SLOTS + D] = pre_slots
    out_main_ref[0, :, O_POST_DEC:O_POST_DEC + FD] = post_dec
    out_main_ref[0, :, O_PRE_DEC:O_PRE_DEC + FD] = pre_dec
    out_main_ref[0, :, O_ATTN:O_ATTN + N] = attn
    out_main_ref[0, :, O_PRE_ATTN:O_PRE_ATTN + N] = pre_attn
    out_idx_ref[0] = idx
    out_commit_ref[0] = commit


# ------------------------------ kernel wrapper --------------------------------
def fused_call(feat, slots0, vec_slab, w32_slab, w128_slab):
    in_specs = [
        pl.BlockSpec((1, N, FD), lambda i: (i, 0, 0)),
        pl.BlockSpec((1, S, D), lambda i: (i, 0, 0)),
        pl.BlockSpec((8, 128), lambda i: (0, 0)),
        pl.BlockSpec((FD, W32_COLS), lambda i: (0, 0)),
        pl.BlockSpec((H, W128_COLS), lambda i: (0, 0)),
    ]
    out_specs = [
        pl.BlockSpec((1, S, O_COLS), lambda i: (i, 0, 0)),
        pl.BlockSpec((1, S, 1), lambda i: (i, 0, 0)),
        pl.BlockSpec((1, S, 1), lambda i: (i, 0, 0)),
    ]
    out_shape = (
        jax.ShapeDtypeStruct((B, S, O_COLS), jnp.float32),
        jax.ShapeDtypeStruct((B, S, 1), jnp.int32),
        jax.ShapeDtypeStruct((B, S, 1), jnp.float32),
    )
    return pl.pallas_call(
        fused_kernel,
        grid=(B,),
        in_specs=in_specs,
        out_specs=out_specs,
        out_shape=out_shape,
        compiler_params=pltpu.CompilerParams(dimension_semantics=("parallel",)),
    )(feat, slots0, vec_slab, w32_slab, w128_slab)


@jax.jit
def forward(feature, conditioning, vec_slab, w32_slab, w128_slab):
    out_main, out_idx, out_commit = fused_call(
        feature, conditioning, vec_slab, w32_slab, w128_slab)

    slots = out_main[:, :, O_SLOTS:O_SLOTS + D]
    pre_slots = out_main[:, :, O_PRE_SLOTS:O_PRE_SLOTS + D]
    post_dec = out_main[:, :, O_POST_DEC:O_POST_DEC + FD]
    pre_dec = out_main[:, :, O_PRE_DEC:O_PRE_DEC + FD]
    attn = out_main[:, :, O_ATTN:O_ATTN + N]
    pre_attn = out_main[:, :, O_PRE_ATTN:O_PRE_ATTN + N]
    indices = out_idx[:, :, 0]
    commit = out_commit[:, :, 0]

    return {
        "slots": slots,
        "dec_to_train": post_dec,
        "object_decoder": post_dec,
        "pre_object_decoder": pre_dec,
        "feature_attributions": attn,
        "is_empty": None,
        "pool_indices": indices,
        "commit_loss": commit.sum(),
        "pre_slots": pre_slots,
        "pre_attn": pre_attn,
        "pool_logit": indices,          # use_gumbel=False -> logits = indices
        "gumbel_temp": 1,
    }


# ----------------------------- parameter packing ------------------------------
def _pad_cols(m, width=SEG):
    return jnp.pad(m, ((0, 0), (0, width - m.shape[1])))


def make_params():
    key = jax.random.PRNGKey(0)
    ks = jax.random.split(key, 20)
    rn = lambda k, s, sc=0.05: sc * jax.random.normal(k, s, jnp.float32)

    ln_in_g = 1.0 + rn(ks[0], (FD,), 0.01); ln_in_b = rn(ks[1], (FD,), 0.01)
    wk = rn(ks[2], (FD, D)); wv = rn(ks[3], (FD, D))
    wq = rn(ks[4], (D, D));  wo = rn(ks[5], (D, D))
    ln_s_g = 1.0 + rn(ks[6], (D,), 0.01); ln_s_b = rn(ks[7], (D,), 0.01)
    ln_f_g = 1.0 + rn(ks[8], (D,), 0.01); ln_f_b = rn(ks[9], (D,), 0.01)
    w1 = rn(ks[10], (D, H)); b1 = rn(ks[11], (H,), 0.01)
    w2 = rn(ks[12], (H, D)); b2 = rn(ks[13], (D,), 0.01)

    # TODO(synk): AdaLoRA/GumbelAdaLoRA definitions not provided — modeled as
    # per-codebook-entry low-rank adapters A (in,R), B (R,out), delta = x A B * scale.
    A1 = rn(ks[14], (K, D, R)); B1 = rn(ks[15], (K, R, H))
    A2 = rn(ks[16], (K, H, R)); B2 = rn(ks[17], (K, R, D))
    codebook = rn(ks[18], (K, D), 0.5)
    w_dec = rn(ks[19], (D, FD))

    # ---- vector slab: (8, 128) ----
    vec_slab = jnp.zeros((8, 128), jnp.float32)
    for row, val in ((V_LN_IN_G, ln_in_g), (V_LN_IN_B, ln_in_b),
                     (V_LN_S_G, ln_s_g), (V_LN_S_B, ln_s_b),
                     (V_LN_F_G, ln_f_g), (V_LN_F_B, ln_f_b),
                     (V_B1, b1), (V_B2, b2)):
        vec_slab = vec_slab.at[row, :val.shape[0]].set(val)

    # LoRA tables flattened so the K*R axis is a lane axis:
    #   A_flat[:, k*R + r] = A[k, :, r]      B_flat[k*R + r, :] = B[k, r, :]
    a1f = jnp.transpose(A1, (1, 0, 2)).reshape(D, KR)
    b1f = B1.reshape(KR, H)
    a2f = jnp.transpose(A2, (1, 0, 2)).reshape(H, KR)
    b2f = B2.reshape(KR, D)

    wkv = jnp.concatenate([wk, wv], axis=1)                 # fused k/v weight (FD, 2D)

    # ---- 32-row weight slab: each segment padded to a 128-aligned column block ----
    w32_slab = jnp.concatenate(
        [_pad_cols(wq), _pad_cols(wo), _pad_cols(wkv), _pad_cols(w1),
         _pad_cols(a1f), _pad_cols(w_dec), _pad_cols(codebook.T)], axis=1)  # (32, 896)

    # ---- 128-row weight slab ----
    w128_slab = jnp.concatenate(
        [_pad_cols(b1f), _pad_cols(a2f), _pad_cols(w2), _pad_cols(b2f)], axis=1)  # (128, 512)

    return vec_slab, w32_slab, w128_slab


# ----------------------------------- main -------------------------------------
if __name__ == "__main__":
    vec_slab, w32_slab, w128_slab = make_params()

    dkey = jax.random.PRNGKey(0)
    k_feat, k_cond = jax.random.split(dkey)
    feature = jax.random.normal(k_feat, (B, N, FD), jnp.float32)
    conditioning = jax.random.normal(k_cond, (B, S, D), jnp.float32)

    out = forward(feature, conditioning, vec_slab, w32_slab, w128_slab)
    out = jax.tree_util.tree_map(
        lambda x: jax.block_until_ready(x) if isinstance(x, jax.Array) else x, out)

    assert out["slots"].shape == (B, S, D)
    assert out["feature_attributions"].shape == (B, S, N)
    assert out["pre_slots"].shape == (B, S, D)
    assert out["pool_indices"].shape == (B, S)
    assert out["object_decoder"].shape == (B, S, FD)
    assert bool(jnp.all(jnp.isfinite(out["slots"])))
    assert bool(jnp.all(jnp.isfinite(out["feature_attributions"])))
    print("KERNEL_OK")
</pallas_src>

<mosaic_0001>
module attributes {stable_mosaic.version = 11 : i64} {
  func.func @fused_kernel(%arg0: i32, %arg1: memref<1x64x32xf32, #tpu.memory_space<vmem>>, %arg2: memref<1x8x32xf32, #tpu.memory_space<vmem>>, %arg3: memref<8x128xf32, #tpu.memory_space<vmem>>, %arg4: memref<32x896xf32, #tpu.memory_space<vmem>>, %arg5: memref<128x512xf32, #tpu.memory_space<vmem>>, %arg6: memref<1x8x256xf32, #tpu.memory_space<vmem>>, %arg7: memref<1x8x1xi32, #tpu.memory_space<vmem>>, %arg8: memref<1x8x1xf32, #tpu.memory_space<vmem>>) attributes {dimension_semantics = [#tpu.dimension_semantics<parallel>], iteration_bounds = array<i64: 2>, scalar_prefetch = 0 : i64, scratch_operands = 0 : i64, tpu.core_type = #tpu.core_type<tc>, window_params = [{transform_indices = @transform_0, window_bounds = array<i64: 1, 64, 32>}, {transform_indices = @transform_1, window_bounds = array<i64: 1, 8, 32>}, {pipeline_mode = #tpu.pipeline_mode<synchronous>, transform_indices = @transform_2, window_bounds = array<i64: 8, 128>}, {pipeline_mode = #tpu.pipeline_mode<synchronous>, transform_indices = @transform_3, window_bounds = array<i64: 32, 896>}, {pipeline_mode = #tpu.pipeline_mode<synchronous>, transform_indices = @transform_4, window_bounds = array<i64: 128, 512>}, {transform_indices = @transform_5, window_bounds = array<i64: 1, 8, 256>}, {transform_indices = @transform_6, window_bounds = array<i64: 1, 8, 1>}, {transform_indices = @transform_7, window_bounds = array<i64: 1, 8, 1>}]} {
    %c0 = arith.constant 0 : index
    %c0_0 = arith.constant 0 : index
    %0 = vector.load %arg3[%c0, %c0_0] : memref<8x128xf32, #tpu.memory_space<vmem>>, vector<1x32xf32>
    %c1 = arith.constant 1 : index
    %c0_1 = arith.constant 0 : index
    %1 = vector.load %arg3[%c1, %c0_1] : memref<8x128xf32, #tpu.memory_space<vmem>>, vector<1x32xf32>
    %c2 = arith.constant 2 : index
    %c0_2 = arith.constant 0 : index
    %2 = vector.load %arg3[%c2, %c0_2] : memref<8x128xf32, #tpu.memory_space<vmem>>, vector<1x32xf32>
    %c3 = arith.constant 3 : index
    %c0_3 = arith.constant 0 : index
    %3 = vector.load %arg3[%c3, %c0_3] : memref<8x128xf32, #tpu.memory_space<vmem>>, vector<1x32xf32>
    %c4 = arith.constant 4 : index
    %c0_4 = arith.constant 0 : index
    %4 = vector.load %arg3[%c4, %c0_4] : memref<8x128xf32, #tpu.memory_space<vmem>>, vector<1x32xf32>
    %c5 = arith.constant 5 : index
    %c0_5 = arith.constant 0 : index
    %5 = vector.load %arg3[%c5, %c0_5] : memref<8x128xf32, #tpu.memory_space<vmem>>, vector<1x32xf32>
    %c6 = arith.constant 6 : index
    %c0_6 = arith.constant 0 : index
    %6 = vector.load %arg3[%c6, %c0_6] : memref<8x128xf32, #tpu.memory_space<vmem>>, vector<1x128xf32>
    %c7 = arith.constant 7 : index
    %c0_7 = arith.constant 0 : index
    %7 = vector.load %arg3[%c7, %c0_7] : memref<8x128xf32, #tpu.memory_space<vmem>>, vector<1x32xf32>
    %c0_8 = arith.constant 0 : index
    %c0_9 = arith.constant 0 : index
    %8 = vector.load %arg4[%c0_8, %c0_9] : memref<32x896xf32, #tpu.memory_space<vmem>>, vector<32x32xf32>
    %c0_10 = arith.constant 0 : index
    %c128 = arith.constant 128 : index
    %9 = vector.load %arg4[%c0_10, %c128] : memref<32x896xf32, #tpu.memory_space<vmem>>, vector<32x32xf32>
    %c0_11 = arith.constant 0 : index
    %c384 = arith.constant 384 : index
    %10 = vector.load %arg4[%c0_11, %c384] : memref<32x896xf32, #tpu.memory_space<vmem>>, vector<32x128xf32>
    %c0_12 = arith.constant 0 : index
    %c512 = arith.constant 512 : index
    %11 = vector.load %arg4[%c0_12, %c512] : memref<32x896xf32, #tpu.memory_space<vmem>>, vector<32x128xf32>
    %c0_13 = arith.constant 0 : index
    %c256 = arith.constant 256 : index
    %12 = vector.load %arg5[%c0_13, %c256] : memref<128x512xf32, #tpu.memory_space<vmem>>, vector<128x32xf32>
    %c0_14 = arith.constant 0 : index
    %c384_15 = arith.constant 384 : index
    %13 = vector.load %arg5[%c0_14, %c384_15] : memref<128x512xf32, #tpu.memory_space<vmem>>, vector<128x32xf32>
    %c0_16 = arith.constant 0 : index
    %c0_17 = arith.constant 0 : index
    %c0_18 = arith.constant 0 : index
    %14 = vector.load %arg1[%c0_16, %c0_17, %c0_18] : memref<1x64x32xf32, #tpu.memory_space<vmem>>, vector<1x64x32xf32>
    %15 = vector.shape_cast %14 : vector<1x64x32xf32> to vector<64x32xf32>
    %cst = arith.constant dense<0.000000e+00> : vector<64xf32>
    %16 = vector.multi_reduction <add>, %15, %cst [1] : vector<64x32xf32> to vector<64xf32>
    %17 = vector.shape_cast %16 : vector<64xf32> to vector<64x1xf32>
    %cst_19 = arith.constant 3.200000e+01 : f32
    %18 = vector.broadcast %cst_19 : f32 to vector<64x1xf32>
    %19 = arith.divf %17, %18 : vector<64x1xf32>
    %20 = vector.broadcast %19 : vector<64x1xf32> to vector<64x32xf32>
    %21 = arith.subf %15, %20 : vector<64x32xf32>
    %22 = arith.mulf %21, %21 : vector<64x32xf32>
    %cst_20 = arith.constant dense<0.000000e+00> : vector<64xf32>
    %23 = vector.multi_reduction <add>, %22, %cst_20 [1] : vector<64x32xf32> to vector<64xf32>
    %24 = vector.shape_cast %23 : vector<64xf32> to vector<64x1xf32>
    %cst_21 = arith.constant 3.200000e+01 : f32
    %25 = vector.broadcast %cst_21 : f32 to vector<64x1xf32>
    %26 = arith.divf %24, %25 : vector<64x1xf32>
    %27 = vector.broadcast %19 : vector<64x1xf32> to vector<64x32xf32>
    %28 = arith.subf %15, %27 : vector<64x32xf32>
    %cst_22 = arith.constant 9.99999974E-6 : f32
    %29 = vector.broadcast %cst_22 : f32 to vector<64x1xf32>
    %30 = arith.addf %26, %29 : vector<64x1xf32>
    %31 = math.rsqrt %30 : vector<64x1xf32>
    %32 = vector.broadcast %31 : vector<64x1xf32> to vector<64x32xf32>
    %33 = arith.mulf %28, %32 : vector<64x32xf32>
    %34 = vector.broadcast %0 : vector<1x32xf32> to vector<64x32xf32>
    %35 = arith.mulf %33, %34 : vector<64x32xf32>
    %36 = vector.broadcast %1 : vector<1x32xf32> to vector<64x32xf32>
    %37 = arith.addf %35, %36 : vector<64x32xf32>
    %c0_23 = arith.constant 0 : index
    %c256_24 = arith.constant 256 : index
    %38 = vector.load %arg4[%c0_23, %c256_24] : memref<32x896xf32, #tpu.memory_space<vmem>>, vector<32x64xf32>
    %cst_25 = arith.constant dense<0.000000e+00> : vector<64x64xf32>
    %39 = tpu.matmul %37, %38, %cst_25 {dimension_numbers = #tpu.dot_dimension_numbers<[1], [0], [0], [1], [0, 0, 1, 1], [], []>} : vector<64x32xf32>, vector<32x64xf32>, vector<64x64xf32> -> vector<64x64xf32>
    %40 = vector.extract_strided_slice %39 {offsets = [0, 0], sizes = [64, 32], strides = [1, 1]} : vector<64x64xf32> to vector<64x32xf32>
    %41 = vector.extract_strided_slice %39 {offsets = [0, 32], sizes = [64, 32], strides = [1, 1]} : vector<64x64xf32> to vector<64x32xf32>
    %c0_26 = arith.constant 0 : index
    %c0_27 = arith.constant 0 : index
    %c0_28 = arith.constant 0 : index
    %42 = vector.load %arg2[%c0_26, %c0_27, %c0_28] : memref<1x8x32xf32, #tpu.memory_space<vmem>>, vector<1x8x32xf32>
    %43 = vector.shape_cast %42 : vector<1x8x32xf32> to vector<8x32xf32>
    %cst_29 = arith.constant dense<0.000000e+00> : vector<8xf32>
    %44 = vector.multi_reduction <add>, %43, %cst_29 [1] : vector<8x32xf32> to vector<8xf32>
    %45 = vector.shape_cast %44 : vector<8xf32> to vector<8x1xf32>
    %cst_30 = arith.constant 3.200000e+01 : f32
    %46 = vector.broadcast %cst_30 : f32 to vector<8x1xf32>
    %47 = arith.divf %45, %46 : vector<8x1xf32>
    %48 = vector.broadcast %47 : vector<8x1xf32> to vector<8x32xf32>
    %49 = arith.subf %43, %48 : vector<8x32xf32>
    %50 = arith.mulf %49, %49 : vector<8x32xf32>
    %cst_31 = arith.constant dense<0.000000e+00> : vector<8xf32>
    %51 = vector.multi_reduction <add>, %50, %cst_31 [1] : vector<8x32xf32> to vector<8xf32>
    %52 = vector.shape_cast %51 : vector<8xf32> to vector<8x1xf32>
    %cst_32 = arith.constant 3.200000e+01 : f32
    %53 = vector.broadcast %cst_32 : f32 to vector<8x1xf32>
    %54 = arith.divf %52, %53 : vector<8x1xf32>
    %55 = vector.broadcast %47 : vector<8x1xf32> to vector<8x32xf32>
    %56 = arith.subf %43, %55 : vector<8x32xf32>
    %cst_33 = arith.constant 9.99999974E-6 : f32
    %57 = vector.broadcast %cst_33 : f32 to vector<8x1xf32>
    %58 = arith.addf %54, %57 : vector<8x1xf32>
    %59 = math.rsqrt %58 : vector<8x1xf32>
    %60 = vector.broadcast %59 : vector<8x1xf32> to vector<8x32xf32>
    %61 = arith.mulf %56, %60 : vector<8x32xf32>
    %62 = vector.broadcast %2 : vector<1x32xf32> to vector<8x32xf32>
    %63 = arith.mulf %61, %62 : vector<8x32xf32>
    %64 = vector.broadcast %3 : vector<1x32xf32> to vector<8x32xf32>
    %65 = arith.addf %63, %64 : vector<8x32xf32>
    %cst_34 = arith.constant dense<0.000000e+00> : vector<8x32xf32>
    %66 = tpu.matmul %65, %8, %cst_34 {dimension_numbers = #tpu.dot_dimension_numbers<[1], [0], [0], [1], [0, 0, 1, 1], [], []>} : vector<8x32xf32>, vector<32x32xf32>, vector<8x32xf32> -> vector<8x32xf32>
    %cst_35 = arith.constant dense<0.000000e+00> : vector<8x64xf32>
    %67 = tpu.matmul %66, %40, %cst_35 {dimension_numbers = #tpu.dot_dimension_numbers<[1], [1], [0], [0], [0, 0, 1, 0], [], []>} : vector<8x32xf32>, vector<64x32xf32>, vector<8x64xf32> -> vector<8x64xf32>
    %cst_36 = arith.constant 0.176776692 : f32
    %68 = vector.broadcast %cst_36 : f32 to vector<8x64xf32>
    %69 = arith.mulf %67, %68 : vector<8x64xf32>
    %cst_37 = arith.constant dense<0xFF800000> : vector<64xf32>
    %70 = vector.multi_reduction <maximumf>, %69, %cst_37 [0] : vector<8x64xf32> to vector<64xf32>
    %71 = vector.shape_cast %70 : vector<64xf32> to vector<1x64xf32>
    %72 = vector.broadcast %71 : vector<1x64xf32> to vector<8x64xf32>
    %73 = arith.subf %69, %72 : vector<8x64xf32>
    %74 = math.exp %73 : vector<8x64xf32>
    %cst_38 = arith.constant dense<0.000000e+00> : vector<64xf32>
    %75 = vector.multi_reduction <add>, %74, %cst_38 [0] : vector<8x64xf32> to vector<64xf32>
    %76 = vector.shape_cast %75 : vector<64xf32> to vector<1x64xf32>
    %77 = tpu.reciprocal %76 {approx = true} : vector<1x64xf32> -> vector<1x64xf32>
    %78 = vector.broadcast %77 : vector<1x64xf32> to vector<8x64xf32>
    %79 = arith.mulf %74, %78 : vector<8x64xf32>
    %cst_39 = arith.constant 9.99999993E-9 : f32
    %80 = vector.broadcast %cst_39 : f32 to vector<8x64xf32>
    %81 = arith.addf %79, %80 : vector<8x64xf32>
    %cst_40 = arith.constant dense<0.000000e+00> : vector<8xf32>
    %82 = vector.multi_reduction <add>, %81, %cst_40 [1] : vector<8x64xf32> to vector<8xf32>
    %83 = vector.shape_cast %82 : vector<8xf32> to vector<8x1xf32>
    %84 = tpu.reciprocal %83 {approx = true} : vector<8x1xf32> -> vector<8x1xf32>
    %85 = vector.broadcast %84 : vector<8x1xf32> to vector<8x64xf32>
    %86 = arith.mulf %81, %85 : vector<8x64xf32>
    %cst_41 = arith.constant dense<0.000000e+00> : vector<8x32xf32>
    %87 = tpu.matmul %86, %41, %cst_41 {dimension_numbers = #tpu.dot_dimension_numbers<[1], [0], [0], [1], [0, 0, 1, 1], [], []>} : vector<8x64xf32>, vector<64x32xf32>, vector<8x32xf32> -> vector<8x32xf32>
    %cst_42 = arith.constant dense<0.000000e+00> : vector<8x32xf32>
    %88 = tpu.matmul %87, %9, %cst_42 {dimension_numbers = #tpu.dot_dimension_numbers<[1], [0], [0], [1], [0, 0, 1, 1], [], []>} : vector<8x32xf32>, vector<32x32xf32>, vector<8x32xf32> -> vector<8x32xf32>
    %89 = arith.addf %88, %43 : vector<8x32xf32>
    %cst_43 = arith.constant dense<0.000000e+00> : vector<8xf32>
    %90 = vector.multi_reduction <add>, %89, %cst_43 [1] : vector<8x32xf32> to vector<8xf32>
    %91 = vector.shape_cast %90 : vector<8xf32> to vector<8x1xf32>
    %cst_44 = arith.constant 3.200000e+01 : f32
    %92 = vector.broadcast %cst_44 : f32 to vector<8x1xf32>
    %93 = arith.divf %91, %92 : vector<8x1xf32>
    %94 = vector.broadcast %93 : vector<8x1xf32> to vector<8x32xf32>
    %95 = arith.subf %89, %94 : vector<8x32xf32>
    %96 = arith.mulf %95, %95 : vector<8x32xf32>
    %cst_45 = arith.constant dense<0.000000e+00> : vector<8xf32>
    %97 = vector.multi_reduction <add>, %96, %cst_45 [1] : vector<8x32xf32> to vector<8xf32>
    %98 = vector.shape_cast %97 : vector<8xf32> to vector<8x1xf32>
    %cst_46 = arith.constant 3.200000e+01 : f32
    %99 = vector.broadcast %cst_46 : f32 to vector<8x1xf32>
    %100 = arith.divf %98, %99 : vector<8x1xf32>
    %101 = vector.broadcast %93 : vector<8x1xf32> to vector<8x32xf32>
    %102 = arith.subf %89, %101 : vector<8x32xf32>
    %cst_47 = arith.constant 9.99999974E-6 : f32
    %103 = vector.broadcast %cst_47 : f32 to vector<8x1xf32>
    %104 = arith.addf %100, %103 : vector<8x1xf32>
    %105 = math.rsqrt %104 : vector<8x1xf32>
    %106 = vector.broadcast %105 : vector<8x1xf32> to vector<8x32xf32>
    %107 = arith.mulf %102, %106 : vector<8x32xf32>
    %108 = vector.broadcast %4 : vector<1x32xf32> to vector<8x32xf32>
    %109 = arith.mulf %107, %108 : vector<8x32xf32>
    %110 = vector.broadcast %5 : vector<1x32xf32> to vector<8x32xf32>
    %111 = arith.addf %109, %110 : vector<8x32xf32>
    %cst_48 = arith.constant dense<0.000000e+00> : vector<8x128xf32>
    %112 = tpu.matmul %111, %10, %cst_48 {dimension_numbers = #tpu.dot_dimension_numbers<[1], [0], [0], [1], [0, 0, 1, 1], [], []>} : vector<8x32xf32>, vector<32x128xf32>, vector<8x128xf32> -> vector<8x128xf32>
    %113 = vector.broadcast %6 : vector<1x128xf32> to vector<8x128xf32>
    %114 = arith.addf %112, %113 : vector<8x128xf32>
    %cst_49 = arith.constant 0.000000e+00 : f32
    %115 = vector.broadcast %cst_49 : f32 to vector<8x128xf32>
    %116 = arith.maximumf %114, %115 : vector<8x128xf32>
    %cst_50 = arith.constant dense<0.000000e+00> : vector<8x32xf32>
    %117 = tpu.matmul %116, %12, %cst_50 {dimension_numbers = #tpu.dot_dimension_numbers<[1], [0], [0], [1], [0, 0, 1, 1], [], []>} : vector<8x128xf32>, vector<128x32xf32>, vector<8x32xf32> -> vector<8x32xf32>
    %118 = vector.broadcast %7 : vector<1x32xf32> to vector<8x32xf32>
    %119 = arith.addf %117, %118 : vector<8x32xf32>
    %120 = arith.addf %119, %89 : vector<8x32xf32>
    %cst_51 = arith.constant dense<0.000000e+00> : vector<8xf32>
    %121 = vector.multi_reduction <add>, %120, %cst_51 [1] : vector<8x32xf32> to vector<8xf32>
    %122 = vector.shape_cast %121 : vector<8xf32> to vector<8x1xf32>
    %cst_52 = arith.constant 3.200000e+01 : f32
    %123 = vector.broadcast %cst_52 : f32 to vector<8x1xf32>
    %124 = arith.divf %122, %123 : vector<8x1xf32>
    %125 = vector.broadcast %124 : vector<8x1xf32> to vector<8x32xf32>
    %126 = arith.subf %120, %125 : vector<8x32xf32>
    %127 = arith.mulf %126, %126 : vector<8x32xf32>
    %cst_53 = arith.constant dense<0.000000e+00> : vector<8xf32>
    %128 = vector.multi_reduction <add>, %127, %cst_53 [1] : vector<8x32xf32> to vector<8xf32>
    %129 = vector.shape_cast %128 : vector<8xf32> to vector<8x1xf32>
    %cst_54 = arith.constant 3.200000e+01 : f32
    %130 = vector.broadcast %cst_54 : f32 to vector<8x1xf32>
    %131 = arith.divf %129, %130 : vector<8x1xf32>
    %132 = vector.broadcast %124 : vector<8x1xf32> to vector<8x32xf32>
    %133 = arith.subf %120, %132 : vector<8x32xf32>
    %cst_55 = arith.constant 9.99999974E-6 : f32
    %134 = vector.broadcast %cst_55 : f32 to vector<8x1xf32>
    %135 = arith.addf %131, %134 : vector<8x1xf32>
    %136 = math.rsqrt %135 : vector<8x1xf32>
    %137 = vector.broadcast %136 : vector<8x1xf32> to vector<8x32xf32>
    %138 = arith.mulf %133, %137 : vector<8x32xf32>
    %139 = vector.broadcast %2 : vector<1x32xf32> to vector<8x32xf32>
    %140 = arith.mulf %138, %139 : vector<8x32xf32>
    %141 = vector.broadcast %3 : vector<1x32xf32> to vector<8x32xf32>
    %142 = arith.addf %140, %141 : vector<8x32xf32>
    %cst_56 = arith.constant dense<0.000000e+00> : vector<8x32xf32>
    %143 = tpu.matmul %142, %8, %cst_56 {dimension_numbers = #tpu.dot_dimension_numbers<[1], [0], [0], [1], [0, 0, 1, 1], [], []>} : vector<8x32xf32>, vector<32x32xf32>, vector<8x32xf32> -> vector<8x32xf32>
    %cst_57 = arith.constant dense<0.000000e+00> : vector<8x64xf32>
    %144 = tpu.matmul %143, %40, %cst_57 {dimension_numbers = #tpu.dot_dimension_numbers<[1], [1], [0], [0], [0, 0, 1, 0], [], []>} : vector<8x32xf32>, vector<64x32xf32>, vector<8x64xf32> -> vector<8x64xf32>
    %cst_58 = arith.constant 0.176776692 : f32
    %145 = vector.broadcast %cst_58 : f32 to vector<8x64xf32>
    %146 = arith.mulf %144, %145 : vector<8x64xf32>
    %cst_59 = arith.constant dense<0xFF800000> : vector<64xf32>
    %147 = vector.multi_reduction <maximumf>, %146, %cst_59 [0] : vector<8x64xf32> to vector<64xf32>
    %148 = vector.shape_cast %147 : vector<64xf32> to vector<1x64xf32>
    %149 = vector.broadcast %148 : vector<1x64xf32> to vector<8x64xf32>
    %150 = arith.subf %146, %149 : vector<8x64xf32>
    %151 = math.exp %150 : vector<8x64xf32>
    %cst_60 = arith.constant dense<0.000000e+00> : vector<64xf32>
    %152 = vector.multi_reduction <add>, %151, %cst_60 [0] : vector<8x64xf32> to vector<64xf32>
    %153 = vector.shape_cast %152 : vector<64xf32> to vector<1x64xf32>
    %154 = tpu.reciprocal %153 {approx = true} : vector<1x64xf32> -> vector<1x64xf32>
    %155 = vector.broadcast %154 : vector<1x64xf32> to vector<8x64xf32>
    %156 = arith.mulf %151, %155 : vector<8x64xf32>
    %cst_61 = arith.constant 9.99999993E-9 : f32
    %157 = vector.broadcast %cst_61 : f32 to vector<8x64xf32>
    %158 = arith.addf %156, %157 : vector<8x64xf32>
    %cst_62 = arith.constant dense<0.000000e+00> : vector<8xf32>
    %159 = vector.multi_reduction <add>, %158, %cst_62 [1] : vector<8x64xf32> to vector<8xf32>
    %160 = vector.shape_cast %159 : vector<8xf32> to vector<8x1xf32>
    %161 = tpu.reciprocal %160 {approx = true} : vector<8x1xf32> -> vector<8x1xf32>
    %162 = vector.broadcast %161 : vector<8x1xf32> to vector<8x64xf32>
    %163 = arith.mulf %158, %162 : vector<8x64xf32>
    %cst_63 = arith.constant dense<0.000000e+00> : vector<8x32xf32>
    %164 = tpu.matmul %163, %41, %cst_63 {dimension_numbers = #tpu.dot_dimension_numbers<[1], [0], [0], [1], [0, 0, 1, 1], [], []>} : vector<8x64xf32>, vector<64x32xf32>, vector<8x32xf32> -> vector<8x32xf32>
    %cst_64 = arith.constant dense<0.000000e+00> : vector<8x32xf32>
    %165 = tpu.matmul %164, %9, %cst_64 {dimension_numbers = #tpu.dot_dimension_numbers<[1], [0], [0], [1], [0, 0, 1, 1], [], []>} : vector<8x32xf32>, vector<32x32xf32>, vector<8x32xf32> -> vector<8x32xf32>
    %166 = arith.addf %165, %120 : vector<8x32xf32>
    %cst_65 = arith.constant dense<0.000000e+00> : vector<8xf32>
    %167 = vector.multi_reduction <add>, %166, %cst_65 [1] : vector<8x32xf32> to vector<8xf32>
    %168 = vector.shape_cast %167 : vector<8xf32> to vector<8x1xf32>
    %cst_66 = arith.constant 3.200000e+01 : f32
    %169 = vector.broadcast %cst_66 : f32 to vector<8x1xf32>
    %170 = arith.divf %168, %169 : vector<8x1xf32>
    %171 = vector.broadcast %170 : vector<8x1xf32> to vector<8x32xf32>
    %172 = arith.subf %166, %171 : vector<8x32xf32>
    %173 = arith.mulf %172, %172 : vector<8x32xf32>
    %cst_67 = arith.constant dense<0.000000e+00> : vector<8xf32>
    %174 = vector.multi_reduction <add>, %173, %cst_67 [1] : vector<8x32xf32> to vector<8xf32>
    %175 = vector.shape_cast %174 : vector<8xf32> to vector<8x1xf32>
    %cst_68 = arith.constant 3.200000e+01 : f32
    %176 = vector.broadcast %cst_68 : f32 to vector<8x1xf32>
    %177 = arith.divf %175, %176 : vector<8x1xf32>
    %178 = vector.broadcast %170 : vector<8x1xf32> to vector<8x32xf32>
    %179 = arith.subf %166, %178 : vector<8x32xf32>
    %cst_69 = arith.constant 9.99999974E-6 : f32
    %180 = vector.broadcast %cst_69 : f32 to vector<8x1xf32>
    %181 = arith.addf %177, %180 : vector<8x1xf32>
    %182 = math.rsqrt %181 : vector<8x1xf32>
    %183 = vector.broadcast %182 : vector<8x1xf32> to vector<8x32xf32>
    %184 = arith.mulf %179, %183 : vector<8x32xf32>
    %185 = vector.broadcast %4 : vector<1x32xf32> to vector<8x32xf32>
    %186 = arith.mulf %184, %185 : vector<8x32xf32>
    %187 = vector.broadcast %5 : vector<1x32xf32> to vector<8x32xf32>
    %188 = arith.addf %186, %187 : vector<8x32xf32>
    %cst_70 = arith.constant dense<0.000000e+00> : vector<8x128xf32>
    %189 = tpu.matmul %188, %10, %cst_70 {dimension_numbers = #tpu.dot_dimension_numbers<[1], [0], [0], [1], [0, 0, 1, 1], [], []>} : vector<8x32xf32>, vector<32x128xf32>, vector<8x128xf32> -> vector<8x128xf32>
    %190 = vector.broadcast %6 : vector<1x128xf32> to vector<8x128xf32>
    %191 = arith.addf %189, %190 : vector<8x128xf32>
    %cst_71 = arith.constant 0.000000e+00 : f32
    %192 = vector.broadcast %cst_71 : f32 to vector<8x128xf32>
    %193 = arith.maximumf %191, %192 : vector<8x128xf32>
    %cst_72 = arith.constant dense<0.000000e+00> : vector<8x32xf32>
    %194 = tpu.matmul %193, %12, %cst_72 {dimension_numbers = #tpu.dot_dimension_numbers<[1], [0], [0], [1], [0, 0, 1, 1], [], []>} : vector<8x128xf32>, vector<128x32xf32>, vector<8x32xf32> -> vector<8x32xf32>
    %195 = vector.broadcast %7 : vector<1x32xf32> to vector<8x32xf32>
    %196 = arith.addf %194, %195 : vector<8x32xf32>
    %197 = arith.addf %196, %166 : vector<8x32xf32>
    %cst_73 = arith.constant dense<0.000000e+00> : vector<8xf32>
    %198 = vector.multi_reduction <add>, %197, %cst_73 [1] : vector<8x32xf32> to vector<8xf32>
    %199 = vector.shape_cast %198 : vector<8xf32> to vector<8x1xf32>
    %cst_74 = arith.constant 3.200000e+01 : f32
    %200 = vector.broadcast %cst_74 : f32 to vector<8x1xf32>
    %201 = arith.divf %199, %200 : vector<8x1xf32>
    %202 = vector.broadcast %201 : vector<8x1xf32> to vector<8x32xf32>
    %203 = arith.subf %197, %202 : vector<8x32xf32>
    %204 = arith.mulf %203, %203 : vector<8x32xf32>
    %cst_75 = arith.constant dense<0.000000e+00> : vector<8xf32>
    %205 = vector.multi_reduction <add>, %204, %cst_75 [1] : vector<8x32xf32> to vector<8xf32>
    %206 = vector.shape_cast %205 : vector<8xf32> to vector<8x1xf32>
    %cst_76 = arith.constant 3.200000e+01 : f32
    %207 = vector.broadcast %cst_76 : f32 to vector<8x1xf32>
    %208 = arith.divf %206, %207 : vector<8x1xf32>
    %209 = vector.broadcast %201 : vector<8x1xf32> to vector<8x32xf32>
    %210 = arith.subf %197, %209 : vector<8x32xf32>
    %cst_77 = arith.constant 9.99999974E-6 : f32
    %211 = vector.broadcast %cst_77 : f32 to vector<8x1xf32>
    %212 = arith.addf %208, %211 : vector<8x1xf32>
    %213 = math.rsqrt %212 : vector<8x1xf32>
    %214 = vector.broadcast %213 : vector<8x1xf32> to vector<8x32xf32>
    %215 = arith.mulf %210, %214 : vector<8x32xf32>
    %216 = vector.broadcast %2 : vector<1x32xf32> to vector<8x32xf32>
    %217 = arith.mulf %215, %216 : vector<8x32xf32>
    %218 = vector.broadcast %3 : vector<1x32xf32> to vector<8x32xf32>
    %219 = arith.addf %217, %218 : vector<8x32xf32>
    %cst_78 = arith.constant dense<0.000000e+00> : vector<8x32xf32>
    %220 = tpu.matmul %219, %8, %cst_78 {dimension_numbers = #tpu.dot_dimension_numbers<[1], [0], [0], [1], [0, 0, 1, 1], [], []>} : vector<8x32xf32>, vector<32x32xf32>, vector<8x32xf32> -> vector<8x32xf32>
    %cst_79 = arith.constant dense<0.000000e+00> : vector<8x64xf32>
    %221 = tpu.matmul %220, %40, %cst_79 {dimension_numbers = #tpu.dot_dimension_numbers<[1], [1], [0], [0], [0, 0, 1, 0], [], []>} : vector<8x32xf32>, vector<64x32xf32>, vector<8x64xf32> -> vector<8x64xf32>
    %cst_80 = arith.constant 0.176776692 : f32
    %222 = vector.broadcast %cst_80 : f32 to vector<8x64xf32>
    %223 = arith.mulf %221, %222 : vector<8x64xf32>
    %cst_81 = arith.constant dense<0xFF800000> : vector<64xf32>
    %224 = vector.multi_reduction <maximumf>, %223, %cst_81 [0] : vector<8x64xf32> to vector<64xf32>
    %225 = vector.shape_cast %224 : vector<64xf32> to vector<1x64xf32>
    %226 = vector.broadcast %225 : vector<1x64xf32> to vector<8x64xf32>
    %227 = arith.subf %223, %226 : vector<8x64xf32>
    %228 = math.exp %227 : vector<8x64xf32>
    %cst_82 = arith.constant dense<0.000000e+00> : vector<64xf32>
    %229 = vector.multi_reduction <add>, %228, %cst_82 [0] : vector<8x64xf32> to vector<64xf32>
    %230 = vector.shape_cast %229 : vector<64xf32> to vector<1x64xf32>
    %231 = tpu.reciprocal %230 {approx = true} : vector<1x64xf32> -> vector<1x64xf32>
    %232 = vector.broadcast %231 : vector<1x64xf32> to vector<8x64xf32>
    %233 = arith.mulf %228, %232 : vector<8x64xf32>
    %cst_83 = arith.constant 9.99999993E-9 : f32
    %234 = vector.broadcast %cst_83 : f32 to vector<8x64xf32>
    %235 = arith.addf %233, %234 : vector<8x64xf32>
    %cst_84 = arith.constant dense<0.000000e+00> : vector<8xf32>
    %236 = vector.multi_reduction <add>, %235, %cst_84 [1] : vector<8x64xf32> to vector<8xf32>
    %237 = vector.shape_cast %236 : vector<8xf32> to vector<8x1xf32>
    %238 = tpu.reciprocal %237 {approx = true} : vector<8x1xf32> -> vector<8x1xf32>
    %239 = vector.broadcast %238 : vector<8x1xf32> to vector<8x64xf32>
    %240 = arith.mulf %235, %239 : vector<8x64xf32>
    %cst_85 = arith.constant dense<0.000000e+00> : vector<8x32xf32>
    %241 = tpu.matmul %240, %41, %cst_85 {dimension_numbers = #tpu.dot_dimension_numbers<[1], [0], [0], [1], [0, 0, 1, 1], [], []>} : vector<8x64xf32>, vector<64x32xf32>, vector<8x32xf32> -> vector<8x32xf32>
    %cst_86 = arith.constant dense<0.000000e+00> : vector<8x32xf32>
    %242 = tpu.matmul %241, %9, %cst_86 {dimension_numbers = #tpu.dot_dimension_numbers<[1], [0], [0], [1], [0, 0, 1, 1], [], []>} : vector<8x32xf32>, vector<32x32xf32>, vector<8x32xf32> -> vector<8x32xf32>
    %243 = arith.addf %242, %197 : vector<8x32xf32>
    %cst_87 = arith.constant dense<0.000000e+00> : vector<8xf32>
    %244 = vector.multi_reduction <add>, %243, %cst_87 [1] : vector<8x32xf32> to vector<8xf32>
    %245 = vector.shape_cast %244 : vector<8xf32> to vector<8x1xf32>
    %cst_88 = arith.constant 3.200000e+01 : f32
    %246 = vector.broadcast %cst_88 : f32 to vector<8x1xf32>
    %247 = arith.divf %245, %246 : vector<8x1xf32>
    %248 = vector.broadcast %247 : vector<8x1xf32> to vector<8x32xf32>
    %249 = arith.subf %243, %248 : vector<8x32xf32>
    %250 = arith.mulf %249, %249 : vector<8x32xf32>
    %cst_89 = arith.constant dense<0.000000e+00> : vector<8xf32>
    %251 = vector.multi_reduction <add>, %250, %cst_89 [1] : vector<8x32xf32> to vector<8xf32>
    %252 = vector.shape_cast %251 : vector<8xf32> to vector<8x1xf32>
    %cst_90 = arith.constant 3.200000e+01 : f32
    %253 = vector.broadcast %cst_90 : f32 to vector<8x1xf32>
    %254 = arith.divf %252, %253 : vector<8x1xf32>
    %255 = vector.broadcast %247 : vector<8x1xf32> to vector<8x32xf32>
    %256 = arith.subf %243, %255 : vector<8x32xf32>
    %cst_91 = arith.constant 9.99999974E-6 : f32
    %257 = vector.broadcast %cst_91 : f32 to vector<8x1xf32>
    %258 = arith.addf %254, %257 : vector<8x1xf32>
    %259 = math.rsqrt %258 : vector<8x1xf32>
    %260 = vector.broadcast %259 : vector<8x1xf32> to vector<8x32xf32>
    %261 = arith.mulf %256, %260 : vector<8x32xf32>
    %262 = vector.broadcast %4 : vector<1x32xf32> to vector<8x32xf32>
    %263 = arith.mulf %261, %262 : vector<8x32xf32>
    %264 = vector.broadcast %5 : vector<1x32xf32> to vector<8x32xf32>
    %265 = arith.addf %263, %264 : vector<8x32xf32>
    %cst_92 = arith.constant dense<0.000000e+00> : vector<8x128xf32>
    %266 = tpu.matmul %265, %10, %cst_92 {dimension_numbers = #tpu.dot_dimension_numbers<[1], [0], [0], [1], [0, 0, 1, 1], [], []>} : vector<8x32xf32>, vector<32x128xf32>, vector<8x128xf32> -> vector<8x128xf32>
    %267 = vector.broadcast %6 : vector<1x128xf32> to vector<8x128xf32>
    %268 = arith.addf %266, %267 : vector<8x128xf32>
    %cst_93 = arith.constant 0.000000e+00 : f32
    %269 = vector.broadcast %cst_93 : f32 to vector<8x128xf32>
    %270 = arith.maximumf %268, %269 : vector<8x128xf32>
    %cst_94 = arith.constant dense<0.000000e+00> : vector<8x32xf32>
    %271 = tpu.matmul %270, %12, %cst_94 {dimension_numbers = #tpu.dot_dimension_numbers<[1], [0], [0], [1], [0, 0, 1, 1], [], []>} : vector<8x128xf32>, vector<128x32xf32>, vector<8x32xf32> -> vector<8x32xf32>
    %272 = vector.broadcast %7 : vector<1x32xf32> to vector<8x32xf32>
    %273 = arith.addf %271, %272 : vector<8x32xf32>
    %274 = arith.addf %273, %243 : vector<8x32xf32>
    %c0_95 = arith.constant 0 : index
    %c768 = arith.constant 768 : index
    %275 = vector.load %arg4[%c0_95, %c768] : memref<32x896xf32, #tpu.memory_space<vmem>>, vector<32x16xf32>
    %276 = arith.mulf %275, %275 : vector<32x16xf32>
    %cst_96 = arith.constant dense<0.000000e+00> : vector<16xf32>
    %277 = vector.multi_reduction <add>, %276, %cst_96 [0] : vector<32x16xf32> to vector<16xf32>
    %278 = vector.shape_cast %277 : vector<16xf32> to vector<1x16xf32>
    %cst_97 = arith.constant dense<0.000000e+00> : vector<8x16xf32>
    %279 = tpu.matmul %274, %275, %cst_97 {dimension_numbers = #tpu.dot_dimension_numbers<[1], [0], [0], [1], [0, 0, 1, 1], [], []>} : vector<8x32xf32>, vector<32x16xf32>, vector<8x16xf32> -> vector<8x16xf32>
    %cst_98 = arith.constant 2.000000e+00 : f32
    %280 = vector.broadcast %cst_98 : f32 to vector<8x16xf32>
    %281 = arith.mulf %280, %279 : vector<8x16xf32>
    %282 = vector.broadcast %278 : vector<1x16xf32> to vector<8x16xf32>
    %283 = arith.subf %282, %281 : vector<8x16xf32>
    %cst_99 = arith.constant dense<0x7F800000> : vector<8xf32>
    %284 = vector.multi_reduction <minimumf>, %283, %cst_99 [1] : vector<8x16xf32> to vector<8xf32>
    %285 = vector.shape_cast %284 : vector<8xf32> to vector<8x1xf32>
    %286 = tpu.iota {dimensions = array<i32: 1>} : vector<8x16xi32>
    %287 = vector.broadcast %285 : vector<8x1xf32> to vector<8x16xf32>
    %288 = arith.cmpf oeq, %283, %287 : vector<8x16xf32>
    %c16_i32 = arith.constant 16 : i32
    %289 = vector.broadcast %c16_i32 : i32 to vector<8x16xi32>
    %290 = arith.select %288, %286, %289 : vector<8x16xi1>, vector<8x16xi32>
    %cst_100 = arith.constant dense<2147483647> : vector<8xi32>
    %291 = vector.multi_reduction <minsi>, %290, %cst_100 [1] : vector<8x16xi32> to vector<8xi32>
    %292 = vector.shape_cast %291 : vector<8xi32> to vector<8x1xi32>
    %293 = vector.broadcast %292 : vector<8x1xi32> to vector<8x16xi32>
    %294 = arith.cmpi eq, %286, %293 : vector<8x16xi32>
    %295 = arith.extui %294 : vector<8x16xi1> to vector<8x16xi32>
    %296 = arith.sitofp %295 : vector<8x16xi32> to vector<8x16xf32>
    %cst_101 = arith.constant dense<0.000000e+00> : vector<8x32xf32>
    %297 = tpu.matmul %296, %275, %cst_101 {dimension_numbers = #tpu.dot_dimension_numbers<[1], [1], [0], [0], [0, 0, 1, 0], [], []>} : vector<8x16xf32>, vector<32x16xf32>, vector<8x32xf32> -> vector<8x32xf32>
    %298 = arith.subf %274, %297 : vector<8x32xf32>
    %299 = arith.mulf %298, %298 : vector<8x32xf32>
    %cst_102 = arith.constant dense<0.000000e+00> : vector<8xf32>
    %300 = vector.multi_reduction <add>, %299, %cst_102 [1] : vector<8x32xf32> to vector<8xf32>
    %301 = vector.shape_cast %300 : vector<8xf32> to vector<8x1xf32>
    %cst_103 = arith.constant 3.200000e+01 : f32
    %302 = vector.broadcast %cst_103 : f32 to vector<8x1xf32>
    %303 = arith.divf %301, %302 : vector<8x1xf32>
    %304 = tpu.iota {dimensions = array<i32: 1>} : vector<8x128xi32>
    %c8_i32 = arith.constant 8 : i32
    %305 = vector.broadcast %c8_i32 : i32 to vector<8x1xi32>
    %306 = arith.muli %292, %305 : vector<8x1xi32>
    %307 = vector.broadcast %306 : vector<8x1xi32> to vector<8x128xi32>
    %308 = arith.cmpi sge, %304, %307 : vector<8x128xi32>
    %c8_i32_104 = arith.constant 8 : i32
    %309 = vector.broadcast %c8_i32_104 : i32 to vector<8x1xi32>
    %310 = arith.addi %306, %309 : vector<8x1xi32>
    %311 = vector.broadcast %310 : vector<8x1xi32> to vector<8x128xi32>
    %312 = arith.cmpi slt, %304, %311 : vector<8x128xi32>
    %313 = arith.andi %308, %312 : vector<8x128xi1>
    %314 = arith.extui %313 : vector<8x128xi1> to vector<8x128xi32>
    %315 = arith.sitofp %314 : vector<8x128xi32> to vector<8x128xf32>
    %cst_105 = arith.constant dense<0.000000e+00> : vector<8xf32>
    %316 = vector.multi_reduction <add>, %43, %cst_105 [1] : vector<8x32xf32> to vector<8xf32>
    %317 = vector.shape_cast %316 : vector<8xf32> to vector<8x1xf32>
    %cst_106 = arith.constant 3.200000e+01 : f32
    %318 = vector.broadcast %cst_106 : f32 to vector<8x1xf32>
    %319 = arith.divf %317, %318 : vector<8x1xf32>
    %320 = vector.broadcast %319 : vector<8x1xf32> to vector<8x32xf32>
    %321 = arith.subf %43, %320 : vector<8x32xf32>
    %322 = arith.mulf %321, %321 : vector<8x32xf32>
    %cst_107 = arith.constant dense<0.000000e+00> : vector<8xf32>
    %323 = vector.multi_reduction <add>, %322, %cst_107 [1] : vector<8x32xf32> to vector<8xf32>
    %324 = vector.shape_cast %323 : vector<8xf32> to vector<8x1xf32>
    %cst_108 = arith.constant 3.200000e+01 : f32
    %325 = vector.broadcast %cst_108 : f32 to vector<8x1xf32>
    %326 = arith.divf %324, %325 : vector<8x1xf32>
    %327 = vector.broadcast %319 : vector<8x1xf32> to vector<8x32xf32>
    %328 = arith.subf %43, %327 : vector<8x32xf32>
    %cst_109 = arith.constant 9.99999974E-6 : f32
    %329 = vector.broadcast %cst_109 : f32 to vector<8x1xf32>
    %330 = arith.addf %326, %329 : vector<8x1xf32>
    %331 = math.rsqrt %330 : vector<8x1xf32>
    %332 = vector.broadcast %331 : vector<8x1xf32> to vector<8x32xf32>
    %333 = arith.mulf %328, %332 : vector<8x32xf32>
    %334 = vector.broadcast %2 : vector<1x32xf32> to vector<8x32xf32>
    %335 = arith.mulf %333, %334 : vector<8x32xf32>
    %336 = vector.broadcast %3 : vector<1x32xf32> to vector<8x32xf32>
    %337 = arith.addf %335, %336 : vector<8x32xf32>
    %cst_110 = arith.constant dense<0.000000e+00> : vector<8x32xf32>
    %338 = tpu.matmul %337, %8, %cst_110 {dimension_numbers = #tpu.dot_dimension_numbers<[1], [0], [0], [1], [0, 0, 1, 1], [], []>} : vector<8x32xf32>, vector<32x32xf32>, vector<8x32xf32> -> vector<8x32xf32>
    %cst_111 = arith.constant dense<0.000000e+00> : vector<8x64xf32>
    %339 = tpu.matmul %338, %40, %cst_111 {dimension_numbers = #tpu.dot_dimension_numbers<[1], [1], [0], [0], [0, 0, 1, 0], [], []>} : vector<8x32xf32>, vector<64x32xf32>, vector<8x64xf32> -> vector<8x64xf32>
    %cst_112 = arith.constant 0.176776692 : f32
    %340 = vector.broadcast %cst_112 : f32 to vector<8x64xf32>
    %341 = arith.mulf %339, %340 : vector<8x64xf32>
    %cst_113 = arith.constant dense<0xFF800000> : vector<64xf32>
    %342 = vector.multi_reduction <maximumf>, %341, %cst_113 [0] : vector<8x64xf32> to vector<64xf32>
    %343 = vector.shape_cast %342 : vector<64xf32> to vector<1x64xf32>
    %344 = vector.broadcast %343 : vector<1x64xf32> to vector<8x64xf32>
    %345 = arith.subf %341, %344 : vector<8x64xf32>
    %346 = math.exp %345 : vector<8x64xf32>
    %cst_114 = arith.constant dense<0.000000e+00> : vector<64xf32>
    %347 = vector.multi_reduction <add>, %346, %cst_114 [0] : vector<8x64xf32> to vector<64xf32>
    %348 = vector.shape_cast %347 : vector<64xf32> to vector<1x64xf32>
    %349 = tpu.reciprocal %348 {approx = true} : vector<1x64xf32> -> vector<1x64xf32>
    %350 = vector.broadcast %349 : vector<1x64xf32> to vector<8x64xf32>
    %351 = arith.mulf %346, %350 : vector<8x64xf32>
    %cst_115 = arith.constant 9.99999993E-9 : f32
    %352 = vector.broadcast %cst_115 : f32 to vector<8x64xf32>
    %353 = arith.addf %351, %352 : vector<8x64xf32>
    %cst_116 = arith.constant dense<0.000000e+00> : vector<8xf32>
    %354 = vector.multi_reduction <add>, %353, %cst_116 [1] : vector<8x64xf32> to vector<8xf32>
    %355 = vector.shape_cast %354 : vector<8xf32> to vector<8x1xf32>
    %356 = tpu.reciprocal %355 {approx = true} : vector<8x1xf32> -> vector<8x1xf32>
    %357 = vector.broadcast %356 : vector<8x1xf32> to vector<8x64xf32>
    %358 = arith.mulf %353, %357 : vector<8x64xf32>
    %cst_117 = arith.constant dense<0.000000e+00> : vector<8x32xf32>
    %359 = tpu.matmul %358, %41, %cst_117 {dimension_numbers = #tpu.dot_dimension_numbers<[1], [0], [0], [1], [0, 0, 1, 1], [], []>} : vector<8x64xf32>, vector<64x32xf32>, vector<8x32xf32> -> vector<8x32xf32>
    %cst_118 = arith.constant dense<0.000000e+00> : vector<8x32xf32>
    %360 = tpu.matmul %359, %9, %cst_118 {dimension_numbers = #tpu.dot_dimension_numbers<[1], [0], [0], [1], [0, 0, 1, 1], [], []>} : vector<8x32xf32>, vector<32x32xf32>, vector<8x32xf32> -> vector<8x32xf32>
    %361 = arith.addf %360, %43 : vector<8x32xf32>
    %cst_119 = arith.constant dense<0.000000e+00> : vector<8xf32>
    %362 = vector.multi_reduction <add>, %361, %cst_119 [1] : vector<8x32xf32> to vector<8xf32>
    %363 = vector.shape_cast %362 : vector<8xf32> to vector<8x1xf32>
    %cst_120 = arith.constant 3.200000e+01 : f32
    %364 = vector.broadcast %cst_120 : f32 to vector<8x1xf32>
    %365 = arith.divf %363, %364 : vector<8x1xf32>
    %366 = vector.broadcast %365 : vector<8x1xf32> to vector<8x32xf32>
    %367 = arith.subf %361, %366 : vector<8x32xf32>
    %368 = arith.mulf %367, %367 : vector<8x32xf32>
    %cst_121 = arith.constant dense<0.000000e+00> : vector<8xf32>
    %369 = vector.multi_reduction <add>, %368, %cst_121 [1] : vector<8x32xf32> to vector<8xf32>
    %370 = vector.shape_cast %369 : vector<8xf32> to vector<8x1xf32>
    %cst_122 = arith.constant 3.200000e+01 : f32
    %371 = vector.broadcast %cst_122 : f32 to vector<8x1xf32>
    %372 = arith.divf %370, %371 : vector<8x1xf32>
    %373 = vector.broadcast %365 : vector<8x1xf32> to vector<8x32xf32>
    %374 = arith.subf %361, %373 : vector<8x32xf32>
    %cst_123 = arith.constant 9.99999974E-6 : f32
    %375 = vector.broadcast %cst_123 : f32 to vector<8x1xf32>
    %376 = arith.addf %372, %375 : vector<8x1xf32>
    %377 = math.rsqrt %376 : vector<8x1xf32>
    %378 = vector.broadcast %377 : vector<8x1xf32> to vector<8x32xf32>
    %379 = arith.mulf %374, %378 : vector<8x32xf32>
    %380 = vector.broadcast %4 : vector<1x32xf32> to vector<8x32xf32>
    %381 = arith.mulf %379, %380 : vector<8x32xf32>
    %382 = vector.broadcast %5 : vector<1x32xf32> to vector<8x32xf32>
    %383 = arith.addf %381, %382 : vector<8x32xf32>
    %cst_124 = arith.constant dense<0.000000e+00> : vector<8x128xf32>
    %384 = tpu.matmul %383, %10, %cst_124 {dimension_numbers = #tpu.dot_dimension_numbers<[1], [0], [0], [1], [0, 0, 1, 1], [], []>} : vector<8x32xf32>, vector<32x128xf32>, vector<8x128xf32> -> vector<8x128xf32>
    %385 = vector.broadcast %6 : vector<1x128xf32> to vector<8x128xf32>
    %386 = arith.addf %384, %385 : vector<8x128xf32>
    %cst_125 = arith.constant dense<0.000000e+00> : vector<8x128xf32>
    %387 = tpu.matmul %383, %11, %cst_125 {dimension_numbers = #tpu.dot_dimension_numbers<[1], [0], [0], [1], [0, 0, 1, 1], [], []>} : vector<8x32xf32>, vector<32x128xf32>, vector<8x128xf32> -> vector<8x128xf32>
    %388 = arith.mulf %387, %315 : vector<8x128xf32>
    %c0_126 = arith.constant 0 : index
    %c0_127 = arith.constant 0 : index
    %389 = vector.load %arg5[%c0_126, %c0_127] : memref<128x512xf32, #tpu.memory_space<vmem>>, vector<128x128xf32>
    %cst_128 = arith.constant dense<0.000000e+00> : vector<8x128xf32>
    %390 = tpu.matmul %388, %389, %cst_128 {dimension_numbers = #tpu.dot_dimension_numbers<[1], [0], [0], [1], [0, 0, 1, 1], [], []>} : vector<8x128xf32>, vector<128x128xf32>, vector<8x128xf32> -> vector<8x128xf32>
    %cst_129 = arith.constant 1.000000e+00 : f32
    %391 = vector.broadcast %cst_129 : f32 to vector<8x128xf32>
    %392 = arith.mulf %390, %391 : vector<8x128xf32>
    %393 = arith.addf %386, %392 : vector<8x128xf32>
    %cst_130 = arith.constant 0.000000e+00 : f32
    %394 = vector.broadcast %cst_130 : f32 to vector<8x128xf32>
    %395 = arith.maximumf %393, %394 : vector<8x128xf32>
    %cst_131 = arith.constant dense<0.000000e+00> : vector<8x32xf32>
    %396 = tpu.matmul %395, %12, %cst_131 {dimension_numbers = #tpu.dot_dimension_numbers<[1], [0], [0], [1], [0, 0, 1, 1], [], []>} : vector<8x128xf32>, vector<128x32xf32>, vector<8x32xf32> -> vector<8x32xf32>
    %397 = vector.broadcast %7 : vector<1x32xf32> to vector<8x32xf32>
    %398 = arith.addf %396, %397 : vector<8x32xf32>
    %c0_132 = arith.constant 0 : index
    %c128_133 = arith.constant 128 : index
    %399 = vector.load %arg5[%c0_132, %c128_133] : memref<128x512xf32, #tpu.memory_space<vmem>>, vector<128x128xf32>
    %cst_134 = arith.constant dense<0.000000e+00> : vector<8x128xf32>
    %400 = tpu.matmul %395, %399, %cst_134 {dimension_numbers = #tpu.dot_dimension_numbers<[1], [0], [0], [1], [0, 0, 1, 1], [], []>} : vector<8x128xf32>, vector<128x128xf32>, vector<8x128xf32> -> vector<8x128xf32>
    %401 = arith.mulf %400, %315 : vector<8x128xf32>
    %cst_135 = arith.constant dense<0.000000e+00> : vector<8x32xf32>
    %402 = tpu.matmul %401, %13, %cst_135 {dimension_numbers = #tpu.dot_dimension_numbers<[1], [0], [0], [1], [0, 0, 1, 1], [], []>} : vector<8x128xf32>, vector<128x32xf32>, vector<8x32xf32> -> vector<8x32xf32>
    %cst_136 = arith.constant 1.000000e+00 : f32
    %403 = vector.broadcast %cst_136 : f32 to vector<8x32xf32>
    %404 = arith.mulf %402, %403 : vector<8x32xf32>
    %405 = arith.addf %398, %404 : vector<8x32xf32>
    %406 = arith.addf %405, %361 : vector<8x32xf32>
    %cst_137 = arith.constant dense<0.000000e+00> : vector<8xf32>
    %407 = vector.multi_reduction <add>, %406, %cst_137 [1] : vector<8x32xf32> to vector<8xf32>
    %408 = vector.shape_cast %407 : vector<8xf32> to vector<8x1xf32>
    %cst_138 = arith.constant 3.200000e+01 : f32
    %409 = vector.broadcast %cst_138 : f32 to vector<8x1xf32>
    %410 = arith.divf %408, %409 : vector<8x1xf32>
    %411 = vector.broadcast %410 : vector<8x1xf32> to vector<8x32xf32>
    %412 = arith.subf %406, %411 : vector<8x32xf32>
    %413 = arith.mulf %412, %412 : vector<8x32xf32>
    %cst_139 = arith.constant dense<0.000000e+00> : vector<8xf32>
    %414 = vector.multi_reduction <add>, %413, %cst_139 [1] : vector<8x32xf32> to vector<8xf32>
    %415 = vector.shape_cast %414 : vector<8xf32> to vector<8x1xf32>
    %cst_140 = arith.constant 3.200000e+01 : f32
    %416 = vector.broadcast %cst_140 : f32 to vector<8x1xf32>
    %417 = arith.divf %415, %416 : vector<8x1xf32>
    %418 = vector.broadcast %410 : vector<8x1xf32> to vector<8x32xf32>
    %419 = arith.subf %406, %418 : vector<8x32xf32>
    %cst_141 = arith.constant 9.99999974E-6 : f32
    %420 = vector.broadcast %cst_141 : f32 to vector<8x1xf32>
    %421 = arith.addf %417, %420 : vector<8x1xf32>
    %422 = math.rsqrt %421 : vector<8x1xf32>
    %423 = vector.broadcast %422 : vector<8x1xf32> to vector<8x32xf32>
    %424 = arith.mulf %419, %423 : vector<8x32xf32>
    %425 = vector.broadcast %2 : vector<1x32xf32> to vector<8x32xf32>
    %426 = arith.mulf %424, %425 : vector<8x32xf32>
    %427 = vector.broadcast %3 : vector<1x32xf32> to vector<8x32xf32>
    %428 = arith.addf %426, %427 : vector<8x32xf32>
    %cst_142 = arith.constant dense<0.000000e+00> : vector<8x32xf32>
    %429 = tpu.matmul %428, %8, %cst_142 {dimension_numbers = #tpu.dot_dimension_numbers<[1], [0], [0], [1], [0, 0, 1, 1], [], []>} : vector<8x32xf32>, vector<32x32xf32>, vector<8x32xf32> -> vector<8x32xf32>
    %cst_143 = arith.constant dense<0.000000e+00> : vector<8x64xf32>
    %430 = tpu.matmul %429, %40, %cst_143 {dimension_numbers = #tpu.dot_dimension_numbers<[1], [1], [0], [0], [0, 0, 1, 0], [], []>} : vector<8x32xf32>, vector<64x32xf32>, vector<8x64xf32> -> vector<8x64xf32>
    %cst_144 = arith.constant 0.176776692 : f32
    %431 = vector.broadcast %cst_144 : f32 to vector<8x64xf32>
    %432 = arith.mulf %430, %431 : vector<8x64xf32>
    %cst_145 = arith.constant dense<0xFF800000> : vector<64xf32>
    %433 = vector.multi_reduction <maximumf>, %432, %cst_145 [0] : vector<8x64xf32> to vector<64xf32>
    %434 = vector.shape_cast %433 : vector<64xf32> to vector<1x64xf32>
    %435 = vector.broadcast %434 : vector<1x64xf32> to vector<8x64xf32>
    %436 = arith.subf %432, %435 : vector<8x64xf32>
    %437 = math.exp %436 : vector<8x64xf32>
    %cst_146 = arith.constant dense<0.000000e+00> : vector<64xf32>
    %438 = vector.multi_reduction <add>, %437, %cst_146 [0] : vector<8x64xf32> to vector<64xf32>
    %439 = vector.shape_cast %438 : vector<64xf32> to vector<1x64xf32>
    %440 = tpu.reciprocal %439 {approx = true} : vector<1x64xf32> -> vector<1x64xf32>
    %441 = vector.broadcast %440 : vector<1x64xf32> to vector<8x64xf32>
    %442 = arith.mulf %437, %441 : vector<8x64xf32>
    %cst_147 = arith.constant 9.99999993E-9 : f32
    %443 = vector.broadcast %cst_147 : f32 to vector<8x64xf32>
    %444 = arith.addf %442, %443 : vector<8x64xf32>
    %cst_148 = arith.constant dense<0.000000e+00> : vector<8xf32>
    %445 = vector.multi_reduction <add>, %444, %cst_148 [1] : vector<8x64xf32> to vector<8xf32>
    %446 = vector.shape_cast %445 : vector<8xf32> to vector<8x1xf32>
    %447 = tpu.reciprocal %446 {approx = true} : vector<8x1xf32> -> vector<8x1xf32>
    %448 = vector.broadcast %447 : vector<8x1xf32> to vector<8x64xf32>
    %449 = arith.mulf %444, %448 : vector<8x64xf32>
    %cst_149 = arith.constant dense<0.000000e+00> : vector<8x32xf32>
    %450 = tpu.matmul %449, %41, %cst_149 {dimension_numbers = #tpu.dot_dimension_numbers<[1], [0], [0], [1], [0, 0, 1, 1], [], []>} : vector<8x64xf32>, vector<64x32xf32>, vector<8x32xf32> -> vector<8x32xf32>
    %cst_150 = arith.constant dense<0.000000e+00> : vector<8x32xf32>
    %451 = tpu.matmul %450, %9, %cst_150 {dimension_numbers = #tpu.dot_dimension_numbers<[1], [0], [0], [1], [0, 0, 1, 1], [], []>} : vector<8x32xf32>, vector<32x32xf32>, vector<8x32xf32> -> vector<8x32xf32>
    %452 = arith.addf %451, %406 : vector<8x32xf32>
    %cst_151 = arith.constant dense<0.000000e+00> : vector<8xf32>
    %453 = vector.multi_reduction <add>, %452, %cst_151 [1] : vector<8x32xf32> to vector<8xf32>
    %454 = vector.shape_cast %453 : vector<8xf32> to vector<8x1xf32>
    %cst_152 = arith.constant 3.200000e+01 : f32
    %455 = vector.broadcast %cst_152 : f32 to vector<8x1xf32>
    %456 = arith.divf %454, %455 : vector<8x1xf32>
    %457 = vector.broadcast %456 : vector<8x1xf32> to vector<8x32xf32>
    %458 = arith.subf %452, %457 : vector<8x32xf32>
    %459 = arith.mulf %458, %458 : vector<8x32xf32>
    %cst_153 = arith.constant dense<0.000000e+00> : vector<8xf32>
    %460 = vector.multi_reduction <add>, %459, %cst_153 [1] : vector<8x32xf32> to vector<8xf32>
    %461 = vector.shape_cast %460 : vector<8xf32> to vector<8x1xf32>
    %cst_154 = arith.constant 3.200000e+01 : f32
    %462 = vector.broadcast %cst_154 : f32 to vector<8x1xf32>
    %463 = arith.divf %461, %462 : vector<8x1xf32>
    %464 = vector.broadcast %456 : vector<8x1xf32> to vector<8x32xf32>
    %465 = arith.subf %452, %464 : vector<8x32xf32>
    %cst_155 = arith.constant 9.99999974E-6 : f32
    %466 = vector.broadcast %cst_155 : f32 to vector<8x1xf32>
    %467 = arith.addf %463, %466 : vector<8x1xf32>
    %468 = math.rsqrt %467 : vector<8x1xf32>
    %469 = vector.broadcast %468 : vector<8x1xf32> to vector<8x32xf32>
    %470 = arith.mulf %465, %469 : vector<8x32xf32>
    %471 = vector.broadcast %4 : vector<1x32xf32> to vector<8x32xf32>
    %472 = arith.mulf %470, %471 : vector<8x32xf32>
    %473 = vector.broadcast %5 : vector<1x32xf32> to vector<8x32xf32>
    %474 = arith.addf %472, %473 : vector<8x32xf32>
    %cst_156 = arith.constant dense<0.000000e+00> : vector<8x128xf32>
    %475 = tpu.matmul %474, %10, %cst_156 {dimension_numbers = #tpu.dot_dimension_numbers<[1], [0], [0], [1], [0, 0, 1, 1], [], []>} : vector<8x32xf32>, vector<32x128xf32>, vector<8x128xf32> -> vector<8x128xf32>
    %476 = vector.broadcast %6 : vector<1x128xf32> to vector<8x128xf32>
    %477 = arith.addf %475, %476 : vector<8x128xf32>
    %cst_157 = arith.constant dense<0.000000e+00> : vector<8x128xf32>
    %478 = tpu.matmul %474, %11, %cst_157 {dimension_numbers = #tpu.dot_dimension_numbers<[1], [0], [0], [1], [0, 0, 1, 1], [], []>} : vector<8x32xf32>, vector<32x128xf32>, vector<8x128xf32> -> vector<8x128xf32>
    %479 = arith.mulf %478, %315 : vector<8x128xf32>
    %c0_158 = arith.constant 0 : index
    %c0_159 = arith.constant 0 : index
    %480 = vector.load %arg5[%c0_158, %c0_159] : memref<128x512xf32, #tpu.memory_space<vmem>>, vector<128x128xf32>
    %cst_160 = arith.constant dense<0.000000e+00> : vector<8x128xf32>
    %481 = tpu.matmul %479, %480, %cst_160 {dimension_numbers = #tpu.dot_dimension_numbers<[1], [0], [0], [1], [0, 0, 1, 1], [], []>} : vector<8x128xf32>, vector<128x128xf32>, vector<8x128xf32> -> vector<8x128xf32>
    %cst_161 = arith.constant 1.000000e+00 : f32
    %482 = vector.broadcast %cst_161 : f32 to vector<8x128xf32>
    %483 = arith.mulf %481, %482 : vector<8x128xf32>
    %484 = arith.addf %477, %483 : vector<8x128xf32>
    %cst_162 = arith.constant 0.000000e+00 : f32
    %485 = vector.broadcast %cst_162 : f32 to vector<8x128xf32>
    %486 = arith.maximumf %484, %485 : vector<8x128xf32>
    %cst_163 = arith.constant dense<0.000000e+00> : vector<8x32xf32>
    %487 = tpu.matmul %486, %12, %cst_163 {dimension_numbers = #tpu.dot_dimension_numbers<[1], [0], [0], [1], [0, 0, 1, 1], [], []>} : vector<8x128xf32>, vector<128x32xf32>, vector<8x32xf32> -> vector<8x32xf32>
    %488 = vector.broadcast %7 : vector<1x32xf32> to vector<8x32xf32>
    %489 = arith.addf %487, %488 : vector<8x32xf32>
    %c0_164 = arith.constant 0 : index
    %c128_165 = arith.constant 128 : index
    %490 = vector.load %arg5[%c0_164, %c128_165] : memref<128x512xf32, #tpu.memory_space<vmem>>, vector<128x128xf32>
    %cst_166 = arith.constant dense<0.000000e+00> : vector<8x128xf32>
    %491 = tpu.matmul %486, %490, %cst_166 {dimension_numbers = #tpu.dot_dimension_numbers<[1], [0], [0], [1], [0, 0, 1, 1], [], []>} : vector<8x128xf32>, vector<128x128xf32>, vector<8x128xf32> -> vector<8x128xf32>
    %492 = arith.mulf %491, %315 : vector<8x128xf32>
    %cst_167 = arith.constant dense<0.000000e+00> : vector<8x32xf32>
    %493 = tpu.matmul %492, %13, %cst_167 {dimension_numbers = #tpu.dot_dimension_numbers<[1], [0], [0], [1], [0, 0, 1, 1], [], []>} : vector<8x128xf32>, vector<128x32xf32>, vector<8x32xf32> -> vector<8x32xf32>
    %cst_168 = arith.constant 1.000000e+00 : f32
    %494 = vector.broadcast %cst_168 : f32 to vector<8x32xf32>
    %495 = arith.mulf %493, %494 : vector<8x32xf32>
    %496 = arith.addf %489, %495 : vector<8x32xf32>
    %497 = arith.addf %496, %452 : vector<8x32xf32>
    %cst_169 = arith.constant dense<0.000000e+00> : vector<8xf32>
    %498 = vector.multi_reduction <add>, %497, %cst_169 [1] : vector<8x32xf32> to vector<8xf32>
    %499 = vector.shape_cast %498 : vector<8xf32> to vector<8x1xf32>
    %cst_170 = arith.constant 3.200000e+01 : f32
    %500 = vector.broadcast %cst_170 : f32 to vector<8x1xf32>
    %501 = arith.divf %499, %500 : vector<8x1xf32>
    %502 = vector.broadcast %501 : vector<8x1xf32> to vector<8x32xf32>
    %503 = arith.subf %497, %502 : vector<8x32xf32>
    %504 = arith.mulf %503, %503 : vector<8x32xf32>
    %cst_171 = arith.constant dense<0.000000e+00> : vector<8xf32>
    %505 = vector.multi_reduction <add>, %504, %cst_171 [1] : vector<8x32xf32> to vector<8xf32>
    %506 = vector.shape_cast %505 : vector<8xf32> to vector<8x1xf32>
    %cst_172 = arith.constant 3.200000e+01 : f32
    %507 = vector.broadcast %cst_172 : f32 to vector<8x1xf32>
    %508 = arith.divf %506, %507 : vector<8x1xf32>
    %509 = vector.broadcast %501 : vector<8x1xf32> to vector<8x32xf32>
    %510 = arith.subf %497, %509 : vector<8x32xf32>
    %cst_173 = arith.constant 9.99999974E-6 : f32
    %511 = vector.broadcast %cst_173 : f32 to vector<8x1xf32>
    %512 = arith.addf %508, %511 : vector<8x1xf32>
    %513 = math.rsqrt %512 : vector<8x1xf32>
    %514 = vector.broadcast %513 : vector<8x1xf32> to vector<8x32xf32>
    %515 = arith.mulf %510, %514 : vector<8x32xf32>
    %516 = vector.broadcast %2 : vector<1x32xf32> to vector<8x32xf32>
    %517 = arith.mulf %515, %516 : vector<8x32xf32>
    %518 = vector.broadcast %3 : vector<1x32xf32> to vector<8x32xf32>
    %519 = arith.addf %517, %518 : vector<8x32xf32>
    %cst_174 = arith.constant dense<0.000000e+00> : vector<8x32xf32>
    %520 = tpu.matmul %519, %8, %cst_174 {dimension_numbers = #tpu.dot_dimension_numbers<[1], [0], [0], [1], [0, 0, 1, 1], [], []>} : vector<8x32xf32>, vector<32x32xf32>, vector<8x32xf32> -> vector<8x32xf32>
    %cst_175 = arith.constant dense<0.000000e+00> : vector<8x64xf32>
    %521 = tpu.matmul %520, %40, %cst_175 {dimension_numbers = #tpu.dot_dimension_numbers<[1], [1], [0], [0], [0, 0, 1, 0], [], []>} : vector<8x32xf32>, vector<64x32xf32>, vector<8x64xf32> -> vector<8x64xf32>
    %cst_176 = arith.constant 0.176776692 : f32
    %522 = vector.broadcast %cst_176 : f32 to vector<8x64xf32>
    %523 = arith.mulf %521, %522 : vector<8x64xf32>
    %cst_177 = arith.constant dense<0xFF800000> : vector<64xf32>
    %524 = vector.multi_reduction <maximumf>, %523, %cst_177 [0] : vector<8x64xf32> to vector<64xf32>
    %525 = vector.shape_cast %524 : vector<64xf32> to vector<1x64xf32>
    %526 = vector.broadcast %525 : vector<1x64xf32> to vector<8x64xf32>
    %527 = arith.subf %523, %526 : vector<8x64xf32>
    %528 = math.exp %527 : vector<8x64xf32>
    %cst_178 = arith.constant dense<0.000000e+00> : vector<64xf32>
    %529 = vector.multi_reduction <add>, %528, %cst_178 [0] : vector<8x64xf32> to vector<64xf32>
    %530 = vector.shape_cast %529 : vector<64xf32> to vector<1x64xf32>
    %531 = tpu.reciprocal %530 {approx = true} : vector<1x64xf32> -> vector<1x64xf32>
    %532 = vector.broadcast %531 : vector<1x64xf32> to vector<8x64xf32>
    %533 = arith.mulf %528, %532 : vector<8x64xf32>
    %cst_179 = arith.constant 9.99999993E-9 : f32
    %534 = vector.broadcast %cst_179 : f32 to vector<8x64xf32>
    %535 = arith.addf %533, %534 : vector<8x64xf32>
    %cst_180 = arith.constant dense<0.000000e+00> : vector<8xf32>
    %536 = vector.multi_reduction <add>, %535, %cst_180 [1] : vector<8x64xf32> to vector<8xf32>
    %537 = vector.shape_cast %536 : vector<8xf32> to vector<8x1xf32>
    %538 = tpu.reciprocal %537 {approx = true} : vector<8x1xf32> -> vector<8x1xf32>
    %539 = vector.broadcast %538 : vector<8x1xf32> to vector<8x64xf32>
    %540 = arith.mulf %535, %539 : vector<8x64xf32>
    %cst_181 = arith.constant dense<0.000000e+00> : vector<8x32xf32>
    %541 = tpu.matmul %540, %41, %cst_181 {dimension_numbers = #tpu.dot_dimension_numbers<[1], [0], [0], [1], [0, 0, 1, 1], [], []>} : vector<8x64xf32>, vector<64x32xf32>, vector<8x32xf32> -> vector<8x32xf32>
    %cst_182 = arith.constant dense<0.000000e+00> : vector<8x32xf32>
    %542 = tpu.matmul %541, %9, %cst_182 {dimension_numbers = #tpu.dot_dimension_numbers<[1], [0], [0], [1], [0, 0, 1, 1], [], []>} : vector<8x32xf32>, vector<32x32xf32>, vector<8x32xf32> -> vector<8x32xf32>
    %543 = arith.addf %542, %497 : vector<8x32xf32>
    %cst_183 = arith.constant dense<0.000000e+00> : vector<8xf32>
    %544 = vector.multi_reduction <add>, %543, %cst_183 [1] : vector<8x32xf32> to vector<8xf32>
    %545 = vector.shape_cast %544 : vector<8xf32> to vector<8x1xf32>
    %cst_184 = arith.constant 3.200000e+01 : f32
    %546 = vector.broadcast %cst_184 : f32 to vector<8x1xf32>
    %547 = arith.divf %545, %546 : vector<8x1xf32>
    %548 = vector.broadcast %547 : vector<8x1xf32> to vector<8x32xf32>
    %549 = arith.subf %543, %548 : vector<8x32xf32>
    %550 = arith.mulf %549, %549 : vector<8x32xf32>
    %cst_185 = arith.constant dense<0.000000e+00> : vector<8xf32>
    %551 = vector.multi_reduction <add>, %550, %cst_185 [1] : vector<8x32xf32> to vector<8xf32>
    %552 = vector.shape_cast %551 : vector<8xf32> to vector<8x1xf32>
    %cst_186 = arith.constant 3.200000e+01 : f32
    %553 = vector.broadcast %cst_186 : f32 to vector<8x1xf32>
    %554 = arith.divf %552, %553 : vector<8x1xf32>
    %555 = vector.broadcast %547 : vector<8x1xf32> to vector<8x32xf32>
    %556 = arith.subf %543, %555 : vector<8x32xf32>
    %cst_187 = arith.constant 9.99999974E-6 : f32
    %557 = vector.broadcast %cst_187 : f32 to vector<8x1xf32>
    %558 = arith.addf %554, %557 : vector<8x1xf32>
    %559 = math.rsqrt %558 : vector<8x1xf32>
    %560 = vector.broadcast %559 : vector<8x1xf32> to vector<8x32xf32>
    %561 = arith.mulf %556, %560 : vector<8x32xf32>
    %562 = vector.broadcast %4 : vector<1x32xf32> to vector<8x32xf32>
    %563 = arith.mulf %561, %562 : vector<8x32xf32>
    %564 = vector.broadcast %5 : vector<1x32xf32> to vector<8x32xf32>
    %565 = arith.addf %563, %564 : vector<8x32xf32>
    %cst_188 = arith.constant dense<0.000000e+00> : vector<8x128xf32>
    %566 = tpu.matmul %565, %10, %cst_188 {dimension_numbers = #tpu.dot_dimension_numbers<[1], [0], [0], [1], [0, 0, 1, 1], [], []>} : vector<8x32xf32>, vector<32x128xf32>, vector<8x128xf32> -> vector<8x128xf32>
    %567 = vector.broadcast %6 : vector<1x128xf32> to vector<8x128xf32>
    %568 = arith.addf %566, %567 : vector<8x128xf32>
    %cst_189 = arith.constant dense<0.000000e+00> : vector<8x128xf32>
    %569 = tpu.matmul %565, %11, %cst_189 {dimension_numbers = #tpu.dot_dimension_numbers<[1], [0], [0], [1], [0, 0, 1, 1], [], []>} : vector<8x32xf32>, vector<32x128xf32>, vector<8x128xf32> -> vector<8x128xf32>
    %570 = arith.mulf %569, %315 : vector<8x128xf32>
    %c0_190 = arith.constant 0 : index
    %c0_191 = arith.constant 0 : index
    %571 = vector.load %arg5[%c0_190, %c0_191] : memref<128x512xf32, #tpu.memory_space<vmem>>, vector<128x128xf32>
    %cst_192 = arith.constant dense<0.000000e+00> : vector<8x128xf32>
    %572 = tpu.matmul %570, %571, %cst_192 {dimension_numbers = #tpu.dot_dimension_numbers<[1], [0], [0], [1], [0, 0, 1, 1], [], []>} : vector<8x128xf32>, vector<128x128xf32>, vector<8x128xf32> -> vector<8x128xf32>
    %cst_193 = arith.constant 1.000000e+00 : f32
    %573 = vector.broadcast %cst_193 : f32 to vector<8x128xf32>
    %574 = arith.mulf %572, %573 : vector<8x128xf32>
    %575 = arith.addf %568, %574 : vector<8x128xf32>
    %cst_194 = arith.constant 0.000000e+00 : f32
    %576 = vector.broadcast %cst_194 : f32 to vector<8x128xf32>
    %577 = arith.maximumf %575, %576 : vector<8x128xf32>
    %cst_195 = arith.constant dense<0.000000e+00> : vector<8x32xf32>
    %578 = tpu.matmul %577, %12, %cst_195 {dimension_numbers = #tpu.dot_dimension_numbers<[1], [0], [0], [1], [0, 0, 1, 1], [], []>} : vector<8x128xf32>, vector<128x32xf32>, vector<8x32xf32> -> vector<8x32xf32>
    %579 = vector.broadcast %7 : vector<1x32xf32> to vector<8x32xf32>
    %580 = arith.addf %578, %579 : vector<8x32xf32>
    %c0_196 = arith.constant 0 : index
    %c128_197 = arith.constant 128 : index
    %581 = vector.load %arg5[%c0_196, %c128_197] : memref<128x512xf32, #tpu.memory_space<vmem>>, vector<128x128xf32>
    %cst_198 = arith.constant dense<0.000000e+00> : vector<8x128xf32>
    %582 = tpu.matmul %577, %581, %cst_198 {dimension_numbers = #tpu.dot_dimension_numbers<[1], [0], [0], [1], [0, 0, 1, 1], [], []>} : vector<8x128xf32>, vector<128x128xf32>, vector<8x128xf32> -> vector<8x128xf32>
    %583 = arith.mulf %582, %315 : vector<8x128xf32>
    %cst_199 = arith.constant dense<0.000000e+00> : vector<8x32xf32>
    %584 = tpu.matmul %583, %13, %cst_199 {dimension_numbers = #tpu.dot_dimension_numbers<[1], [0], [0], [1], [0, 0, 1, 1], [], []>} : vector<8x128xf32>, vector<128x32xf32>, vector<8x32xf32> -> vector<8x32xf32>
    %cst_200 = arith.constant 1.000000e+00 : f32
    %585 = vector.broadcast %cst_200 : f32 to vector<8x32xf32>
    %586 = arith.mulf %584, %585 : vector<8x32xf32>
    %587 = arith.addf %580, %586 : vector<8x32xf32>
    %588 = arith.addf %587, %543 : vector<8x32xf32>
    %c0_201 = arith.constant 0 : index
    %c640 = arith.constant 640 : index
    %589 = vector.load %arg4[%c0_201, %c640] : memref<32x896xf32, #tpu.memory_space<vmem>>, vector<32x32xf32>
    %cst_202 = arith.constant dense<0.000000e+00> : vector<8x32xf32>
    %590 = tpu.matmul %588, %589, %cst_202 {dimension_numbers = #tpu.dot_dimension_numbers<[1], [0], [0], [1], [0, 0, 1, 1], [], []>} : vector<8x32xf32>, vector<32x32xf32>, vector<8x32xf32> -> vector<8x32xf32>
    %cst_203 = arith.constant dense<0.000000e+00> : vector<8x32xf32>
    %591 = tpu.matmul %274, %589, %cst_203 {dimension_numbers = #tpu.dot_dimension_numbers<[1], [0], [0], [1], [0, 0, 1, 1], [], []>} : vector<8x32xf32>, vector<32x32xf32>, vector<8x32xf32> -> vector<8x32xf32>
    %c0_204 = arith.constant 0 : index
    %c0_205 = arith.constant 0 : index
    %c0_206 = arith.constant 0 : index
    %592 = vector.load %arg6[%c0_204, %c0_205, %c0_206] : memref<1x8x256xf32, #tpu.memory_space<vmem>>, vector<1x8x32xf32>
    %593 = vector.shape_cast %592 : vector<1x8x32xf32> to vector<8x32xf32>
    %594 = vector.shape_cast %588 : vector<8x32xf32> to vector<1x8x32xf32>
    tpu.vector_store %arg6[%c0_204, %c0_205, %c0_206], %594 {strides = array<i32>} : memref<1x8x256xf32, #tpu.memory_space<vmem>>, vector<1x8x32xf32>,
    %c0_207 = arith.constant 0 : index
    %c0_208 = arith.constant 0 : index
    %c32 = arith.constant 32 : index
    %595 = vector.load %arg6[%c0_207, %c0_208, %c32] : memref<1x8x256xf32, #tpu.memory_space<vmem>>, vector<1x8x32xf32>
    %596 = vector.shape_cast %595 : vector<1x8x32xf32> to vector<8x32xf32>
    %597 = vector.shape_cast %274 : vector<8x32xf32> to vector<1x8x32xf32>
    tpu.vector_store %arg6[%c0_207, %c0_208, %c32], %597 {strides = array<i32>} : memref<1x8x256xf32, #tpu.memory_space<vmem>>, vector<1x8x32xf32>,
    %c0_209 = arith.constant 0 : index
    %c0_210 = arith.constant 0 : index
    %c64 = arith.constant 64 : index
    %598 = vector.load %arg6[%c0_209, %c0_210, %c64] : memref<1x8x256xf32, #tpu.memory_space<vmem>>, vector<1x8x32xf32>
    %599 = vector.shape_cast %598 : vector<1x8x32xf32> to vector<8x32xf32>
    %600 = vector.shape_cast %590 : vector<8x32xf32> to vector<1x8x32xf32>
    tpu.vector_store %arg6[%c0_209, %c0_210, %c64], %600 {strides = array<i32>} : memref<1x8x256xf32, #tpu.memory_space<vmem>>, vector<1x8x32xf32>,
    %c0_211 = arith.constant 0 : index
    %c0_212 = arith.constant 0 : index
    %c96 = arith.constant 96 : index
    %601 = vector.load %arg6[%c0_211, %c0_212, %c96] : memref<1x8x256xf32, #tpu.memory_space<vmem>>, vector<1x8x32xf32>
    %602 = vector.shape_cast %601 : vector<1x8x32xf32> to vector<8x32xf32>
    %603 = vector.shape_cast %591 : vector<8x32xf32> to vector<1x8x32xf32>
    tpu.vector_store %arg6[%c0_211, %c0_212, %c96], %603 {strides = array<i32>} : memref<1x8x256xf32, #tpu.memory_space<vmem>>, vector<1x8x32xf32>,
    %c0_213 = arith.constant 0 : index
    %c0_214 = arith.constant 0 : index
    %c128_215 = arith.constant 128 : index
    %604 = vector.load %arg6[%c0_213, %c0_214, %c128_215] : memref<1x8x256xf32, #tpu.memory_space<vmem>>, vector<1x8x64xf32>
    %605 = vector.shape_cast %604 : vector<1x8x64xf32> to vector<8x64xf32>
    %606 = vector.shape_cast %533 : vector<8x64xf32> to vector<1x8x64xf32>
    tpu.vector_store %arg6[%c0_213, %c0_214, %c128_215], %606 {strides = array<i32>} : memref<1x8x256xf32, #tpu.memory_space<vmem>>, vector<1x8x64xf32>,
    %c0_216 = arith.constant 0 : index
    %c0_217 = arith.constant 0 : index
    %c192 = arith.constant 192 : index
    %607 = vector.load %arg6[%c0_216, %c0_217, %c192] : memref<1x8x256xf32, #tpu.memory_space<vmem>>, vector<1x8x64xf32>
    %608 = vector.shape_cast %607 : vector<1x8x64xf32> to vector<8x64xf32>
    %609 = vector.shape_cast %233 : vector<8x64xf32> to vector<1x8x64xf32>
    tpu.vector_store %arg6[%c0_216, %c0_217, %c192], %609 {strides = array<i32>} : memref<1x8x256xf32, #tpu.memory_space<vmem>>, vector<1x8x64xf32>,
    %c0_218 = arith.constant 0 : index
    %c0_219 = arith.constant 0 : index
    %c0_220 = arith.constant 0 : index
    %610 = vector.load %arg7[%c0_218, %c0_219, %c0_220] : memref<1x8x1xi32, #tpu.memory_space<vmem>>, vector<1x8x1xi32>
    %611 = vector.shape_cast %610 : vector<1x8x1xi32> to vector<8x1xi32>
    %612 = vector.shape_cast %292 : vector<8x1xi32> to vector<1x8x1xi32>
    tpu.vector_store %arg7[%c0_218, %c0_219, %c0_220], %612 {strides = array<i32>} : memref<1x8x1xi32, #tpu.memory_space<vmem>>, vector<1x8x1xi32>,
    %c0_221 = arith.constant 0 : index
    %c0_222 = arith.constant 0 : index
    %c0_223 = arith.constant 0 : index
    %613 = vector.load %arg8[%c0_221, %c0_222, %c0_223] : memref<1x8x1xf32, #tpu.memory_space<vmem>>, vector<1x8x1xf32>
    %614 = vector.shape_cast %613 : vector<1x8x1xf32> to vector<8x1xf32>
    %615 = vector.shape_cast %303 : vector<8x1xf32> to vector<1x8x1xf32>
    tpu.vector_store %arg8[%c0_221, %c0_222, %c0_223], %615 {strides = array<i32>} : memref<1x8x1xf32, #tpu.memory_space<vmem>>, vector<1x8x1xf32>,
    return
  }
  func.func @transform_0(%arg0: i32) -> (i32, i32, i32) {
    %c0_i32 = arith.constant 0 : i32
    %c0_i32_0 = arith.constant 0 : i32
    %c0_i32_1 = arith.constant 0 : i32
    return %arg0, %c0_i32, %c0_i32_0 : i32, i32, i32
  }
  func.func @transform_1(%arg0: i32) -> (i32, i32, i32) {
    %c0_i32 = arith.constant 0 : i32
    %c0_i32_0 = arith.constant 0 : i32
    %c0_i32_1 = arith.constant 0 : i32
    return %arg0, %c0_i32, %c0_i32_0 : i32, i32, i32
  }
  func.func @transform_2(%arg0: i32) -> (i32, i32) {
    %c0_i32 = arith.constant 0 : i32
    %c0_i32_0 = arith.constant 0 : i32
    %c0_i32_1 = arith.constant 0 : i32
    return %c0_i32, %c0_i32_0 : i32, i32
  }
  func.func @transform_3(%arg0: i32) -> (i32, i32) {
    %c0_i32 = arith.constant 0 : i32
    %c0_i32_0 = arith.constant 0 : i32
    %c0_i32_1 = arith.constant 0 : i32
    return %c0_i32, %c0_i32_0 : i32, i32
  }
  func.func @transform_4(%arg0: i32) -> (i32, i32) {
    %c0_i32 = arith.constant 0 : i32
    %c0_i32_0 = arith.constant 0 : i32
    %c0_i32_1 = arith.constant 0 : i32
    return %c0_i32, %c0_i32_0 : i32, i32
  }
  func.func @transform_5(%arg0: i32) -> (i32, i32, i32) {
    %c0_i32 = arith.constant 0 : i32
    %c0_i32_0 = arith.constant 0 : i32
    %c0_i32_1 = arith.constant 0 : i32
    return %arg0, %c0_i32, %c0_i32_0 : i32, i32, i32
  }
  func.func @transform_6(%arg0: i32) -> (i32, i32, i32) {
    %c0_i32 = arith.constant 0 : i32
    %c0_i32_0 = arith.constant 0 : i32
    %c0_i32_1 = arith.constant 0 : i32
    return %arg0, %c0_i32, %c0_i32_0 : i32, i32, i32
  }
  func.func @transform_7(%arg0: i32) -> (i32, i32, i32) {
    %c0_i32 = arith.constant 0 : i32
    %c0_i32_0 = arith.constant 0 : i32
    %c0_i32_1 = arith.constant 0 : i32
    return %arg0, %c0_i32, %c0_i32_0 : i32, i32, i32
  }
}

</mosaic_0001>

<llo_original>
// kernel: forward.1
$region0: #{forward.1}
  #allocation0 [shape = 'u32[]', space=smem, size = 0x4, offset = 0x4, fixed_abs, tag = 'smem constant byte address 0x4 - core index']
  #allocation1 [shape = 'u32[72,128]{1,0:T(1,128)}', space=vmem, size = 0x9000, scoped, tag = 'internal scratch']
  %s0 = inlined_call_operand.vmem [shape: f32[2,64,32], index: 0, kind: input, shape index: {}]
  %s1 = inlined_call_operand.vmem [shape: f32[2,8,32], index: 1, kind: input, shape index: {}]
  %s2 = inlined_call_operand.vmem [shape: f32[8,128], index: 2, kind: input, shape index: {}]
  %s3 = inlined_call_operand.hbm [shape: f32[32,896], index: 3, kind: input, shape index: {}]
  %s4 = inlined_call_operand.hbm [shape: f32[128,512], index: 4, kind: input, shape index: {}]
  %s5 = inlined_call_operand.vmem [shape: f32[2,8,256], index: 5, kind: output, shape index: {0}]
  %s6 = inlined_call_operand.vmem [shape: s32[2,8,1], index: 6, kind: output, shape index: {1}]
  %s7 = inlined_call_operand.vmem [shape: f32[2,8,1], index: 7, kind: output, shape index: {2}]
  %8 = xla_tuple %s5, %s6, %s7
  %s9 = sld [smem:[#allocation0]]
  $region77: #{forward.1} parent=0
    _
  %s11 = ssub.s32 1, %s9
  %s12 = scalar_select 0, %s11, %s9
  $region1: #{forward.1} parent=0
    #allocation2 [shape = 'u8[114688]{0}', space=vmem, size = 0x1c000, scoped, tag = 'input window, operand 3, single buffered']
    #allocation3 [shape = 's32[2]{0}', space=sflag, size = 0x8, scoped, tag = 'scoped memory for forward.1']
    #allocation4 [shape = 'u8[262144]{0}', space=vmem, size = 0x40000, scoped, tag = 'input window, operand 4, single buffered']
    #allocation5 [shape = 's32[1]{0}', space=sflag, size = 0x4, scoped, tag = 'scoped memory for forward.1']
    %13 = vsyncpa [#allocation3], 0
    %14 = vsyncpa [#allocation5], 0
    loop: start=0, step=1, limit=4
    $region2: #{forward.1} parent=1 // loop_pre_header
      _
    $region3: #{forward.1} parent=1 // loop_header
      %s16 = sphi 0, %s20
      %p17 = scmp.ge.s32.totalorder %s16, 4
      %s26 = sphi 0, %s28
      %s29 = sphi 0, %s26
      %s30 = sphi 0, %s29
      %s46 = sphi 0, %s30
      %s52 = sphi 0, %s54
      %s55 = sphi 0, %s52
      %s56 = sphi 0, %s55
      %s72 = sphi 0, %s56
      %s76 = sphi 0, %s76
      %s78 = sphi 0, %s76
      %s79 = sphi 0, %s78
      %s93 = sphi 0, %s79
      %s97 = sphi 0, %s97
      %s99 = sphi 0, %s97
      %s100 = sphi 0, %s99
      %s114 = sphi 0, %s100
      %s118 = sphi 0, %s118
      %s120 = sphi 0, %s118
      %s121 = sphi 0, %s120
      %s135 = sphi 0, %s121
      %s141 = sphi 0, %s143
      %s144 = sphi 0, %s141
      %s145 = sphi 0, %s144
      %s161 = sphi 0, %s145
      %s167 = sphi 0, %s169
      %s170 = sphi 0, %s167
      %s171 = sphi 0, %s170
      %s187 = sphi 0, %s171
      %s193 = sphi 0, %s195
      %s196 = sphi 0, %s193
      %s197 = sphi 0, %s196
      %s213 = sphi 0, %s197
    $region4: #{forward.1} parent=1 // loop_header_branch
      %19 = sbr.rel (%p17) target = $region8
    $region5: #{forward.1} parent=1 // loop_body
      %s21 = ssub.s32 %s16, 1
      %s22 = ssub.s32 %s16, 2
      %s23 = sadd.s32 %s16, 1
      %s24 = ssub.s32 %s16, %s23
      %p25 = scmp.eq.s32.totalorder %s24, 0
      %s27 = sadd.s32 %s26, 1
      %s28 = scalar_select %p25, %s26, %s27
      %p31 = pneg %p25
      %p32 = scmp.eq.s32.totalorder %s16, 1
      %p33 = por %p31, %p32
      %p34 = scmp.ne.s32.totalorder %s26, %s29
      %p35 = scmp.eq.s32.totalorder %s16, 0
      %p36 = por %p34, %p35
      %p37 = scmp.ne.s32.totalorder %s26, %s29
      %p38 = scmp.eq.s32.totalorder %s21, 1
      %p39 = por %p37, %p38
      %p40 = scmp.ne.s32.totalorder %s29, %s30
      %p41 = scmp.eq.s32.totalorder %s21, 0
      %p42 = por %p40, %p41
      %p43 = scmp.ne.s32.totalorder %s29, %s30
      %p44 = scmp.eq.s32.totalorder %s22, 1
      %p45 = por %p43, %p44
      %p47 = scmp.ne.s32.totalorder %s30, %s46
      %p48 = scmp.eq.s32.totalorder %s22, 0
      %p49 = por %p47, %p48
      %s50 = ssub.s32 %s16, %s23
      %p51 = scmp.eq.s32.totalorder %s50, 0
      %s53 = sadd.s32 %s52, 1
      %s54 = scalar_select %p51, %s52, %s53
      %p57 = pneg %p51
      %p58 = scmp.eq.s32.totalorder %s16, 1
      %p59 = por %p57, %p58
      %p60 = scmp.ne.s32.totalorder %s52, %s55
      %p61 = scmp.eq.s32.totalorder %s16, 0
      %p62 = por %p60, %p61
      %p63 = scmp.ne.s32.totalorder %s52, %s55
      %p64 = scmp.eq.s32.totalorder %s21, 1
      %p65 = por %p63, %p64
      %p66 = scmp.ne.s32.totalorder %s55, %s56
      %p67 = scmp.eq.s32.totalorder %s21, 0
      %p68 = por %p66, %p67
      %p69 = scmp.ne.s32.totalorder %s55, %s56
      %p70 = scmp.eq.s32.totalorder %s22, 1
      %p71 = por %p69, %p70
      %p73 = scmp.ne.s32.totalorder %s56, %s72
      %p74 = scmp.eq.s32.totalorder %s22, 0
      %p75 = por %p73, %p74
      %s77 = sadd.s32 %s76, 1
      %p80 = scmp.eq.s32.totalorder %s16, 1
      %p81 = scmp.ne.s32.totalorder %s76, %s78
      %p82 = scmp.eq.s32.totalorder %s16, 0
      %p83 = por %p81, %p82
      %p84 = scmp.ne.s32.totalorder %s76, %s78
      %p85 = scmp.eq.s32.totalorder %s21, 1
      %p86 = por %p84, %p85
      %p87 = scmp.ne.s32.totalorder %s78, %s79
      %p88 = scmp.eq.s32.totalorder %s21, 0
      %p89 = por %p87, %p88
      %p90 = scmp.ne.s32.totalorder %s78, %s79
      %p91 = scmp.eq.s32.totalorder %s22, 1
      %p92 = por %p90, %p91
      %p94 = scmp.ne.s32.totalorder %s79, %s93
      %p95 = scmp.eq.s32.totalorder %s22, 0
      %p96 = por %p94, %p95
      %s98 = sadd.s32 %s97, 1
      %p101 = scmp.eq.s32.totalorder %s16, 1
      %p102 = scmp.ne.s32.totalorder %s97, %s99
      %p103 = scmp.eq.s32.totalorder %s16, 0
      %p104 = por %p102, %p103
      %p105 = scmp.ne.s32.totalorder %s97, %s99
      %p106 = scmp.eq.s32.totalorder %s21, 1
      %p107 = por %p105, %p106
      %p108 = scmp.ne.s32.totalorder %s99, %s100
      %p109 = scmp.eq.s32.totalorder %s21, 0
      %p110 = por %p108, %p109
      %p111 = scmp.ne.s32.totalorder %s99, %s100
      %p112 = scmp.eq.s32.totalorder %s22, 1
      %p113 = por %p111, %p112
      %p115 = scmp.ne.s32.totalorder %s100, %s114
      %p116 = scmp.eq.s32.totalorder %s22, 0
      %p117 = por %p115, %p116
      %s119 = sadd.s32 %s118, 1
      %p122 = scmp.eq.s32.totalorder %s16, 1
      %p123 = scmp.ne.s32.totalorder %s118, %s120
      %p124 = scmp.eq.s32.totalorder %s16, 0
      %p125 = por %p123, %p124
      %p126 = scmp.ne.s32.totalorder %s118, %s120
      %p127 = scmp.eq.s32.totalorder %s21, 1
      %p128 = por %p126, %p127
      %p129 = scmp.ne.s32.totalorder %s120, %s121
      %p130 = scmp.eq.s32.totalorder %s21, 0
      %p131 = por %p129, %p130
      %p132 = scmp.ne.s32.totalorder %s120, %s121
      %p133 = scmp.eq.s32.totalorder %s22, 1
      %p134 = por %p132, %p133
      %p136 = scmp.ne.s32.totalorder %s121, %s135
      %p137 = scmp.eq.s32.totalorder %s22, 0
      %p138 = por %p136, %p137
      %s139 = ssub.s32 %s16, %s23
      %p140 = scmp.eq.s32.totalorder %s139, 0
      %s142 = sadd.s32 %s141, 1
      %s143 = scalar_select %p140, %s141, %s142
      %p146 = pneg %p140
      %p147 = scmp.eq.s32.totalorder %s16, 1
      %p148 = por %p146, %p147
      %p149 = scmp.ne.s32.totalorder %s141, %s144
      %p150 = scmp.eq.s32.totalorder %s16, 0
      %p151 = por %p149, %p150
      %p152 = scmp.ne.s32.totalorder %s141, %s144
      %p153 = scmp.eq.s32.totalorder %s21, 1
      %p154 = por %p152, %p153
      %p155 = scmp.ne.s32.totalorder %s144, %s145
      %p156 = scmp.eq.s32.totalorder %s21, 0
      %p157 = por %p155, %p156
      %p158 = scmp.ne.s32.totalorder %s144, %s145
      %p159 = scmp.eq.s32.totalorder %s22, 1
      %p160 = por %p158, %p159
      %p162 = scmp.ne.s32.totalorder %s145, %s161
      %p163 = scmp.eq.s32.totalorder %s22, 0
      %p164 = por %p162, %p163
      %s165 = ssub.s32 %s16, %s23
      %p166 = scmp.eq.s32.totalorder %s165, 0
      %s168 = sadd.s32 %s167, 1
      %s169 = scalar_select %p166, %s167, %s168
      %p172 = pneg %p166
      %p173 = scmp.eq.s32.totalorder %s16, 1
      %p174 = por %p172, %p173
      %p175 = scmp.ne.s32.totalorder %s167, %s170
      %p176 = scmp.eq.s32.totalorder %s16, 0
      %p177 = por %p175, %p176
      %p178 = scmp.ne.s32.totalorder %s167, %s170
      %p179 = scmp.eq.s32.totalorder %s21, 1
      %p180 = por %p178, %p179
      %p181 = scmp.ne.s32.totalorder %s170, %s171
      %p182 = scmp.eq.s32.totalorder %s21, 0
      %p183 = por %p181, %p182
      %p184 = scmp.ne.s32.totalorder %s170, %s171
      %p185 = scmp.eq.s32.totalorder %s22, 1
      %p186 = por %p184, %p185
      %p188 = scmp.ne.s32.totalorder %s171, %s187
      %p189 = scmp.eq.s32.totalorder %s22, 0
      %p190 = por %p188, %p189
      %s191 = ssub.s32 %s16, %s23
      %p192 = scmp.eq.s32.totalorder %s191, 0
      %s194 = sadd.s32 %s193, 1
      %s195 = scalar_select %p192, %s193, %s194
      %p198 = pneg %p192
      %p199 = scmp.eq.s32.totalorder %s16, 1
      %p200 = por %p198, %p199
      %p201 = scmp.ne.s32.totalorder %s193, %s196
      %p202 = scmp.eq.s32.totalorder %s16, 0
      %p203 = por %p201, %p202
      %p204 = scmp.ne.s32.totalorder %s193, %s196
      %p205 = scmp.eq.s32.totalorder %s21, 1
      %p206 = por %p204, %p205
      %p207 = scmp.ne.s32.totalorder %s196, %s197
      %p208 = scmp.eq.s32.totalorder %s21, 0
      %p209 = por %p207, %p208
      %p210 = scmp.ne.s32.totalorder %s196, %s197
      %p211 = scmp.eq.s32.totalorder %s22, 1
      %p212 = por %p210, %p211
      %p214 = scmp.ne.s32.totalorder %s197, %s213
      %p215 = scmp.eq.s32.totalorder %s22, 0
      %p216 = por %p214, %p215
      %p217 = scmp.le.s32.totalorder 1, %s16
      %p218 = scmp.lt.s32.totalorder %s16, 3
      %p219 = pnand %p217, %p218
      %p220 = pneg %p219
      // Predicated region
      $region9: #{forward.1} parent=5 // pred_check
        _
      $region10: #{forward.1} parent=5 // pred_check_branch
        %222 = sbr.rel (%p219) target = $region12
      $region11: #{forward.1} parent=5 // pred_region
        %s223 = ssub.s32 %s16, 1
        // Predicated region
        $region13: #{forward.1} parent=11 // pred_check
          %p224 = pneg %p89
        $region14: #{forward.1} parent=11 // pred_check_branch
          %226 = sbr.rel (%p224) target = $region16
        $region15: #{forward.1} parent=11 // pred_region
          _
        $region16: #{forward.1} parent=11 // pred_fallthru
          _
        // Predicated region
        $region17: #{forward.1} parent=11 // pred_check
          %p227 = pneg %p110
        $region18: #{forward.1} parent=11 // pred_check_branch
          %229 = sbr.rel (%p227) target = $region20
        $region19: #{forward.1} parent=11 // pred_region
          %231 = vsyncadd [#allocation3], 0
          %s232 = sshll.u32 %s3, 4
          %s233 = int_to_ptr.hbm [resolvable:$true] %s232
          %s234 = sshll.u32 [#allocation2], 4
          %s235 = int_to_ptr.vmem [resolvable:$true] %s234
          %240 = dma.hbm_to_vmem [thread:$0]  %s233, 3584, %s235, [#allocation3], 896, 896, 56
        $region20: #{forward.1} parent=11 // pred_fallthru
          _
        // Predicated region
        $region21: #{forward.1} parent=11 // pred_check
          %p241 = pneg %p131
        $region22: #{forward.1} parent=11 // pred_check_branch
          %243 = sbr.rel (%p241) target = $region24
        $region23: #{forward.1} parent=11 // pred_region
          %245 = vsyncadd [#allocation5], 0
          %s246 = sshll.u32 %s4, 4
          %s247 = int_to_ptr.hbm [resolvable:$true] %s246
          %s248 = sshll.u32 [#allocation4], 4
          %s249 = int_to_ptr.vmem [resolvable:$true] %s248
          %254 = dma.hbm_to_vmem [thread:$0]  %s247, 8192, %s249, [#allocation5], 512, 512, 32
        $region24: #{forward.1} parent=11 // pred_fallthru
          _
      $region12: #{forward.1} parent=5 // pred_fallthru
        _
      %p255 = scmp.lt.s32.totalorder %s16, 2
      // Predicated region
      $region25: #{forward.1} parent=5 // pred_check
        %p256 = pneg %p255
      $region26: #{forward.1} parent=5 // pred_check_branch
        %258 = sbr.rel (%p256) target = $region28
      $region27: #{forward.1} parent=5 // pred_region
        // Predicated region
        $region29: #{forward.1} parent=27 // pred_check
          %p259 = pneg %p36
        $region30: #{forward.1} parent=27 // pred_check_branch
          %261 = sbr.rel (%p259) target = $region32
        $region31: #{forward.1} parent=27 // pred_region
          %p262 = scmp.lt.s32.totalorder %s16, 1
          %s263 = scalar_select %p262, %s16, 1
          %s264 = smul.addr %s263, 8
          %s265 = smul.addr %s264, 8
          %s266 = scalar_lea.vmem %s0, %s265
        $region32: #{forward.1} parent=27 // pred_fallthru
          _
        // Predicated region
        $region33: #{forward.1} parent=27 // pred_check
          %p267 = pneg %p62
        $region34: #{forward.1} parent=27 // pred_check_branch
          %269 = sbr.rel (%p267) target = $region36
        $region35: #{forward.1} parent=27 // pred_region
          %p270 = scmp.lt.s32.totalorder %s16, 1
          %s271 = scalar_select %p270, %s16, 1
          %s272 = smul.addr %s271, 8
          %s273 = scalar_lea.vmem %s1, %s272
        $region36: #{forward.1} parent=27 // pred_fallthru
          _
      $region28: #{forward.1} parent=5 // pred_fallthru
        _
      %p274 = scmp.le.s32.totalorder 1, %s16
      %p275 = scmp.lt.s32.totalorder %s16, 3
      %p276 = pnand %p274, %p275
      %p277 = pneg %p276
      // Predicated region
      $region37: #{forward.1} parent=5 // pred_check
        _
      $region38: #{forward.1} parent=5 // pred_check_branch
        %279 = sbr.rel (%p276) target = $region40
      $region39: #{forward.1} parent=5 // pred_region
        %s280 = ssub.s32 %s16, 1
        // Predicated region
        $region41: #{forward.1} parent=39 // pred_check
          %p281 = pneg %p110
        $region42: #{forward.1} parent=39 // pred_check_branch
          %283 = sbr.rel (%p281) target = $region44
        $region43: #{forward.1} parent=39 // pred_region
          %285 = dma.done [#allocation3], 3584
        $region44: #{forward.1} parent=39 // pred_fallthru
          _
        // Predicated region
        $region45: #{forward.1} parent=39 // pred_check
          %p286 = pneg %p131
        $region46: #{forward.1} parent=39 // pred_check_branch
          %288 = sbr.rel (%p286) target = $region48
        $region47: #{forward.1} parent=39 // pred_region
          %290 = dma.done [#allocation5], 8192
        $region48: #{forward.1} parent=39 // pred_fallthru
          _
        %p291 = scmp.lt.s32.totalorder %s21, 1
        %s292 = scalar_select %p291, %s21, 1
        %s293 = smul.addr %s292, 8
        %s294 = smul.addr %s293, 8
        %s295 = scalar_lea.vmem %s0, %s294
        %p296 = pneg %p42
        %p297 = pneg %p39
        %p298 = scmp.lt.s32.totalorder %s21, 1
        %s299 = scalar_select %p298, %s21, 1
        %s300 = smul.addr %s299, 8
        %s301 = scalar_lea.vmem %s1, %s300
        %p302 = pneg %p68
        %p303 = pneg %p65
        %p304 = pneg %p89
        %p305 = pneg %p86
        %p306 = pneg %p110
        %p307 = pneg %p107
        %p308 = pneg %p131
        %p309 = pneg %p128
        %p310 = pneg %p157
        %p311 = pneg %p154
        %p312 = scmp.lt.s32.totalorder %s21, 1
        %s313 = scalar_select %p312, %s21, 1
        %s314 = smul.addr %s313, 2
        %s315 = smul.addr %s314, 8
        %s316 = scalar_lea.vmem %s5, %s315
        %p317 = pneg %p183
        %p318 = pneg %p180
        %p319 = scmp.lt.s32.totalorder %s21, 1
        %s320 = scalar_select %p319, %s21, 1
        %s321 = smul.addr %s320, 8
        %s322 = scalar_lea.vmem %s6, %s321
        %p323 = pneg %p209
        %p324 = pneg %p206
        %p325 = scmp.lt.s32.totalorder %s21, 1
        %s326 = scalar_select %p325, %s21, 1
        %s327 = smul.addr %s326, 8
        %s328 = scalar_lea.vmem %s7, %s327
        %p329 = scmp.lt.s32.totalorder %s21, 1
        %s330 = scalar_select %p329, %s21, 1
        %s331 = smul.addr %s330, 8
        %s332 = smul.addr %s331, 8
        %s333 = scalar_lea.vmem %s0, %s332
        %p334 = scmp.lt.s32.totalorder %s21, 1
        %s335 = scalar_select %p334, %s21, 1
        %s336 = smul.addr %s335, 8
        %s337 = scalar_lea.vmem %s1, %s336
        %p338 = scmp.lt.s32.totalorder %s21, 1
        %s339 = scalar_select %p338, %s21, 1
        %s340 = smul.addr %s339, 2
        %s341 = smul.addr %s340, 8
        %s342 = scalar_lea.vmem %s5, %s341
        %p343 = scmp.lt.s32.totalorder %s21, 1
        %s344 = scalar_select %p343, %s21, 1
        %s345 = smul.addr %s344, 8
        %s346 = scalar_lea.vmem %s6, %s345
        %p347 = scmp.lt.s32.totalorder %s21, 1
        %s348 = scalar_select %p347, %s21, 1
        %s349 = smul.addr %s348, 8
        %s350 = scalar_lea.vmem %s7, %s349
        %v351 = vld [vmem:[%s2] sm:$0x1]
        %v352 = vld [vmem:[%s2 + $0x1] sm:$0x1]
        %v353 = vld [vmem:[%s2 + $0x2] sm:$0x1]
        %v354 = vld [vmem:[%s2 + $0x3] sm:$0x1]
        %v355 = vld [vmem:[%s2 + $0x4] sm:$0x1]
        %v356 = vld [vmem:[%s2 + $0x5] sm:$0x1]
        %v357 = vld [vmem:[%s2 + $0x6] sm:$0x1]
        %v358 = vld [vmem:[%s2 + $0x7] sm:$0x1]
        %v359 = vld [vmem:[#allocation2] sm:$0xff]
        %v360 = vld [vmem:[#allocation2 + $0x38] sm:$0xff]
        %v361 = vld [vmem:[#allocation2 + $0x70] sm:$0xff]
        %v362 = vld [vmem:[#allocation2 + $0xa8] sm:$0xff]
        %v363 = vld [vmem:[#allocation2 + $0x8] sm:$0xff]
        %v364 = vld [vmem:[#allocation2 + $0x40] sm:$0xff]
        %v365 = vld [vmem:[#allocation2 + $0x78] sm:$0xff]
        %v366 = vld [vmem:[#allocation2 + $0xb0] sm:$0xff]
        %v367 = vld [vmem:[#allocation2 + $0x18] sm:$0xff]
        %v368 = vld [vmem:[#allocation2 + $0x50] sm:$0xff]
        %v369 = vld [vmem:[#allocation2 + $0x88] sm:$0xff]
        %v370 = vld [vmem:[#allocation2 + $0xc0] sm:$0xff]
        %v371 = vld [vmem:[#allocation2 + $0x20] sm:$0xff]
        %v372 = vld [vmem:[#allocation2 + $0x58] sm:$0xff]
        %v373 = vld [vmem:[#allocation2 + $0x90] sm:$0xff]
        %v374 = vld [vmem:[#allocation2 + $0xc8] sm:$0xff]
        %v375 = vld [vmem:[#allocation4 + $0x10] sm:$0xff]
        %v376 = vld [vmem:[#allocation4 + $0x30] sm:$0xff]
        %v377 = vld [vmem:[#allocation4 + $0x50] sm:$0xff]
        %v378 = vld [vmem:[#allocation4 + $0x70] sm:$0xff]
        %v379 = vld [vmem:[#allocation4 + $0x90] sm:$0xff]
        %v380 = vld [vmem:[#allocation4 + $0xb0] sm:$0xff]
        %v381 = vld [vmem:[#allocation4 + $0xd0] sm:$0xff]
        %v382 = vld [vmem:[#allocation4 + $0xf0] sm:$0xff]
        %v383 = vld [vmem:[#allocation4 + $0x110] sm:$0xff]
        %v384 = vld [vmem:[#allocation4 + $0x130] sm:$0xff]
        %v385 = vld [vmem:[#allocation4 + $0x150] sm:$0xff]
        %v386 = vld [vmem:[#allocation4 + $0x170] sm:$0xff]
        %v387 = vld [vmem:[#allocation4 + $0x190] sm:$0xff]
        %v388 = vld [vmem:[#allocation4 + $0x1b0] sm:$0xff]
        %v389 = vld [vmem:[#allocation4 + $0x1d0] sm:$0xff]
        %v390 = vld [vmem:[#allocation4 + $0x1f0] sm:$0xff]
        %v391 = vld [vmem:[#allocation4 + $0x18] sm:$0xff]
        %v392 = vld [vmem:[#allocation4 + $0x38] sm:$0xff]
        %v393 = vld [vmem:[#allocation4 + $0x58] sm:$0xff]
        %v394 = vld [vmem:[#allocation4 + $0x78] sm:$0xff]
        %v395 = vld [vmem:[#allocation4 + $0x98] sm:$0xff]
        %v396 = vld [vmem:[#allocation4 + $0xb8] sm:$0xff]
        %v397 = vld [vmem:[#allocation4 + $0xd8] sm:$0xff]
        %v398 = vld [vmem:[#allocation4 + $0xf8] sm:$0xff]
        %v399 = vld [vmem:[#allocation4 + $0x118] sm:$0xff]
        %v400 = vld [vmem:[#allocation4 + $0x138] sm:$0xff]
        %v401 = vld [vmem:[#allocation4 + $0x158] sm:$0xff]
        %v402 = vld [vmem:[#allocation4 + $0x178] sm:$0xff]
        %v403 = vld [vmem:[#allocation4 + $0x198] sm:$0xff]
        %v404 = vld [vmem:[#allocation4 + $0x1b8] sm:$0xff]
        %v405 = vld [vmem:[#allocation4 + $0x1d8] sm:$0xff]
        %v406 = vld [vmem:[#allocation4 + $0x1f8] sm:$0xff]
        %v407 = vld [vmem:[%s333] sm:$0xff]
        %v408 = vld [vmem:[%s333 + $0x8] sm:$0xff]
        %v409 = vld [vmem:[%s333 + $0x10] sm:$0xff]
        %v410 = vld [vmem:[%s333 + $0x18] sm:$0xff]
        %v411 = vld [vmem:[%s333 + $0x20] sm:$0xff]
        %v412 = vld [vmem:[%s333 + $0x28] sm:$0xff]
        %v413 = vld [vmem:[%s333 + $0x30] sm:$0xff]
        %v414 = vld [vmem:[%s333 + $0x38] sm:$0xff]
        %vm415 = vcmask 261120
        %v416 = vsel %vm415, %v407, 0.0
        %417 = vadd.xlane.f32.xlu0 %v416
        %v418 = vpop.xlane.xlu0 %417
        %v419 = vsel %vm415, %v408, 0.0
        %420 = vadd.xlane.f32.xlu0 %v419
        %v421 = vpop.xlane.xlu0 %420
        %v422 = vsel %vm415, %v409, 0.0
        %423 = vadd.xlane.f32.xlu0 %v422
        %v424 = vpop.xlane.xlu0 %423
        %v425 = vsel %vm415, %v410, 0.0
        %426 = vadd.xlane.f32.xlu0 %v425
        %v427 = vpop.xlane.xlu0 %426
        %v428 = vsel %vm415, %v411, 0.0
        %429 = vadd.xlane.f32.xlu0 %v428
        %v430 = vpop.xlane.xlu0 %429
        %v431 = vsel %vm415, %v412, 0.0
        %432 = vadd.xlane.f32.xlu0 %v431
        %v433 = vpop.xlane.xlu0 %432
        %v434 = vsel %vm415, %v413, 0.0
        %435 = vadd.xlane.f32.xlu0 %v434
        %v436 = vpop.xlane.xlu0 %435
        %v437 = vsel %vm415, %v414, 0.0
        %438 = vadd.xlane.f32.xlu0 %v437
        %v439 = vpop.xlane.xlu0 %438
        %v440 = vrcp.pop 32.0
        %v441 = vmul.f32 32.0, %v440
        %v442 = vsub.f32 1.0, %v441
        %v443 = vmul.f32 %v440, %v442
        %v444 = vadd.f32 %v440, %v443
        %vm445 = vweird.f32 %v440
        %v446 = vsel %vm445, %v440, %v444
        %v447 = vmul.f32 %v418, %v446
        %v448 = vmul.f32 %v421, %v446
        %v449 = vmul.f32 %v424, %v446
        %v450 = vmul.f32 %v427, %v446
        %v451 = vmul.f32 %v430, %v446
        %v452 = vmul.f32 %v433, %v446
        %v453 = vmul.f32 %v436, %v446
        %v454 = vmul.f32 %v439, %v446
        %v455 = vsub.f32 %v407, %v447
        %v456 = vsub.f32 %v408, %v448
        %v457 = vsub.f32 %v409, %v449
        %v458 = vsub.f32 %v410, %v450
        %v459 = vsub.f32 %v411, %v451
        %v460 = vsub.f32 %v412, %v452
        %v461 = vsub.f32 %v413, %v453
        %v462 = vsub.f32 %v414, %v454
        %v463 = vmul.f32 %v455, %v455
        %v464 = vmul.f32 %v456, %v456
        %v465 = vmul.f32 %v457, %v457
        %v466 = vmul.f32 %v458, %v458
        %v467 = vmul.f32 %v459, %v459
        %v468 = vmul.f32 %v460, %v460
        %v469 = vmul.f32 %v461, %v461
        %v470 = vmul.f32 %v462, %v462
        %v471 = vsel %vm415, %v463, 0.0
        %472 = vadd.xlane.f32.xlu0 %v471
        %v473 = vpop.xlane.xlu0 %472
        %v474 = vsel %vm415, %v464, 0.0
        %475 = vadd.xlane.f32.xlu0 %v474
        %v476 = vpop.xlane.xlu0 %475
        %v477 = vsel %vm415, %v465, 0.0
        %478 = vadd.xlane.f32.xlu0 %v477
        %v479 = vpop.xlane.xlu0 %478
        %v480 = vsel %vm415, %v466, 0.0
        %481 = vadd.xlane.f32.xlu0 %v480
        %v482 = vpop.xlane.xlu0 %481
        %v483 = vsel %vm415, %v467, 0.0
        %484 = vadd.xlane.f32.xlu0 %v483
        %v485 = vpop.xlane.xlu0 %484
        %v486 = vsel %vm415, %v468, 0.0
        %487 = vadd.xlane.f32.xlu0 %v486
        %v488 = vpop.xlane.xlu0 %487
        %v489 = vsel %vm415, %v469, 0.0
        %490 = vadd.xlane.f32.xlu0 %v489
        %v491 = vpop.xlane.xlu0 %490
        %v492 = vsel %vm415, %v470, 0.0
        %493 = vadd.xlane.f32.xlu0 %v492
        %v494 = vpop.xlane.xlu0 %493
        %v495 = vmul.f32 %v473, %v446
        %v496 = vmul.f32 %v476, %v446
        %v497 = vmul.f32 %v479, %v446
        %v498 = vmul.f32 %v482, %v446
        %v499 = vmul.f32 %v485, %v446
        %v500 = vmul.f32 %v488, %v446
        %v501 = vmul.f32 %v491, %v446
        %v502 = vmul.f32 %v494, %v446
        %v503 = vadd.f32 %v495, 1e-05
        %v504 = vadd.f32 %v496, 1e-05
        %v505 = vadd.f32 %v497, 1e-05
        %v506 = vadd.f32 %v498, 1e-05
        %v507 = vadd.f32 %v499, 1e-05
        %v508 = vadd.f32 %v500, 1e-05
        %v509 = vadd.f32 %v501, 1e-05
        %v510 = vadd.f32 %v502, 1e-05
        %v511 = vrsqrt.pop %v503
        %v512 = vmul.f32 %v511, %v503
        %v513 = vmul.f32 %v512, %v511
        %v514 = vmul.f32 0.5, %v513
        %v515 = vsub.f32 1.5, %v514
        %v516 = vmul.f32 %v511, %v515
        %vm517 = vweird.f32 %v503
        %vm518 = vweird.f32 %v511
        %vm519 = vmor %vm517, %vm518
        %v520 = vsel %vm519, %v511, %v516
        %v521 = vrsqrt.pop %v504
        %v522 = vmul.f32 %v521, %v504
        %v523 = vmul.f32 %v522, %v521
        %v524 = vmul.f32 0.5, %v523
        %v525 = vsub.f32 1.5, %v524
        %v526 = vmul.f32 %v521, %v525
        %vm527 = vweird.f32 %v504
        %vm528 = vweird.f32 %v521
        %vm529 = vmor %vm527, %vm528
        %v530 = vsel %vm529, %v521, %v526
        %v531 = vrsqrt.pop %v505
        %v532 = vmul.f32 %v531, %v505
        %v533 = vmul.f32 %v532, %v531
        %v534 = vmul.f32 0.5, %v533
        %v535 = vsub.f32 1.5, %v534
        %v536 = vmul.f32 %v531, %v535
        %vm537 = vweird.f32 %v505
        %vm538 = vweird.f32 %v531
        %vm539 = vmor %vm537, %vm538
        %v540 = vsel %vm539, %v531, %v536
        %v541 = vrsqrt.pop %v506
        %v542 = vmul.f32 %v541, %v506
        %v543 = vmul.f32 %v542, %v541
        %v544 = vmul.f32 0.5, %v543
        %v545 = vsub.f32 1.5, %v544
        %v546 = vmul.f32 %v541, %v545
        %vm547 = vweird.f32 %v506
        %vm548 = vweird.f32 %v541
        %vm549 = vmor %vm547, %vm548
        %v550 = vsel %vm549, %v541, %v546
        %v551 = vrsqrt.pop %v507
        %v552 = vmul.f32 %v551, %v507
        %v553 = vmul.f32 %v552, %v551
        %v554 = vmul.f32 0.5, %v553
        %v555 = vsub.f32 1.5, %v554
        %v556 = vmul.f32 %v551, %v555
        %vm557 = vweird.f32 %v507
        %vm558 = vweird.f32 %v551
        %vm559 = vmor %vm557, %vm558
        %v560 = vsel %vm559, %v551, %v556
        %v561 = vrsqrt.pop %v508
        %v562 = vmul.f32 %v561, %v508
        %v563 = vmul.f32 %v562, %v561
        %v564 = vmul.f32 0.5, %v563
        %v565 = vsub.f32 1.5, %v564
        %v566 = vmul.f32 %v561, %v565
        %vm567 = vweird.f32 %v508
        %vm568 = vweird.f32 %v561
        %vm569 = vmor %vm567, %vm568
        %v570 = vsel %vm569, %v561, %v566
        %v571 = vrsqrt.pop %v509
        %v572 = vmul.f32 %v571, %v509
        %v573 = vmul.f32 %v572, %v571
        %v574 = vmul.f32 0.5, %v573
        %v575 = vsub.f32 1.5, %v574
        %v576 = vmul.f32 %v571, %v575
        %vm577 = vweird.f32 %v509
        %vm578 = vweird.f32 %v571
        %vm579 = vmor %vm577, %vm578
        %v580 = vsel %vm579, %v571, %v576
        %v581 = vrsqrt.pop %v510
        %v582 = vmul.f32 %v581, %v510
        %v583 = vmul.f32 %v582, %v581
        %v584 = vmul.f32 0.5, %v583
        %v585 = vsub.f32 1.5, %v584
        %v586 = vmul.f32 %v581, %v585
        %vm587 = vweird.f32 %v510
        %vm588 = vweird.f32 %v581
        %vm589 = vmor %vm587, %vm588
        %v590 = vsel %vm589, %v581, %v586
        %v591 = vmul.f32 %v455, %v520
        %v592 = vmul.f32 %v456, %v530
        %v593 = vmul.f32 %v457, %v540
        %v594 = vmul.f32 %v458, %v550
        %v595 = vmul.f32 %v459, %v560
        %v596 = vmul.f32 %v460, %v570
        %v597 = vmul.f32 %v461, %v580
        %v598 = vmul.f32 %v462, %v590
        %v599 = vperm.slane %v351, 0
        %v600 = vmul.f32 %v591, %v599
        %v601 = vmul.f32 %v592, %v599
        %v602 = vmul.f32 %v593, %v599
        %v603 = vmul.f32 %v594, %v599
        %v604 = vmul.f32 %v595, %v599
        %v605 = vmul.f32 %v596, %v599
        %v606 = vmul.f32 %v597, %v599
        %v607 = vmul.f32 %v598, %v599
        %v608 = vperm.slane %v352, 0
        %v609 = vadd.f32 %v600, %v608
        %v610 = vadd.f32 %v601, %v608
        %v611 = vadd.f32 %v602, %v608
        %v612 = vadd.f32 %v603, %v608
        %v613 = vadd.f32 %v604, %v608
        %v614 = vadd.f32 %v605, %v608
        %v615 = vadd.f32 %v606, %v608
        %v616 = vadd.f32 %v607, %v608
        %v617 = vld [vmem:[#allocation2 + $0x10] sm:$0xff]
        %v618 = vld [vmem:[#allocation2 + $0x48] sm:$0xff]
        %v619 = vld [vmem:[#allocation2 + $0x80] sm:$0xff]
        %v620 = vld [vmem:[#allocation2 + $0xb8] sm:$0xff]
        %v622 = vsel %vm415, %v609, 0
        %v625 = vsel %vm415, %v610, 0
        %v628 = vsel %vm415, %v611, 0
        %v631 = vsel %vm415, %v612, 0
        %v634 = vsel %vm415, %v613, 0
        %v637 = vsel %vm415, %v614, 0
        %v640 = vsel %vm415, %v615, 0
        %v643 = vsel %vm415, %v616, 0
        %645 = vmatpush.msra.mxu0 0.0
        %646 = vmatpush.msra.mxu0 0.0
        %647 = vmatpush.msra.mxu0 0.0
        %648 = vmatpush.msra.mxu0 0.0
        %649 = vmatpush.msra.mxu0 0.0
        %650 = vmatpush.msra.mxu0 0.0
        %651 = vmatpush.msra.mxu0 0.0
        %652 = vmatpush.msra.mxu0 0.0
        %653 = vmatpush.msra.mxu0 0.0
        %654 = vmatpush.msra.mxu0 0.0
        %655 = vmatpush.msra.mxu0 0.0
        %656 = vmatpush.msra.mxu0 0.0
        %657 = vmatpush.msra.mxu0 %v620
        %658 = vmatpush.msra.mxu0 %v619
        %659 = vmatpush.msra.mxu0 %v618
        %660 = vmatpush.msra.mxu0 %v617
        %661 = vmatmul.f32.gmra.mxu0 %v622
        %v662 = vpop.f32.mrf.mxu0
        %v663 = vadd.f32 0.0, %v662
        %664 = vmatmul.f32.gmra.mxu0 %v625
        %v665 = vpop.f32.mrf.mxu0
        %v666 = vadd.f32 0.0, %v665
        %667 = vmatmul.f32.gmra.mxu0 %v628
        %v668 = vpop.f32.mrf.mxu0
        %v669 = vadd.f32 0.0, %v668
        %670 = vmatmul.f32.gmra.mxu0 %v631
        %v671 = vpop.f32.mrf.mxu0
        %v672 = vadd.f32 0.0, %v671
        %673 = vmatmul.f32.gmra.mxu0 %v634
        %v674 = vpop.f32.mrf.mxu0
        %v675 = vadd.f32 0.0, %v674
        %676 = vmatmul.f32.gmra.mxu0 %v637
        %v677 = vpop.f32.mrf.mxu0
        %v678 = vadd.f32 0.0, %v677
        %679 = vmatmul.f32.gmra.mxu0 %v640
        %v680 = vpop.f32.mrf.mxu0
        %v681 = vadd.f32 0.0, %v680
        %682 = vmatmul.f32.gmra.mxu0 %v643
        %v683 = vpop.f32.mrf.mxu0
        %v684 = vadd.f32 0.0, %v683
        %685 = vdwg.mxu0
        %v686 = vld [vmem:[%s337] sm:$0xff]
        %v687 = vsel %vm415, %v686, 0.0
        %688 = vadd.xlane.f32.xlu0 %v687
        %v689 = vpop.xlane.xlu0 %688
        %v690 = vmul.f32 %v689, %v446
        %v691 = vsub.f32 %v686, %v690
        %v692 = vmul.f32 %v691, %v691
        %v693 = vsel %vm415, %v692, 0.0
        %694 = vadd.xlane.f32.xlu0 %v693
        %v695 = vpop.xlane.xlu0 %694
        %v696 = vmul.f32 %v695, %v446
        %v697 = vadd.f32 %v696, 1e-05
        %v698 = vrsqrt.pop %v697
        %v699 = vmul.f32 %v698, %v697
        %v700 = vmul.f32 %v699, %v698
        %v701 = vmul.f32 0.5, %v700
        %v702 = vsub.f32 1.5, %v701
        %v703 = vmul.f32 %v698, %v702
        %vm704 = vweird.f32 %v697
        %vm705 = vweird.f32 %v698
        %vm706 = vmor %vm704, %vm705
        %v707 = vsel %vm706, %v698, %v703
        %v708 = vmul.f32 %v691, %v707
        %v709 = vperm.slane %v353, 0
        %v710 = vmul.f32 %v708, %v709
        %v711 = vperm.slane %v354, 0
        %v712 = vadd.f32 %v710, %v711
        %v714 = vsel %vm415, %v712, 0
        %716 = vmatpush.msra.mxu0 0.0
        %717 = vmatpush.msra.mxu0 0.0
        %718 = vmatpush.msra.mxu0 0.0
        %719 = vmatpush.msra.mxu0 0.0
        %720 = vmatpush.msra.mxu0 0.0
        %721 = vmatpush.msra.mxu0 0.0
        %722 = vmatpush.msra.mxu0 0.0
        %723 = vmatpush.msra.mxu0 0.0
        %724 = vmatpush.msra.mxu0 0.0
        %725 = vmatpush.msra.mxu0 0.0
        %726 = vmatpush.msra.mxu0 0.0
        %727 = vmatpush.msra.mxu0 0.0
        %728 = vmatpush.msra.mxu0 %v362
        %729 = vmatpush.msra.mxu0 %v361
        %730 = vmatpush.msra.mxu0 %v360
        %731 = vmatpush.msra.mxu0 %v359
        %732 = vmatmul.f32.gmra.mxu0 %v714
        %v733 = vpop.f32.mrf.mxu0
        %v734 = vadd.f32 0.0, %v733
        %735 = vdwg.mxu0
        %v737 = vsel %vm415, %v734, 0
        %v740 = vsel %vm415, %v663, 0
        %v743 = vsel %vm415, %v666, 0
        %v746 = vsel %vm415, %v669, 0
        %v749 = vsel %vm415, %v672, 0
        %v752 = vsel %vm415, %v675, 0
        %v755 = vsel %vm415, %v678, 0
        %v758 = vsel %vm415, %v681, 0
        %v761 = vsel %vm415, %v684, 0
        %763 = vmatpush.xpose.msra.mxu0 0.0
        %764 = vmatpush.xpose.msra.mxu0 0.0
        %765 = vmatpush.xpose.msra.mxu0 0.0
        %766 = vmatpush.xpose.msra.mxu0 0.0
        %767 = vmatpush.xpose.msra.mxu0 0.0
        %768 = vmatpush.xpose.msra.mxu0 0.0
        %769 = vmatpush.xpose.msra.mxu0 0.0
        %770 = vmatpush.xpose.msra.mxu0 0.0
        %771 = vmatpush.xpose.msra.mxu0 %v761
        %772 = vmatpush.xpose.msra.mxu0 %v758
        %773 = vmatpush.xpose.msra.mxu0 %v755
        %774 = vmatpush.xpose.msra.mxu0 %v752
        %775 = vmatpush.xpose.msra.mxu0 %v749
        %776 = vmatpush.xpose.msra.mxu0 %v746
        %777 = vmatpush.xpose.msra.mxu0 %v743
        %778 = vmatpush.xpose.msra.mxu0 %v740
        %779 = vmatmul.f32.gmra.mxu0 %v737
        %v780 = vpop.f32.mrf.mxu0
        %v781 = vadd.f32 0.0, %v780
        %782 = vdwg.mxu0
        %v783 = vmul.f32 %v781, 0.17677669
        %vm784 = vcmask 523264
        %v785 = vsel %vm784, %v783, -inf
        %v786 = vrot.slane %v785, 4
        %v787 = vmax.f32 %v785, %v786
        %v788 = vrot.slane %v787, 2
        %v789 = vmax.f32 %v787, %v788
        %v790 = vrot.slane %v789, 1
        %v791 = vmax.f32 %v789, %v790
        %v792 = vsub.f32 %v783, %v791
        %v793 = vmul.f32 %v792, 1.442695
        %v794 = vpow.pop %v793
        %v795 = vsel %vm784, %v794, 0.0
        %v796 = vrot.slane %v795, 4
        %v797 = vadd.f32 %v795, %v796
        %v798 = vrot.slane %v797, 2
        %v799 = vadd.f32 %v797, %v798
        %v800 = vrot.slane %v799, 1
        %v801 = vadd.f32 %v799, %v800
        %v802 = vrcp.pop %v801
        %v803 = vmul.f32 %v794, %v802
        %v804 = vadd.f32 %v803, 1e-08
        %v805 = vsel %vm784, %v804, 0.0
        %806 = vadd.xlane.f32.xlu0 %v805
        %v807 = vpop.xlane.xlu0 %806
        %v808 = vrcp.pop %v807
        %v809 = vmul.f32 %v804, %v808
        %810 = vrot.lane.b32.xlu0 %v663, 96
        %v811 = vpop.permute.xlu0 %810
        %812 = vrot.lane.b32.xlu0 %v666, 96
        %v813 = vpop.permute.xlu0 %812
        %814 = vrot.lane.b32.xlu0 %v669, 96
        %v815 = vpop.permute.xlu0 %814
        %816 = vrot.lane.b32.xlu0 %v672, 96
        %v817 = vpop.permute.xlu0 %816
        %818 = vrot.lane.b32.xlu0 %v675, 96
        %v819 = vpop.permute.xlu0 %818
        %820 = vrot.lane.b32.xlu0 %v678, 96
        %v821 = vpop.permute.xlu0 %820
        %822 = vrot.lane.b32.xlu0 %v681, 96
        %v823 = vpop.permute.xlu0 %822
        %824 = vrot.lane.b32.xlu0 %v684, 96
        %v825 = vpop.permute.xlu0 %824
        %v835 = vsel %vm784, %v809, 0
        %837 = vmatpush.msra.mxu0 0.0
        %838 = vmatpush.msra.mxu0 0.0
        %839 = vmatpush.msra.mxu0 0.0
        %840 = vmatpush.msra.mxu0 0.0
        %841 = vmatpush.msra.mxu0 0.0
        %842 = vmatpush.msra.mxu0 0.0
        %843 = vmatpush.msra.mxu0 0.0
        %844 = vmatpush.msra.mxu0 0.0
        %845 = vmatpush.msra.mxu0 %v825
        %846 = vmatpush.msra.mxu0 %v823
        %847 = vmatpush.msra.mxu0 %v821
        %848 = vmatpush.msra.mxu0 %v819
        %849 = vmatpush.msra.mxu0 %v817
        %850 = vmatpush.msra.mxu0 %v815
        %851 = vmatpush.msra.mxu0 %v813
        %852 = vmatpush.msra.mxu0 %v811
        %853 = vmatmul.f32.gmra.mxu0 %v835
        %v854 = vpop.f32.mrf.mxu0
        %v855 = vadd.f32 0.0, %v854
        %856 = vdwg.mxu0
        %v858 = vsel %vm415, %v855, 0
        %860 = vmatpush.msra.mxu0 0.0
        %861 = vmatpush.msra.mxu0 0.0
        %862 = vmatpush.msra.mxu0 0.0
        %863 = vmatpush.msra.mxu0 0.0
        %864 = vmatpush.msra.mxu0 0.0
        %865 = vmatpush.msra.mxu0 0.0
        %866 = vmatpush.msra.mxu0 0.0
        %867 = vmatpush.msra.mxu0 0.0
        %868 = vmatpush.msra.mxu0 0.0
        %869 = vmatpush.msra.mxu0 0.0
        %870 = vmatpush.msra.mxu0 0.0
        %871 = vmatpush.msra.mxu0 0.0
        %872 = vmatpush.msra.mxu0 %v366
        %873 = vmatpush.msra.mxu0 %v365
        %874 = vmatpush.msra.mxu0 %v364
        %875 = vmatpush.msra.mxu0 %v363
        %876 = vmatmul.f32.gmra.mxu0 %v858
        %v877 = vpop.f32.mrf.mxu0
        %v878 = vadd.f32 %v686, %v877
        %879 = vdwg.mxu0
        %v880 = vsel %vm415, %v878, 0.0
        %881 = vadd.xlane.f32.xlu0 %v880
        %v882 = vpop.xlane.xlu0 %881
        %v883 = vmul.f32 %v882, %v446
        %v884 = vsub.f32 %v878, %v883
        %v885 = vmul.f32 %v884, %v884
        %v886 = vsel %vm415, %v885, 0.0
        %887 = vadd.xlane.f32.xlu0 %v886
        %v888 = vpop.xlane.xlu0 %887
        %v889 = vmul.f32 %v888, %v446
        %v890 = vadd.f32 %v889, 1e-05
        %v891 = vrsqrt.pop %v890
        %v892 = vmul.f32 %v891, %v890
        %v893 = vmul.f32 %v892, %v891
        %v894 = vmul.f32 0.5, %v893
        %v895 = vsub.f32 1.5, %v894
        %v896 = vmul.f32 %v891, %v895
        %vm897 = vweird.f32 %v890
        %vm898 = vweird.f32 %v891
        %vm899 = vmor %vm897, %vm898
        %v900 = vsel %vm899, %v891, %v896
        %v901 = vmul.f32 %v884, %v900
        %v902 = vperm.slane %v355, 0
        %v903 = vmul.f32 %v901, %v902
        %v904 = vperm.slane %v356, 0
        %v905 = vadd.f32 %v903, %v904
        %v906 = vperm.slane %v357, 0
        %v908 = vsel %vm415, %v905, 0
        %910 = vmatpush.msra.mxu0 0.0
        %911 = vmatpush.msra.mxu0 0.0
        %912 = vmatpush.msra.mxu0 0.0
        %913 = vmatpush.msra.mxu0 0.0
        %914 = vmatpush.msra.mxu0 0.0
        %915 = vmatpush.msra.mxu0 0.0
        %916 = vmatpush.msra.mxu0 0.0
        %917 = vmatpush.msra.mxu0 0.0
        %918 = vmatpush.msra.mxu0 0.0
        %919 = vmatpush.msra.mxu0 0.0
        %920 = vmatpush.msra.mxu0 0.0
        %921 = vmatpush.msra.mxu0 0.0
        %922 = vmatpush.msra.mxu0 %v370
        %923 = vmatpush.msra.mxu0 %v369
        %924 = vmatpush.msra.mxu0 %v368
        %925 = vmatpush.msra.mxu0 %v367
        %926 = vmatmul.f32.gmra.mxu0 %v908
        %v927 = vpop.f32.mrf.mxu0
        %v928 = vadd.f32 %v906, %v927
        %929 = vdwg.mxu0
        %v930 = vmax.f32 %v928, 0.0
        %v931 = vperm.slane %v358, 0
        %932 = vmatpush.msra.mxu0 %v390
        %933 = vmatpush.msra.mxu0 %v389
        %934 = vmatpush.msra.mxu0 %v388
        %935 = vmatpush.msra.mxu0 %v387
        %936 = vmatpush.msra.mxu0 %v386
        %937 = vmatpush.msra.mxu0 %v385
        %938 = vmatpush.msra.mxu0 %v384
        %939 = vmatpush.msra.mxu0 %v383
        %940 = vmatpush.msra.mxu0 %v382
        %941 = vmatpush.msra.mxu0 %v381
        %942 = vmatpush.msra.mxu0 %v380
        %943 = vmatpush.msra.mxu0 %v379
        %944 = vmatpush.msra.mxu0 %v378
        %945 = vmatpush.msra.mxu0 %v377
        %946 = vmatpush.msra.mxu0 %v376
        %947 = vmatpush.msra.mxu0 %v375
        %948 = vmatmul.f32.gmra.mxu0 %v930
        %v949 = vpop.f32.mrf.mxu0
        %v950 = vadd.f32 %v931, %v949
        %951 = vdwg.mxu0
        %v952 = vadd.f32 %v950, %v878
        %v953 = vsel %vm415, %v952, 0.0
        %954 = vadd.xlane.f32.xlu0 %v953
        %v955 = vpop.xlane.xlu0 %954
        %v956 = vmul.f32 %v955, %v446
        %v957 = vsub.f32 %v952, %v956
        %v958 = vmul.f32 %v957, %v957
        %v959 = vsel %vm415, %v958, 0.0
        %960 = vadd.xlane.f32.xlu0 %v959
        %v961 = vpop.xlane.xlu0 %960
        %v962 = vmul.f32 %v961, %v446
        %v963 = vadd.f32 %v962, 1e-05
        %v964 = vrsqrt.pop %v963
        %v965 = vmul.f32 %v964, %v963
        %v966 = vmul.f32 %v965, %v964
        %v967 = vmul.f32 0.5, %v966
        %v968 = vsub.f32 1.5, %v967
        %v969 = vmul.f32 %v964, %v968
        %vm970 = vweird.f32 %v963
        %vm971 = vweird.f32 %v964
        %vm972 = vmor %vm970, %vm971
        %v973 = vsel %vm972, %v964, %v969
        %v974 = vmul.f32 %v957, %v973
        %v975 = vmul.f32 %v974, %v709
        %v976 = vadd.f32 %v975, %v711
        %v978 = vsel %vm415, %v976, 0
        %980 = vmatpush.msra.mxu0 0.0
        %981 = vmatpush.msra.mxu0 0.0
        %982 = vmatpush.msra.mxu0 0.0
        %983 = vmatpush.msra.mxu0 0.0
        %984 = vmatpush.msra.mxu0 0.0
        %985 = vmatpush.msra.mxu0 0.0
        %986 = vmatpush.msra.mxu0 0.0
        %987 = vmatpush.msra.mxu0 0.0
        %988 = vmatpush.msra.mxu0 0.0
        %989 = vmatpush.msra.mxu0 0.0
        %990 = vmatpush.msra.mxu0 0.0
        %991 = vmatpush.msra.mxu0 0.0
        %992 = vmatpush.msra.mxu0 %v362
        %993 = vmatpush.msra.mxu0 %v361
        %994 = vmatpush.msra.mxu0 %v360
        %995 = vmatpush.msra.mxu0 %v359
        %996 = vmatmul.f32.gmra.mxu0 %v978
        %v997 = vpop.f32.mrf.mxu0
        %v998 = vadd.f32 0.0, %v997
        %999 = vdwg.mxu0
        %v1001 = vsel %vm415, %v998, 0
        %1003 = vmatpush.xpose.msra.mxu0 0.0
        %1004 = vmatpush.xpose.msra.mxu0 0.0
        %1005 = vmatpush.xpose.msra.mxu0 0.0
        %1006 = vmatpush.xpose.msra.mxu0 0.0
        %1007 = vmatpush.xpose.msra.mxu0 0.0
        %1008 = vmatpush.xpose.msra.mxu0 0.0
        %1009 = vmatpush.xpose.msra.mxu0 0.0
        %1010 = vmatpush.xpose.msra.mxu0 0.0
        %1011 = vmatpush.xpose.msra.mxu0 %v761
        %1012 = vmatpush.xpose.msra.mxu0 %v758
        %1013 = vmatpush.xpose.msra.mxu0 %v755
        %1014 = vmatpush.xpose.msra.mxu0 %v752
        %1015 = vmatpush.xpose.msra.mxu0 %v749
        %1016 = vmatpush.xpose.msra.mxu0 %v746
        %1017 = vmatpush.xpose.msra.mxu0 %v743
        %1018 = vmatpush.xpose.msra.mxu0 %v740
        %1019 = vmatmul.f32.gmra.mxu0 %v1001
        %v1020 = vpop.f32.mrf.mxu0
        %v1021 = vadd.f32 0.0, %v1020
        %1022 = vdwg.mxu0
        %v1023 = vmul.f32 %v1021, 0.17677669
        %v1024 = vsel %vm784, %v1023, -inf
        %v1025 = vrot.slane %v1024, 4
        %v1026 = vmax.f32 %v1024, %v1025
        %v1027 = vrot.slane %v1026, 2
        %v1028 = vmax.f32 %v1026, %v1027
        %v1029 = vrot.slane %v1028, 1
        %v1030 = vmax.f32 %v1028, %v1029
        %v1031 = vsub.f32 %v1023, %v1030
        %v1032 = vmul.f32 %v1031, 1.442695
        %v1033 = vpow.pop %v1032
        %v1034 = vsel %vm784, %v1033, 0.0
        %v1035 = vrot.slane %v1034, 4
        %v1036 = vadd.f32 %v1034, %v1035
        %v1037 = vrot.slane %v1036, 2
        %v1038 = vadd.f32 %v1036, %v1037
        %v1039 = vrot.slane %v1038, 1
        %v1040 = vadd.f32 %v1038, %v1039
        %v1041 = vrcp.pop %v1040
        %v1042 = vmul.f32 %v1033, %v1041
        %v1043 = vadd.f32 %v1042, 1e-08
        %v1044 = vsel %vm784, %v1043, 0.0
        %1045 = vadd.xlane.f32.xlu0 %v1044
        %v1046 = vpop.xlane.xlu0 %1045
        %v1047 = vrcp.pop %v1046
        %v1048 = vmul.f32 %v1043, %v1047
        %v1050 = vsel %vm784, %v1048, 0
        %1052 = vmatpush.msra.mxu0 0.0
        %1053 = vmatpush.msra.mxu0 0.0
        %1054 = vmatpush.msra.mxu0 0.0
        %1055 = vmatpush.msra.mxu0 0.0
        %1056 = vmatpush.msra.mxu0 0.0
        %1057 = vmatpush.msra.mxu0 0.0
        %1058 = vmatpush.msra.mxu0 0.0
        %1059 = vmatpush.msra.mxu0 0.0
        %1060 = vmatpush.msra.mxu0 %v825
        %1061 = vmatpush.msra.mxu0 %v823
        %1062 = vmatpush.msra.mxu0 %v821
        %1063 = vmatpush.msra.mxu0 %v819
        %1064 = vmatpush.msra.mxu0 %v817
        %1065 = vmatpush.msra.mxu0 %v815
        %1066 = vmatpush.msra.mxu0 %v813
        %1067 = vmatpush.msra.mxu0 %v811
        %1068 = vmatmul.f32.gmra.mxu0 %v1050
        %v1069 = vpop.f32.mrf.mxu0
        %v1070 = vadd.f32 0.0, %v1069
        %1071 = vdwg.mxu0
        %v1073 = vsel %vm415, %v1070, 0
        %1075 = vmatpush.msra.mxu0 0.0
        %1076 = vmatpush.msra.mxu0 0.0
        %1077 = vmatpush.msra.mxu0 0.0
        %1078 = vmatpush.msra.mxu0 0.0
        %1079 = vmatpush.msra.mxu0 0.0
        %1080 = vmatpush.msra.mxu0 0.0
        %1081 = vmatpush.msra.mxu0 0.0
        %1082 = vmatpush.msra.mxu0 0.0
        %1083 = vmatpush.msra.mxu0 0.0
        %1084 = vmatpush.msra.mxu0 0.0
        %1085 = vmatpush.msra.mxu0 0.0
        %1086 = vmatpush.msra.mxu0 0.0
        %1087 = vmatpush.msra.mxu0 %v366
        %1088 = vmatpush.msra.mxu0 %v365
        %1089 = vmatpush.msra.mxu0 %v364
        %1090 = vmatpush.msra.mxu0 %v363
        %1091 = vmatmul.f32.gmra.mxu0 %v1073
        %v1092 = vpop.f32.mrf.mxu0
        %v1093 = vadd.f32 %v952, %v1092
        %1094 = vdwg.mxu0
        %v1095 = vsel %vm415, %v1093, 0.0
        %1096 = vadd.xlane.f32.xlu0 %v1095
        %v1097 = vpop.xlane.xlu0 %1096
        %v1098 = vmul.f32 %v1097, %v446
        %v1099 = vsub.f32 %v1093, %v1098
        %v1100 = vmul.f32 %v1099, %v1099
        %v1101 = vsel %vm415, %v1100, 0.0
        %1102 = vadd.xlane.f32.xlu0 %v1101
        %v1103 = vpop.xlane.xlu0 %1102
        %v1104 = vmul.f32 %v1103, %v446
        %v1105 = vadd.f32 %v1104, 1e-05
        %v1106 = vrsqrt.pop %v1105
        %v1107 = vmul.f32 %v1106, %v1105
        %v1108 = vmul.f32 %v1107, %v1106
        %v1109 = vmul.f32 0.5, %v1108
        %v1110 = vsub.f32 1.5, %v1109
        %v1111 = vmul.f32 %v1106, %v1110
        %vm1112 = vweird.f32 %v1105
        %vm1113 = vweird.f32 %v1106
        %vm1114 = vmor %vm1112, %vm1113
        %v1115 = vsel %vm1114, %v1106, %v1111
        %v1116 = vmul.f32 %v1099, %v1115
        %v1117 = vmul.f32 %v1116, %v902
        %v1118 = vadd.f32 %v1117, %v904
        %v1120 = vsel %vm415, %v1118, 0
        %1122 = vmatpush.msra.mxu0 0.0
        %1123 = vmatpush.msra.mxu0 0.0
        %1124 = vmatpush.msra.mxu0 0.0
        %1125 = vmatpush.msra.mxu0 0.0
        %1126 = vmatpush.msra.mxu0 0.0
        %1127 = vmatpush.msra.mxu0 0.0
        %1128 = vmatpush.msra.mxu0 0.0
        %1129 = vmatpush.msra.mxu0 0.0
        %1130 = vmatpush.msra.mxu0 0.0
        %1131 = vmatpush.msra.mxu0 0.0
        %1132 = vmatpush.msra.mxu0 0.0
        %1133 = vmatpush.msra.mxu0 0.0
        %1134 = vmatpush.msra.mxu0 %v370
        %1135 = vmatpush.msra.mxu0 %v369
        %1136 = vmatpush.msra.mxu0 %v368
        %1137 = vmatpush.msra.mxu0 %v367
        %1138 = vmatmul.f32.gmra.mxu0 %v1120
        %v1139 = vpop.f32.mrf.mxu0
        %v1140 = vadd.f32 %v906, %v1139
        %1141 = vdwg.mxu0
        %v1142 = vmax.f32 %v1140, 0.0
        %1143 = vmatpush.msra.mxu0 %v390
        %1144 = vmatpush.msra.mxu0 %v389
        %1145 = vmatpush.msra.mxu0 %v388
        %1146 = vmatpush.msra.mxu0 %v387
        %1147 = vmatpush.msra.mxu0 %v386
        %1148 = vmatpush.msra.mxu0 %v385
        %1149 = vmatpush.msra.mxu0 %v384
        %1150 = vmatpush.msra.mxu0 %v383
        %1151 = vmatpush.msra.mxu0 %v382
        %1152 = vmatpush.msra.mxu0 %v381
        %1153 = vmatpush.msra.mxu0 %v380
        %1154 = vmatpush.msra.mxu0 %v379
        %1155 = vmatpush.msra.mxu0 %v378
        %1156 = vmatpush.msra.mxu0 %v377
        %1157 = vmatpush.msra.mxu0 %v376
        %1158 = vmatpush.msra.mxu0 %v375
        %1159 = vmatmul.f32.gmra.mxu0 %v1142
        %v1160 = vpop.f32.mrf.mxu0
        %v1161 = vadd.f32 %v931, %v1160
        %1162 = vdwg.mxu0
        %v1163 = vadd.f32 %v1161, %v1093
        %v1164 = vsel %vm415, %v1163, 0.0
        %1165 = vadd.xlane.f32.xlu0 %v1164
        %v1166 = vpop.xlane.xlu0 %1165
        %v1167 = vmul.f32 %v1166, %v446
        %v1168 = vsub.f32 %v1163, %v1167
        %v1169 = vmul.f32 %v1168, %v1168
        %v1170 = vsel %vm415, %v1169, 0.0
        %1171 = vadd.xlane.f32.xlu0 %v1170
        %v1172 = vpop.xlane.xlu0 %1171
        %v1173 = vmul.f32 %v1172, %v446
        %v1174 = vadd.f32 %v1173, 1e-05
        %v1175 = vrsqrt.pop %v1174
        %v1176 = vmul.f32 %v1175, %v1174
        %v1177 = vmul.f32 %v1176, %v1175
        %v1178 = vmul.f32 0.5, %v1177
        %v1179 = vsub.f32 1.5, %v1178
        %v1180 = vmul.f32 %v1175, %v1179
        %vm1181 = vweird.f32 %v1174
        %vm1182 = vweird.f32 %v1175
        %vm1183 = vmor %vm1181, %vm1182
        %v1184 = vsel %vm1183, %v1175, %v1180
        %v1185 = vmul.f32 %v1168, %v1184
        %v1186 = vmul.f32 %v1185, %v709
        %v1187 = vadd.f32 %v1186, %v711
        %v1189 = vsel %vm415, %v1187, 0
        %1191 = vmatpush.msra.mxu0 0.0
        %1192 = vmatpush.msra.mxu0 0.0
        %1193 = vmatpush.msra.mxu0 0.0
        %1194 = vmatpush.msra.mxu0 0.0
        %1195 = vmatpush.msra.mxu0 0.0
        %1196 = vmatpush.msra.mxu0 0.0
        %1197 = vmatpush.msra.mxu0 0.0
        %1198 = vmatpush.msra.mxu0 0.0
        %1199 = vmatpush.msra.mxu0 0.0
        %1200 = vmatpush.msra.mxu0 0.0
        %1201 = vmatpush.msra.mxu0 0.0
        %1202 = vmatpush.msra.mxu0 0.0
        %1203 = vmatpush.msra.mxu0 %v362
        %1204 = vmatpush.msra.mxu0 %v361
        %1205 = vmatpush.msra.mxu0 %v360
        %1206 = vmatpush.msra.mxu0 %v359
        %1207 = vmatmul.f32.gmra.mxu0 %v1189
        %v1208 = vpop.f32.mrf.mxu0
        %v1209 = vadd.f32 0.0, %v1208
        %1210 = vdwg.mxu0
        %v1212 = vsel %vm415, %v1209, 0
        %1214 = vmatpush.xpose.msra.mxu0 0.0
        %1215 = vmatpush.xpose.msra.mxu0 0.0
        %1216 = vmatpush.xpose.msra.mxu0 0.0
        %1217 = vmatpush.xpose.msra.mxu0 0.0
        %1218 = vmatpush.xpose.msra.mxu0 0.0
        %1219 = vmatpush.xpose.msra.mxu0 0.0
        %1220 = vmatpush.xpose.msra.mxu0 0.0
        %1221 = vmatpush.xpose.msra.mxu0 0.0
        %1222 = vmatpush.xpose.msra.mxu0 %v761
        %1223 = vmatpush.xpose.msra.mxu0 %v758
        %1224 = vmatpush.xpose.msra.mxu0 %v755
        %1225 = vmatpush.xpose.msra.mxu0 %v752
        %1226 = vmatpush.xpose.msra.mxu0 %v749
        %1227 = vmatpush.xpose.msra.mxu0 %v746
        %1228 = vmatpush.xpose.msra.mxu0 %v743
        %1229 = vmatpush.xpose.msra.mxu0 %v740
        %1230 = vmatmul.f32.gmra.mxu0 %v1212
        %v1231 = vpop.f32.mrf.mxu0
        %v1232 = vadd.f32 0.0, %v1231
        %1233 = vdwg.mxu0
        %v1234 = vmul.f32 %v1232, 0.17677669
        %v1235 = vsel %vm784, %v1234, -inf
        %v1236 = vrot.slane %v1235, 4
        %v1237 = vmax.f32 %v1235, %v1236
        %v1238 = vrot.slane %v1237, 2
        %v1239 = vmax.f32 %v1237, %v1238
        %v1240 = vrot.slane %v1239, 1
        %v1241 = vmax.f32 %v1239, %v1240
        %v1242 = vsub.f32 %v1234, %v1241
        %v1243 = vmul.f32 %v1242, 1.442695
        %v1244 = vpow.pop %v1243
        %v1245 = vsel %vm784, %v1244, 0.0
        %v1246 = vrot.slane %v1245, 4
        %v1247 = vadd.f32 %v1245, %v1246
        %v1248 = vrot.slane %v1247, 2
        %v1249 = vadd.f32 %v1247, %v1248
        %v1250 = vrot.slane %v1249, 1
        %v1251 = vadd.f32 %v1249, %v1250
        %v1252 = vrcp.pop %v1251
        %v1253 = vmul.f32 %v1244, %v1252
        %v1254 = vadd.f32 %v1253, 1e-08
        %v1255 = vsel %vm784, %v1254, 0.0
        %1256 = vadd.xlane.f32.xlu0 %v1255
        %v1257 = vpop.xlane.xlu0 %1256
        %v1258 = vrcp.pop %v1257
        %v1259 = vmul.f32 %v1254, %v1258
        %v1261 = vsel %vm784, %v1259, 0
        %1263 = vmatpush.msra.mxu0 0.0
        %1264 = vmatpush.msra.mxu0 0.0
        %1265 = vmatpush.msra.mxu0 0.0
        %1266 = vmatpush.msra.mxu0 0.0
        %1267 = vmatpush.msra.mxu0 0.0
        %1268 = vmatpush.msra.mxu0 0.0
        %1269 = vmatpush.msra.mxu0 0.0
        %1270 = vmatpush.msra.mxu0 0.0
        %1271 = vmatpush.msra.mxu0 %v825
        %1272 = vmatpush.msra.mxu0 %v823
        %1273 = vmatpush.msra.mxu0 %v821
        %1274 = vmatpush.msra.mxu0 %v819
        %1275 = vmatpush.msra.mxu0 %v817
        %1276 = vmatpush.msra.mxu0 %v815
        %1277 = vmatpush.msra.mxu0 %v813
        %1278 = vmatpush.msra.mxu0 %v811
        %1279 = vmatmul.f32.gmra.mxu0 %v1261
        %v1280 = vpop.f32.mrf.mxu0
        %v1281 = vadd.f32 0.0, %v1280
        %1282 = vdwg.mxu0
        %v1284 = vsel %vm415, %v1281, 0
        %1286 = vmatpush.msra.mxu0 0.0
        %1287 = vmatpush.msra.mxu0 0.0
        %1288 = vmatpush.msra.mxu0 0.0
        %1289 = vmatpush.msra.mxu0 0.0
        %1290 = vmatpush.msra.mxu0 0.0
        %1291 = vmatpush.msra.mxu0 0.0
        %1292 = vmatpush.msra.mxu0 0.0
        %1293 = vmatpush.msra.mxu0 0.0
        %1294 = vmatpush.msra.mxu0 0.0
        %1295 = vmatpush.msra.mxu0 0.0
        %1296 = vmatpush.msra.mxu0 0.0
        %1297 = vmatpush.msra.mxu0 0.0
        %1298 = vmatpush.msra.mxu0 %v366
        %1299 = vmatpush.msra.mxu0 %v365
        %1300 = vmatpush.msra.mxu0 %v364
        %1301 = vmatpush.msra.mxu0 %v363
        %1302 = vmatmul.f32.gmra.mxu0 %v1284
        %v1303 = vpop.f32.mrf.mxu0
        %v1304 = vadd.f32 %v1163, %v1303
        %1305 = vdwg.mxu0
        %v1306 = vsel %vm415, %v1304, 0.0
        %1307 = vadd.xlane.f32.xlu0 %v1306
        %v1308 = vpop.xlane.xlu0 %1307
        %v1309 = vmul.f32 %v1308, %v446
        %v1310 = vsub.f32 %v1304, %v1309
        %v1311 = vmul.f32 %v1310, %v1310
        %v1312 = vsel %vm415, %v1311, 0.0
        %1313 = vadd.xlane.f32.xlu0 %v1312
        %v1314 = vpop.xlane.xlu0 %1313
        %v1315 = vmul.f32 %v1314, %v446
        %v1316 = vadd.f32 %v1315, 1e-05
        %v1317 = vrsqrt.pop %v1316
        %v1318 = vmul.f32 %v1317, %v1316
        %v1319 = vmul.f32 %v1318, %v1317
        %v1320 = vmul.f32 0.5, %v1319
        %v1321 = vsub.f32 1.5, %v1320
        %v1322 = vmul.f32 %v1317, %v1321
        %vm1323 = vweird.f32 %v1316
        %vm1324 = vweird.f32 %v1317
        %vm1325 = vmor %vm1323, %vm1324
        %v1326 = vsel %vm1325, %v1317, %v1322
        %v1327 = vmul.f32 %v1310, %v1326
        %v1328 = vmul.f32 %v1327, %v902
        %v1329 = vadd.f32 %v1328, %v904
        %v1331 = vsel %vm415, %v1329, 0
        %1333 = vmatpush.msra.mxu0 0.0
        %1334 = vmatpush.msra.mxu0 0.0
        %1335 = vmatpush.msra.mxu0 0.0
        %1336 = vmatpush.msra.mxu0 0.0
        %1337 = vmatpush.msra.mxu0 0.0
        %1338 = vmatpush.msra.mxu0 0.0
        %1339 = vmatpush.msra.mxu0 0.0
        %1340 = vmatpush.msra.mxu0 0.0
        %1341 = vmatpush.msra.mxu0 0.0
        %1342 = vmatpush.msra.mxu0 0.0
        %1343 = vmatpush.msra.mxu0 0.0
        %1344 = vmatpush.msra.mxu0 0.0
        %1345 = vmatpush.msra.mxu0 %v370
        %1346 = vmatpush.msra.mxu0 %v369
        %1347 = vmatpush.msra.mxu0 %v368
        %1348 = vmatpush.msra.mxu0 %v367
        %1349 = vmatmul.f32.gmra.mxu0 %v1331
        %v1350 = vpop.f32.mrf.mxu0
        %v1351 = vadd.f32 %v906, %v1350
        %1352 = vdwg.mxu0
        %v1353 = vmax.f32 %v1351, 0.0
        %1354 = vmatpush.msra.mxu0 %v390
        %1355 = vmatpush.msra.mxu0 %v389
        %1356 = vmatpush.msra.mxu0 %v388
        %1357 = vmatpush.msra.mxu0 %v387
        %1358 = vmatpush.msra.mxu0 %v386
        %1359 = vmatpush.msra.mxu0 %v385
        %1360 = vmatpush.msra.mxu0 %v384
        %1361 = vmatpush.msra.mxu0 %v383
        %1362 = vmatpush.msra.mxu0 %v382
        %1363 = vmatpush.msra.mxu0 %v381
        %1364 = vmatpush.msra.mxu0 %v380
        %1365 = vmatpush.msra.mxu0 %v379
        %1366 = vmatpush.msra.mxu0 %v378
        %1367 = vmatpush.msra.mxu0 %v377
        %1368 = vmatpush.msra.mxu0 %v376
        %1369 = vmatpush.msra.mxu0 %v375
        %1370 = vmatmul.f32.gmra.mxu0 %v1353
        %v1371 = vpop.f32.mrf.mxu0
        %v1372 = vadd.f32 %v931, %v1371
        %1373 = vdwg.mxu0
        %v1374 = vadd.f32 %v1372, %v1304
        %v1375 = vld [vmem:[#allocation2 + $0x30] sm:$0xff]
        %v1376 = vld [vmem:[#allocation2 + $0x68] sm:$0xff]
        %v1377 = vld [vmem:[#allocation2 + $0xa0] sm:$0xff]
        %v1378 = vld [vmem:[#allocation2 + $0xd8] sm:$0xff]
        %v1379 = vmul.f32 %v1375, %v1375
        %v1380 = vmul.f32 %v1376, %v1376
        %v1381 = vmul.f32 %v1377, %v1377
        %v1382 = vmul.f32 %v1378, %v1378
        %vm1383 = vcmask 130048
        %v1384 = vsel %vm1383, %v1379, 0.0
        %v1385 = vsel %vm1383, %v1380, 0.0
        %v1386 = vadd.f32 %v1384, %v1385
        %v1387 = vsel %vm1383, %v1381, 0.0
        %v1388 = vadd.f32 %v1386, %v1387
        %v1389 = vsel %vm1383, %v1382, 0.0
        %v1390 = vadd.f32 %v1388, %v1389
        %v1391 = vrot.slane %v1390, 4
        %v1392 = vadd.f32 %v1390, %v1391
        %v1393 = vrot.slane %v1392, 2
        %v1394 = vadd.f32 %v1392, %v1393
        %v1395 = vrot.slane %v1394, 1
        %v1396 = vadd.f32 %v1394, %v1395
        %v1398 = vsel %vm415, %v1374, 0
        %1400 = vmatpush.msra.mxu0 0.0
        %1401 = vmatpush.msra.mxu0 0.0
        %1402 = vmatpush.msra.mxu0 0.0
        %1403 = vmatpush.msra.mxu0 0.0
        %1404 = vmatpush.msra.mxu0 0.0
        %1405 = vmatpush.msra.mxu0 0.0
        %1406 = vmatpush.msra.mxu0 0.0
        %1407 = vmatpush.msra.mxu0 0.0
        %1408 = vmatpush.msra.mxu0 0.0
        %1409 = vmatpush.msra.mxu0 0.0
        %1410 = vmatpush.msra.mxu0 0.0
        %1411 = vmatpush.msra.mxu0 0.0
        %1412 = vmatpush.msra.mxu0 %v1378
        %1413 = vmatpush.msra.mxu0 %v1377
        %1414 = vmatpush.msra.mxu0 %v1376
        %1415 = vmatpush.msra.mxu0 %v1375
        %1416 = vmatmul.f32.gmra.mxu0 %v1398
        %v1417 = vpop.f32.mrf.mxu0
        %v1418 = vadd.f32 0.0, %v1417
        %1419 = vdwg.mxu0
        %v1420 = vmul.f32 %v1418, 2.0
        %v1421 = vsub.f32 %v1396, %v1420
        %v1422 = vsel %vm1383, %v1421, inf
        %1423 = vmin.xlane.f32.xlu0 %v1422
        %v1424 = vpop.xlane.xlu0 %1423
        %v1425 = vlaneseq
        %v1426 = vand.u32 %v1425, 127
        %vm1427 = vcmp.eq.f32.partialorder %v1421, %v1424
        %v1428 = vsel %vm1427, %v1426, 16
        %v1429 = vsel %vm1383, %v1428, 2147483647
        %v1430 = vand.u32 %v1429, 65535
        %v1431 = vshra.s32 %v1429, 16
        %v1432 = vcvt.s32.f32 %v1430
        %v1433 = vcvt.s32.f32 %v1431
        %1434 = vmin.xlane.f32.xlu0 %v1433
        %v1435 = vpop.xlane.xlu0 %1434
        %vm1436 = vcmp.eq.f32.partialorder %v1433, %v1435
        %v1437 = vsel %vm1436, %v1432, inf
        %1438 = vmin.xlane.f32.xlu0 %v1437
        %v1439 = vpop.xlane.xlu0 %1438
        %v1440 = vcvt.f32.s32 %v1439
        %v1441 = vcvt.f32.s32 %v1435
        %v1442 = vshll.u32 %v1441, 16
        %v1443 = vadd.s32 %v1442, %v1440
        %vm1444 = vcmp.eq.s32.totalorder %v1426, %v1443
        %v1445 = vsel %vm1444, 1, 0
        %v1446 = vcvt.s32.f32 %v1445
        %v1448 = vsel %vm1383, %v1446, 0
        %v1451 = vsel %vm1383, %v1375, 0
        %v1454 = vsel %vm1383, %v1376, 0
        %v1457 = vsel %vm1383, %v1377, 0
        %v1460 = vsel %vm1383, %v1378, 0
        %1462 = vmatpush.xpose.msra.mxu0 0.0
        %1463 = vmatpush.xpose.msra.mxu0 0.0
        %1464 = vmatpush.xpose.msra.mxu0 0.0
        %1465 = vmatpush.xpose.msra.mxu0 0.0
        %1466 = vmatpush.xpose.msra.mxu0 0.0
        %1467 = vmatpush.xpose.msra.mxu0 0.0
        %1468 = vmatpush.xpose.msra.mxu0 0.0
        %1469 = vmatpush.xpose.msra.mxu0 0.0
        %1470 = vmatpush.xpose.msra.mxu0 0.0
        %1471 = vmatpush.xpose.msra.mxu0 0.0
        %1472 = vmatpush.xpose.msra.mxu0 0.0
        %1473 = vmatpush.xpose.msra.mxu0 0.0
        %1474 = vmatpush.xpose.msra.mxu0 %v1460
        %1475 = vmatpush.xpose.msra.mxu0 %v1457
        %1476 = vmatpush.xpose.msra.mxu0 %v1454
        %1477 = vmatpush.xpose.msra.mxu0 %v1451
        %1478 = vmatmul.f32.gmra.mxu0 %v1448
        %v1479 = vpop.f32.mrf.mxu0
        %v1480 = vadd.f32 0.0, %v1479
        %1481 = vdwg.mxu0
        %v1482 = vsub.f32 %v1374, %v1480
        %v1483 = vmul.f32 %v1482, %v1482
        %v1484 = vsel %vm415, %v1483, 0.0
        %1485 = vadd.xlane.f32.xlu0 %v1484
        %v1486 = vpop.xlane.xlu0 %1485
        %v1487 = vmul.f32 %v1486, %v446
        %v1488 = vmul.u32 %v1443, 8
        %vm1489 = vcmp.ge.s32.totalorder %v1426, %v1488
        %v1490 = vadd.s32 %v1488, 8
        %vm1491 = vcmp.lt.s32.totalorder %v1426, %v1490
        %vm1492 = vmand %vm1489, %vm1491
        %v1493 = vsel %vm1492, 1, 0
        %v1494 = vcvt.s32.f32 %v1493
        %1495 = vmatpush.msra.mxu0 0.0
        %1496 = vmatpush.msra.mxu0 0.0
        %1497 = vmatpush.msra.mxu0 0.0
        %1498 = vmatpush.msra.mxu0 0.0
        %1499 = vmatpush.msra.mxu0 0.0
        %1500 = vmatpush.msra.mxu0 0.0
        %1501 = vmatpush.msra.mxu0 0.0
        %1502 = vmatpush.msra.mxu0 0.0
        %1503 = vmatpush.msra.mxu0 0.0
        %1504 = vmatpush.msra.mxu0 0.0
        %1505 = vmatpush.msra.mxu0 0.0
        %1506 = vmatpush.msra.mxu0 0.0
        %1507 = vmatpush.msra.mxu0 %v374
        %1508 = vmatpush.msra.mxu0 %v373
        %1509 = vmatpush.msra.mxu0 %v372
        %1510 = vmatpush.msra.mxu0 %v371
        %1511 = vmatmul.f32.gmra.mxu0 %v908
        %v1512 = vpop.f32.mrf.mxu0
        %v1513 = vadd.f32 0.0, %v1512
        %1514 = vdwg.mxu0
        %v1515 = vmul.f32 %v1513, %v1494
        %v1516 = vld [vmem:[#allocation4] sm:$0xff]
        %v1517 = vld [vmem:[#allocation4 + $0x20] sm:$0xff]
        %v1518 = vld [vmem:[#allocation4 + $0x40] sm:$0xff]
        %v1519 = vld [vmem:[#allocation4 + $0x60] sm:$0xff]
        %v1520 = vld [vmem:[#allocation4 + $0x80] sm:$0xff]
        %v1521 = vld [vmem:[#allocation4 + $0xa0] sm:$0xff]
        %v1522 = vld [vmem:[#allocation4 + $0xc0] sm:$0xff]
        %v1523 = vld [vmem:[#allocation4 + $0xe0] sm:$0xff]
        %v1524 = vld [vmem:[#allocation4 + $0x100] sm:$0xff]
        %v1525 = vld [vmem:[#allocation4 + $0x120] sm:$0xff]
        %v1526 = vld [vmem:[#allocation4 + $0x140] sm:$0xff]
        %v1527 = vld [vmem:[#allocation4 + $0x160] sm:$0xff]
        %v1528 = vld [vmem:[#allocation4 + $0x180] sm:$0xff]
        %v1529 = vld [vmem:[#allocation4 + $0x1a0] sm:$0xff]
        %v1530 = vld [vmem:[#allocation4 + $0x1c0] sm:$0xff]
        %v1531 = vld [vmem:[#allocation4 + $0x1e0] sm:$0xff]
        %1532 = vmatpush.msra.mxu0 %v1531
        %1533 = vmatpush.msra.mxu0 %v1530
        %1534 = vmatpush.msra.mxu0 %v1529
        %1535 = vmatpush.msra.mxu0 %v1528
        %1536 = vmatpush.msra.mxu0 %v1527
        %1537 = vmatpush.msra.mxu0 %v1526
        %1538 = vmatpush.msra.mxu0 %v1525
        %1539 = vmatpush.msra.mxu0 %v1524
        %1540 = vmatpush.msra.mxu0 %v1523
        %1541 = vmatpush.msra.mxu0 %v1522
        %1542 = vmatpush.msra.mxu0 %v1521
        %1543 = vmatpush.msra.mxu0 %v1520
        %1544 = vmatpush.msra.mxu0 %v1519
        %1545 = vmatpush.msra.mxu0 %v1518
        %1546 = vmatpush.msra.mxu0 %v1517
        %1547 = vmatpush.msra.mxu0 %v1516
        %1548 = vmatmul.f32.gmra.mxu0 %v1515
        %v1549 = vpop.f32.mrf.mxu0
        %v1550 = vadd.f32 0.0, %v1549
        %1551 = vdwg.mxu0
        %v1552 = vadd.f32 %v928, %v1550
        %v1553 = vmax.f32 %v1552, 0.0
        %1554 = vmatpush.msra.mxu0 %v390
        %1555 = vmatpush.msra.mxu0 %v389
        %1556 = vmatpush.msra.mxu0 %v388
        %1557 = vmatpush.msra.mxu0 %v387
        %1558 = vmatpush.msra.mxu0 %v386
        %1559 = vmatpush.msra.mxu0 %v385
        %1560 = vmatpush.msra.mxu0 %v384
        %1561 = vmatpush.msra.mxu0 %v383
        %1562 = vmatpush.msra.mxu0 %v382
        %1563 = vmatpush.msra.mxu0 %v381
        %1564 = vmatpush.msra.mxu0 %v380
        %1565 = vmatpush.msra.mxu0 %v379
        %1566 = vmatpush.msra.mxu0 %v378
        %1567 = vmatpush.msra.mxu0 %v377
        %1568 = vmatpush.msra.mxu0 %v376
        %1569 = vmatpush.msra.mxu0 %v375
        %1570 = vmatmul.f32.gmra.mxu0 %v1553
        %v1571 = vpop.f32.mrf.mxu0
        %v1572 = vadd.f32 %v931, %v1571
        %1573 = vdwg.mxu0
        %v1574 = vld [vmem:[#allocation4 + $0x8] sm:$0xff]
        %v1575 = vld [vmem:[#allocation4 + $0x28] sm:$0xff]
        %v1576 = vld [vmem:[#allocation4 + $0x48] sm:$0xff]
        %v1577 = vld [vmem:[#allocation4 + $0x68] sm:$0xff]
        %v1578 = vld [vmem:[#allocation4 + $0x88] sm:$0xff]
        %v1579 = vld [vmem:[#allocation4 + $0xa8] sm:$0xff]
        %v1580 = vld [vmem:[#allocation4 + $0xc8] sm:$0xff]
        %v1581 = vld [vmem:[#allocation4 + $0xe8] sm:$0xff]
        %v1582 = vld [vmem:[#allocation4 + $0x108] sm:$0xff]
        %v1583 = vld [vmem:[#allocation4 + $0x128] sm:$0xff]
        %v1584 = vld [vmem:[#allocation4 + $0x148] sm:$0xff]
        %v1585 = vld [vmem:[#allocation4 + $0x168] sm:$0xff]
        %v1586 = vld [vmem:[#allocation4 + $0x188] sm:$0xff]
        %v1587 = vld [vmem:[#allocation4 + $0x1a8] sm:$0xff]
        %v1588 = vld [vmem:[#allocation4 + $0x1c8] sm:$0xff]
        %v1589 = vld [vmem:[#allocation4 + $0x1e8] sm:$0xff]
        %1590 = vmatpush.msra.mxu0 %v1589
        %1591 = vmatpush.msra.mxu0 %v1588
        %1592 = vmatpush.msra.mxu0 %v1587
        %1593 = vmatpush.msra.mxu0 %v1586
        %1594 = vmatpush.msra.mxu0 %v1585
        %1595 = vmatpush.msra.mxu0 %v1584
        %1596 = vmatpush.msra.mxu0 %v1583
        %1597 = vmatpush.msra.mxu0 %v1582
        %1598 = vmatpush.msra.mxu0 %v1581
        %1599 = vmatpush.msra.mxu0 %v1580
        %1600 = vmatpush.msra.mxu0 %v1579
        %1601 = vmatpush.msra.mxu0 %v1578
        %1602 = vmatpush.msra.mxu0 %v1577
        %1603 = vmatpush.msra.mxu0 %v1576
        %1604 = vmatpush.msra.mxu0 %v1575
        %1605 = vmatpush.msra.mxu0 %v1574
        %1606 = vmatmul.f32.gmra.mxu0 %v1553
        %v1607 = vpop.f32.mrf.mxu0
        %v1608 = vadd.f32 0.0, %v1607
        %1609 = vdwg.mxu0
        %v1610 = vmul.f32 %v1608, %v1494
        %1611 = vmatpush.msra.mxu0 %v406
        %1612 = vmatpush.msra.mxu0 %v405
        %1613 = vmatpush.msra.mxu0 %v404
        %1614 = vmatpush.msra.mxu0 %v403
        %1615 = vmatpush.msra.mxu0 %v402
        %1616 = vmatpush.msra.mxu0 %v401
        %1617 = vmatpush.msra.mxu0 %v400
        %1618 = vmatpush.msra.mxu0 %v399
        %1619 = vmatpush.msra.mxu0 %v398
        %1620 = vmatpush.msra.mxu0 %v397
        %1621 = vmatpush.msra.mxu0 %v396
        %1622 = vmatpush.msra.mxu0 %v395
        %1623 = vmatpush.msra.mxu0 %v394
        %1624 = vmatpush.msra.mxu0 %v393
        %1625 = vmatpush.msra.mxu0 %v392
        %1626 = vmatpush.msra.mxu0 %v391
        %1627 = vmatmul.f32.gmra.mxu0 %v1610
        %v1628 = vpop.f32.mrf.mxu0
        %v1629 = vadd.f32 0.0, %v1628
        %1630 = vdwg.mxu0
        %v1631 = vadd.f32 %v1572, %v1629
        %v1632 = vadd.f32 %v1631, %v878
        %v1633 = vsel %vm415, %v1632, 0.0
        %1634 = vadd.xlane.f32.xlu0 %v1633
        %v1635 = vpop.xlane.xlu0 %1634
        %v1636 = vmul.f32 %v1635, %v446
        %v1637 = vsub.f32 %v1632, %v1636
        %v1638 = vmul.f32 %v1637, %v1637
        %v1639 = vsel %vm415, %v1638, 0.0
        %1640 = vadd.xlane.f32.xlu0 %v1639
        %v1641 = vpop.xlane.xlu0 %1640
        %v1642 = vmul.f32 %v1641, %v446
        %v1643 = vadd.f32 %v1642, 1e-05
        %v1644 = vrsqrt.pop %v1643
        %v1645 = vmul.f32 %v1644, %v1643
        %v1646 = vmul.f32 %v1645, %v1644
        %v1647 = vmul.f32 0.5, %v1646
        %v1648 = vsub.f32 1.5, %v1647
        %v1649 = vmul.f32 %v1644, %v1648
        %vm1650 = vweird.f32 %v1643
        %vm1651 = vweird.f32 %v1644
        %vm1652 = vmor %vm1650, %vm1651
        %v1653 = vsel %vm1652, %v1644, %v1649
        %v1654 = vmul.f32 %v1637, %v1653
        %v1655 = vmul.f32 %v1654, %v709
        %v1656 = vadd.f32 %v1655, %v711
        %v1658 = vsel %vm415, %v1656, 0
        %1660 = vmatpush.msra.mxu0 0.0
        %1661 = vmatpush.msra.mxu0 0.0
        %1662 = vmatpush.msra.mxu0 0.0
        %1663 = vmatpush.msra.mxu0 0.0
        %1664 = vmatpush.msra.mxu0 0.0
        %1665 = vmatpush.msra.mxu0 0.0
        %1666 = vmatpush.msra.mxu0 0.0
        %1667 = vmatpush.msra.mxu0 0.0
        %1668 = vmatpush.msra.mxu0 0.0
        %1669 = vmatpush.msra.mxu0 0.0
        %1670 = vmatpush.msra.mxu0 0.0
        %1671 = vmatpush.msra.mxu0 0.0
        %1672 = vmatpush.msra.mxu0 %v362
        %1673 = vmatpush.msra.mxu0 %v361
        %1674 = vmatpush.msra.mxu0 %v360
        %1675 = vmatpush.msra.mxu0 %v359
        %1676 = vmatmul.f32.gmra.mxu0 %v1658
        %v1677 = vpop.f32.mrf.mxu0
        %v1678 = vadd.f32 0.0, %v1677
        %1679 = vdwg.mxu0
        %v1681 = vsel %vm415, %v1678, 0
        %1683 = vmatpush.xpose.msra.mxu0 0.0
        %1684 = vmatpush.xpose.msra.mxu0 0.0
        %1685 = vmatpush.xpose.msra.mxu0 0.0
        %1686 = vmatpush.xpose.msra.mxu0 0.0
        %1687 = vmatpush.xpose.msra.mxu0 0.0
        %1688 = vmatpush.xpose.msra.mxu0 0.0
        %1689 = vmatpush.xpose.msra.mxu0 0.0
        %1690 = vmatpush.xpose.msra.mxu0 0.0
        %1691 = vmatpush.xpose.msra.mxu0 %v761
        %1692 = vmatpush.xpose.msra.mxu0 %v758
        %1693 = vmatpush.xpose.msra.mxu0 %v755
        %1694 = vmatpush.xpose.msra.mxu0 %v752
        %1695 = vmatpush.xpose.msra.mxu0 %v749
        %1696 = vmatpush.xpose.msra.mxu0 %v746
        %1697 = vmatpush.xpose.msra.mxu0 %v743
        %1698 = vmatpush.xpose.msra.mxu0 %v740
        %1699 = vmatmul.f32.gmra.mxu0 %v1681
        %v1700 = vpop.f32.mrf.mxu0
        %v1701 = vadd.f32 0.0, %v1700
        %1702 = vdwg.mxu0
        %v1703 = vmul.f32 %v1701, 0.17677669
        %v1704 = vsel %vm784, %v1703, -inf
        %v1705 = vrot.slane %v1704, 4
        %v1706 = vmax.f32 %v1704, %v1705
        %v1707 = vrot.slane %v1706, 2
        %v1708 = vmax.f32 %v1706, %v1707
        %v1709 = vrot.slane %v1708, 1
        %v1710 = vmax.f32 %v1708, %v1709
        %v1711 = vsub.f32 %v1703, %v1710
        %v1712 = vmul.f32 %v1711, 1.442695
        %v1713 = vpow.pop %v1712
        %v1714 = vsel %vm784, %v1713, 0.0
        %v1715 = vrot.slane %v1714, 4
        %v1716 = vadd.f32 %v1714, %v1715
        %v1717 = vrot.slane %v1716, 2
        %v1718 = vadd.f32 %v1716, %v1717
        %v1719 = vrot.slane %v1718, 1
        %v1720 = vadd.f32 %v1718, %v1719
        %v1721 = vrcp.pop %v1720
        %v1722 = vmul.f32 %v1713, %v1721
        %v1723 = vadd.f32 %v1722, 1e-08
        %v1724 = vsel %vm784, %v1723, 0.0
        %1725 = vadd.xlane.f32.xlu0 %v1724
        %v1726 = vpop.xlane.xlu0 %1725
        %v1727 = vrcp.pop %v1726
        %v1728 = vmul.f32 %v1723, %v1727
        %v1730 = vsel %vm784, %v1728, 0
        %1732 = vmatpush.msra.mxu0 0.0
        %1733 = vmatpush.msra.mxu0 0.0
        %1734 = vmatpush.msra.mxu0 0.0
        %1735 = vmatpush.msra.mxu0 0.0
        %1736 = vmatpush.msra.mxu0 0.0
        %1737 = vmatpush.msra.mxu0 0.0
        %1738 = vmatpush.msra.mxu0 0.0
        %1739 = vmatpush.msra.mxu0 0.0
        %1740 = vmatpush.msra.mxu0 %v825
        %1741 = vmatpush.msra.mxu0 %v823
        %1742 = vmatpush.msra.mxu0 %v821
        %1743 = vmatpush.msra.mxu0 %v819
        %1744 = vmatpush.msra.mxu0 %v817
        %1745 = vmatpush.msra.mxu0 %v815
        %1746 = vmatpush.msra.mxu0 %v813
        %1747 = vmatpush.msra.mxu0 %v811
        %1748 = vmatmul.f32.gmra.mxu0 %v1730
        %v1749 = vpop.f32.mrf.mxu0
        %v1750 = vadd.f32 0.0, %v1749
        %1751 = vdwg.mxu0
        %v1753 = vsel %vm415, %v1750, 0
        %1755 = vmatpush.msra.mxu0 0.0
        %1756 = vmatpush.msra.mxu0 0.0
        %1757 = vmatpush.msra.mxu0 0.0
        %1758 = vmatpush.msra.mxu0 0.0
        %1759 = vmatpush.msra.mxu0 0.0
        %1760 = vmatpush.msra.mxu0 0.0
        %1761 = vmatpush.msra.mxu0 0.0
        %1762 = vmatpush.msra.mxu0 0.0
        %1763 = vmatpush.msra.mxu0 0.0
        %1764 = vmatpush.msra.mxu0 0.0
        %1765 = vmatpush.msra.mxu0 0.0
        %1766 = vmatpush.msra.mxu0 0.0
        %1767 = vmatpush.msra.mxu0 %v366
        %1768 = vmatpush.msra.mxu0 %v365
        %1769 = vmatpush.msra.mxu0 %v364
        %1770 = vmatpush.msra.mxu0 %v363
        %1771 = vmatmul.f32.gmra.mxu0 %v1753
        %v1772 = vpop.f32.mrf.mxu0
        %v1773 = vadd.f32 %v1632, %v1772
        %1774 = vdwg.mxu0
        %v1775 = vsel %vm415, %v1773, 0.0
        %1776 = vadd.xlane.f32.xlu0 %v1775
        %v1777 = vpop.xlane.xlu0 %1776
        %v1778 = vmul.f32 %v1777, %v446
        %v1779 = vsub.f32 %v1773, %v1778
        %v1780 = vmul.f32 %v1779, %v1779
        %v1781 = vsel %vm415, %v1780, 0.0
        %1782 = vadd.xlane.f32.xlu0 %v1781
        %v1783 = vpop.xlane.xlu0 %1782
        %v1784 = vmul.f32 %v1783, %v446
        %v1785 = vadd.f32 %v1784, 1e-05
        %v1786 = vrsqrt.pop %v1785
        %v1787 = vmul.f32 %v1786, %v1785
        %v1788 = vmul.f32 %v1787, %v1786
        %v1789 = vmul.f32 0.5, %v1788
        %v1790 = vsub.f32 1.5, %v1789
        %v1791 = vmul.f32 %v1786, %v1790
        %vm1792 = vweird.f32 %v1785
        %vm1793 = vweird.f32 %v1786
        %vm1794 = vmor %vm1792, %vm1793
        %v1795 = vsel %vm1794, %v1786, %v1791
        %v1796 = vmul.f32 %v1779, %v1795
        %v1797 = vmul.f32 %v1796, %v902
        %v1798 = vadd.f32 %v1797, %v904
        %v1800 = vsel %vm415, %v1798, 0
        %1802 = vmatpush.msra.mxu0 0.0
        %1803 = vmatpush.msra.mxu0 0.0
        %1804 = vmatpush.msra.mxu0 0.0
        %1805 = vmatpush.msra.mxu0 0.0
        %1806 = vmatpush.msra.mxu0 0.0
        %1807 = vmatpush.msra.mxu0 0.0
        %1808 = vmatpush.msra.mxu0 0.0
        %1809 = vmatpush.msra.mxu0 0.0
        %1810 = vmatpush.msra.mxu0 0.0
        %1811 = vmatpush.msra.mxu0 0.0
        %1812 = vmatpush.msra.mxu0 0.0
        %1813 = vmatpush.msra.mxu0 0.0
        %1814 = vmatpush.msra.mxu0 %v370
        %1815 = vmatpush.msra.mxu0 %v369
        %1816 = vmatpush.msra.mxu0 %v368
        %1817 = vmatpush.msra.mxu0 %v367
        %1818 = vmatmul.f32.gmra.mxu0 %v1800
        %v1819 = vpop.f32.mrf.mxu0
        %v1820 = vadd.f32 %v906, %v1819
        %1821 = vdwg.mxu0
        %1822 = vmatpush.msra.mxu0 0.0
        %1823 = vmatpush.msra.mxu0 0.0
        %1824 = vmatpush.msra.mxu0 0.0
        %1825 = vmatpush.msra.mxu0 0.0
        %1826 = vmatpush.msra.mxu0 0.0
        %1827 = vmatpush.msra.mxu0 0.0
        %1828 = vmatpush.msra.mxu0 0.0
        %1829 = vmatpush.msra.mxu0 0.0
        %1830 = vmatpush.msra.mxu0 0.0
        %1831 = vmatpush.msra.mxu0 0.0
        %1832 = vmatpush.msra.mxu0 0.0
        %1833 = vmatpush.msra.mxu0 0.0
        %1834 = vmatpush.msra.mxu0 %v374
        %1835 = vmatpush.msra.mxu0 %v373
        %1836 = vmatpush.msra.mxu0 %v372
        %1837 = vmatpush.msra.mxu0 %v371
        %1838 = vmatmul.f32.gmra.mxu0 %v1800
        %v1839 = vpop.f32.mrf.mxu0
        %v1840 = vadd.f32 0.0, %v1839
        %1841 = vdwg.mxu0
        %v1842 = vmul.f32 %v1840, %v1494
        %1843 = vmatpush.msra.mxu0 %v1531
        %1844 = vmatpush.msra.mxu0 %v1530
        %1845 = vmatpush.msra.mxu0 %v1529
        %1846 = vmatpush.msra.mxu0 %v1528
        %1847 = vmatpush.msra.mxu0 %v1527
        %1848 = vmatpush.msra.mxu0 %v1526
        %1849 = vmatpush.msra.mxu0 %v1525
        %1850 = vmatpush.msra.mxu0 %v1524
        %1851 = vmatpush.msra.mxu0 %v1523
        %1852 = vmatpush.msra.mxu0 %v1522
        %1853 = vmatpush.msra.mxu0 %v1521
        %1854 = vmatpush.msra.mxu0 %v1520
        %1855 = vmatpush.msra.mxu0 %v1519
        %1856 = vmatpush.msra.mxu0 %v1518
        %1857 = vmatpush.msra.mxu0 %v1517
        %1858 = vmatpush.msra.mxu0 %v1516
        %1859 = vmatmul.f32.gmra.mxu0 %v1842
        %v1860 = vpop.f32.mrf.mxu0
        %v1861 = vadd.f32 0.0, %v1860
        %1862 = vdwg.mxu0
        %v1863 = vadd.f32 %v1820, %v1861
        %v1864 = vmax.f32 %v1863, 0.0
        %1865 = vmatpush.msra.mxu0 %v390
        %1866 = vmatpush.msra.mxu0 %v389
        %1867 = vmatpush.msra.mxu0 %v388
        %1868 = vmatpush.msra.mxu0 %v387
        %1869 = vmatpush.msra.mxu0 %v386
        %1870 = vmatpush.msra.mxu0 %v385
        %1871 = vmatpush.msra.mxu0 %v384
        %1872 = vmatpush.msra.mxu0 %v383
        %1873 = vmatpush.msra.mxu0 %v382
        %1874 = vmatpush.msra.mxu0 %v381
        %1875 = vmatpush.msra.mxu0 %v380
        %1876 = vmatpush.msra.mxu0 %v379
        %1877 = vmatpush.msra.mxu0 %v378
        %1878 = vmatpush.msra.mxu0 %v377
        %1879 = vmatpush.msra.mxu0 %v376
        %1880 = vmatpush.msra.mxu0 %v375
        %1881 = vmatmul.f32.gmra.mxu0 %v1864
        %v1882 = vpop.f32.mrf.mxu0
        %v1883 = vadd.f32 %v931, %v1882
        %1884 = vdwg.mxu0
        %1885 = vmatpush.msra.mxu0 %v1589
        %1886 = vmatpush.msra.mxu0 %v1588
        %1887 = vmatpush.msra.mxu0 %v1587
        %1888 = vmatpush.msra.mxu0 %v1586
        %1889 = vmatpush.msra.mxu0 %v1585
        %1890 = vmatpush.msra.mxu0 %v1584
        %1891 = vmatpush.msra.mxu0 %v1583
        %1892 = vmatpush.msra.mxu0 %v1582
        %1893 = vmatpush.msra.mxu0 %v1581
        %1894 = vmatpush.msra.mxu0 %v1580
        %1895 = vmatpush.msra.mxu0 %v1579
        %1896 = vmatpush.msra.mxu0 %v1578
        %1897 = vmatpush.msra.mxu0 %v1577
        %1898 = vmatpush.msra.mxu0 %v1576
        %1899 = vmatpush.msra.mxu0 %v1575
        %1900 = vmatpush.msra.mxu0 %v1574
        %1901 = vmatmul.f32.gmra.mxu0 %v1864
        %v1902 = vpop.f32.mrf.mxu0
        %v1903 = vadd.f32 0.0, %v1902
        %1904 = vdwg.mxu0
        %v1905 = vmul.f32 %v1903, %v1494
        %1906 = vmatpush.msra.mxu0 %v406
        %1907 = vmatpush.msra.mxu0 %v405
        %1908 = vmatpush.msra.mxu0 %v404
        %1909 = vmatpush.msra.mxu0 %v403
        %1910 = vmatpush.msra.mxu0 %v402
        %1911 = vmatpush.msra.mxu0 %v401
        %1912 = vmatpush.msra.mxu0 %v400
        %1913 = vmatpush.msra.mxu0 %v399
        %1914 = vmatpush.msra.mxu0 %v398
        %1915 = vmatpush.msra.mxu0 %v397
        %1916 = vmatpush.msra.mxu0 %v396
        %1917 = vmatpush.msra.mxu0 %v395
        %1918 = vmatpush.msra.mxu0 %v394
        %1919 = vmatpush.msra.mxu0 %v393
        %1920 = vmatpush.msra.mxu0 %v392
        %1921 = vmatpush.msra.mxu0 %v391
        %1922 = vmatmul.f32.gmra.mxu0 %v1905
        %v1923 = vpop.f32.mrf.mxu0
        %v1924 = vadd.f32 0.0, %v1923
        %1925 = vdwg.mxu0
        %v1926 = vadd.f32 %v1883, %v1924
        %v1927 = vadd.f32 %v1926, %v1773
        %v1928 = vsel %vm415, %v1927, 0.0
        %1929 = vadd.xlane.f32.xlu0 %v1928
        %v1930 = vpop.xlane.xlu0 %1929
        %v1931 = vmul.f32 %v1930, %v446
        %v1932 = vsub.f32 %v1927, %v1931
        %v1933 = vmul.f32 %v1932, %v1932
        %v1934 = vsel %vm415, %v1933, 0.0
        %1935 = vadd.xlane.f32.xlu0 %v1934
        %v1936 = vpop.xlane.xlu0 %1935
        %v1937 = vmul.f32 %v1936, %v446
        %v1938 = vadd.f32 %v1937, 1e-05
        %v1939 = vrsqrt.pop %v1938
        %v1940 = vmul.f32 %v1939, %v1938
        %v1941 = vmul.f32 %v1940, %v1939
        %v1942 = vmul.f32 0.5, %v1941
        %v1943 = vsub.f32 1.5, %v1942
        %v1944 = vmul.f32 %v1939, %v1943
        %vm1945 = vweird.f32 %v1938
        %vm1946 = vweird.f32 %v1939
        %vm1947 = vmor %vm1945, %vm1946
        %v1948 = vsel %vm1947, %v1939, %v1944
        %v1949 = vmul.f32 %v1932, %v1948
        %v1950 = vmul.f32 %v1949, %v709
        %v1951 = vadd.f32 %v1950, %v711
        %v1953 = vsel %vm415, %v1951, 0
        %1955 = vmatpush.msra.mxu0 0.0
        %1956 = vmatpush.msra.mxu0 0.0
        %1957 = vmatpush.msra.mxu0 0.0
        %1958 = vmatpush.msra.mxu0 0.0
        %1959 = vmatpush.msra.mxu0 0.0
        %1960 = vmatpush.msra.mxu0 0.0
        %1961 = vmatpush.msra.mxu0 0.0
        %1962 = vmatpush.msra.mxu0 0.0
        %1963 = vmatpush.msra.mxu0 0.0
        %1964 = vmatpush.msra.mxu0 0.0
        %1965 = vmatpush.msra.mxu0 0.0
        %1966 = vmatpush.msra.mxu0 0.0
        %1967 = vmatpush.msra.mxu0 %v362
        %1968 = vmatpush.msra.mxu0 %v361
        %1969 = vmatpush.msra.mxu0 %v360
        %1970 = vmatpush.msra.mxu0 %v359
        %1971 = vmatmul.f32.gmra.mxu0 %v1953
        %v1972 = vpop.f32.mrf.mxu0
        %v1973 = vadd.f32 0.0, %v1972
        %1974 = vdwg.mxu0
        %v1976 = vsel %vm415, %v1973, 0
        %1978 = vmatpush.xpose.msra.mxu0 0.0
        %1979 = vmatpush.xpose.msra.mxu0 0.0
        %1980 = vmatpush.xpose.msra.mxu0 0.0
        %1981 = vmatpush.xpose.msra.mxu0 0.0
        %1982 = vmatpush.xpose.msra.mxu0 0.0
        %1983 = vmatpush.xpose.msra.mxu0 0.0
        %1984 = vmatpush.xpose.msra.mxu0 0.0
        %1985 = vmatpush.xpose.msra.mxu0 0.0
        %1986 = vmatpush.xpose.msra.mxu0 %v761
        %1987 = vmatpush.xpose.msra.mxu0 %v758
        %1988 = vmatpush.xpose.msra.mxu0 %v755
        %1989 = vmatpush.xpose.msra.mxu0 %v752
        %1990 = vmatpush.xpose.msra.mxu0 %v749
        %1991 = vmatpush.xpose.msra.mxu0 %v746
        %1992 = vmatpush.xpose.msra.mxu0 %v743
        %1993 = vmatpush.xpose.msra.mxu0 %v740
        %1994 = vmatmul.f32.gmra.mxu0 %v1976
        %v1995 = vpop.f32.mrf.mxu0
        %v1996 = vadd.f32 0.0, %v1995
        %1997 = vdwg.mxu0
        %v1998 = vmul.f32 %v1996, 0.17677669
        %v1999 = vsel %vm784, %v1998, -inf
        %v2000 = vrot.slane %v1999, 4
        %v2001 = vmax.f32 %v1999, %v2000
        %v2002 = vrot.slane %v2001, 2
        %v2003 = vmax.f32 %v2001, %v2002
        %v2004 = vrot.slane %v2003, 1
        %v2005 = vmax.f32 %v2003, %v2004
        %v2006 = vsub.f32 %v1998, %v2005
        %v2007 = vmul.f32 %v2006, 1.442695
        %v2008 = vpow.pop %v2007
        %v2009 = vsel %vm784, %v2008, 0.0
        %v2010 = vrot.slane %v2009, 4
        %v2011 = vadd.f32 %v2009, %v2010
        %v2012 = vrot.slane %v2011, 2
        %v2013 = vadd.f32 %v2011, %v2012
        %v2014 = vrot.slane %v2013, 1
        %v2015 = vadd.f32 %v2013, %v2014
        %v2016 = vrcp.pop %v2015
        %v2017 = vmul.f32 %v2008, %v2016
        %v2018 = vadd.f32 %v2017, 1e-08
        %v2019 = vsel %vm784, %v2018, 0.0
        %2020 = vadd.xlane.f32.xlu0 %v2019
        %v2021 = vpop.xlane.xlu0 %2020
        %v2022 = vrcp.pop %v2021
        %v2023 = vmul.f32 %v2018, %v2022
        %v2025 = vsel %vm784, %v2023, 0
        %2027 = vmatpush.msra.mxu0 0.0
        %2028 = vmatpush.msra.mxu0 0.0
        %2029 = vmatpush.msra.mxu0 0.0
        %2030 = vmatpush.msra.mxu0 0.0
        %2031 = vmatpush.msra.mxu0 0.0
        %2032 = vmatpush.msra.mxu0 0.0
        %2033 = vmatpush.msra.mxu0 0.0
        %2034 = vmatpush.msra.mxu0 0.0
        %2035 = vmatpush.msra.mxu0 %v825
        %2036 = vmatpush.msra.mxu0 %v823
        %2037 = vmatpush.msra.mxu0 %v821
        %2038 = vmatpush.msra.mxu0 %v819
        %2039 = vmatpush.msra.mxu0 %v817
        %2040 = vmatpush.msra.mxu0 %v815
        %2041 = vmatpush.msra.mxu0 %v813
        %2042 = vmatpush.msra.mxu0 %v811
        %2043 = vmatmul.f32.gmra.mxu0 %v2025
        %v2044 = vpop.f32.mrf.mxu0
        %v2045 = vadd.f32 0.0, %v2044
        %2046 = vdwg.mxu0
        %v2048 = vsel %vm415, %v2045, 0
        %2050 = vmatpush.msra.mxu0 0.0
        %2051 = vmatpush.msra.mxu0 0.0
        %2052 = vmatpush.msra.mxu0 0.0
        %2053 = vmatpush.msra.mxu0 0.0
        %2054 = vmatpush.msra.mxu0 0.0
        %2055 = vmatpush.msra.mxu0 0.0
        %2056 = vmatpush.msra.mxu0 0.0
        %2057 = vmatpush.msra.mxu0 0.0
        %2058 = vmatpush.msra.mxu0 0.0
        %2059 = vmatpush.msra.mxu0 0.0
        %2060 = vmatpush.msra.mxu0 0.0
        %2061 = vmatpush.msra.mxu0 0.0
        %2062 = vmatpush.msra.mxu0 %v366
        %2063 = vmatpush.msra.mxu0 %v365
        %2064 = vmatpush.msra.mxu0 %v364
        %2065 = vmatpush.msra.mxu0 %v363
        %2066 = vmatmul.f32.gmra.mxu0 %v2048
        %v2067 = vpop.f32.mrf.mxu0
        %v2068 = vadd.f32 %v1927, %v2067
        %2069 = vdwg.mxu0
        %v2070 = vsel %vm415, %v2068, 0.0
        %2071 = vadd.xlane.f32.xlu0 %v2070
        %v2072 = vpop.xlane.xlu0 %2071
        %v2073 = vmul.f32 %v2072, %v446
        %v2074 = vsub.f32 %v2068, %v2073
        %v2075 = vmul.f32 %v2074, %v2074
        %v2076 = vsel %vm415, %v2075, 0.0
        %2077 = vadd.xlane.f32.xlu0 %v2076
        %v2078 = vpop.xlane.xlu0 %2077
        %v2079 = vmul.f32 %v2078, %v446
        %v2080 = vadd.f32 %v2079, 1e-05
        %v2081 = vrsqrt.pop %v2080
        %v2082 = vmul.f32 %v2081, %v2080
        %v2083 = vmul.f32 %v2082, %v2081
        %v2084 = vmul.f32 0.5, %v2083
        %v2085 = vsub.f32 1.5, %v2084
        %v2086 = vmul.f32 %v2081, %v2085
        %vm2087 = vweird.f32 %v2080
        %vm2088 = vweird.f32 %v2081
        %vm2089 = vmor %vm2087, %vm2088
        %v2090 = vsel %vm2089, %v2081, %v2086
        %v2091 = vmul.f32 %v2074, %v2090
        %v2092 = vmul.f32 %v2091, %v902
        %v2093 = vadd.f32 %v2092, %v904
        %v2095 = vsel %vm415, %v2093, 0
        %2097 = vmatpush.msra.mxu0 0.0
        %2098 = vmatpush.msra.mxu0 0.0
        %2099 = vmatpush.msra.mxu0 0.0
        %2100 = vmatpush.msra.mxu0 0.0
        %2101 = vmatpush.msra.mxu0 0.0
        %2102 = vmatpush.msra.mxu0 0.0
        %2103 = vmatpush.msra.mxu0 0.0
        %2104 = vmatpush.msra.mxu0 0.0
        %2105 = vmatpush.msra.mxu0 0.0
        %2106 = vmatpush.msra.mxu0 0.0
        %2107 = vmatpush.msra.mxu0 0.0
        %2108 = vmatpush.msra.mxu0 0.0
        %2109 = vmatpush.msra.mxu0 %v370
        %2110 = vmatpush.msra.mxu0 %v369
        %2111 = vmatpush.msra.mxu0 %v368
        %2112 = vmatpush.msra.mxu0 %v367
        %2113 = vmatmul.f32.gmra.mxu0 %v2095
        %v2114 = vpop.f32.mrf.mxu0
        %v2115 = vadd.f32 %v906, %v2114
        %2116 = vdwg.mxu0
        %2117 = vmatpush.msra.mxu0 0.0
        %2118 = vmatpush.msra.mxu0 0.0
        %2119 = vmatpush.msra.mxu0 0.0
        %2120 = vmatpush.msra.mxu0 0.0
        %2121 = vmatpush.msra.mxu0 0.0
        %2122 = vmatpush.msra.mxu0 0.0
        %2123 = vmatpush.msra.mxu0 0.0
        %2124 = vmatpush.msra.mxu0 0.0
        %2125 = vmatpush.msra.mxu0 0.0
        %2126 = vmatpush.msra.mxu0 0.0
        %2127 = vmatpush.msra.mxu0 0.0
        %2128 = vmatpush.msra.mxu0 0.0
        %2129 = vmatpush.msra.mxu0 %v374
        %2130 = vmatpush.msra.mxu0 %v373
        %2131 = vmatpush.msra.mxu0 %v372
        %2132 = vmatpush.msra.mxu0 %v371
        %2133 = vmatmul.f32.gmra.mxu0 %v2095
        %v2134 = vpop.f32.mrf.mxu0
        %v2135 = vadd.f32 0.0, %v2134
        %2136 = vdwg.mxu0
        %v2137 = vmul.f32 %v2135, %v1494
        %2138 = vmatpush.msra.mxu0 %v1531
        %2139 = vmatpush.msra.mxu0 %v1530
        %2140 = vmatpush.msra.mxu0 %v1529
        %2141 = vmatpush.msra.mxu0 %v1528
        %2142 = vmatpush.msra.mxu0 %v1527
        %2143 = vmatpush.msra.mxu0 %v1526
        %2144 = vmatpush.msra.mxu0 %v1525
        %2145 = vmatpush.msra.mxu0 %v1524
        %2146 = vmatpush.msra.mxu0 %v1523
        %2147 = vmatpush.msra.mxu0 %v1522
        %2148 = vmatpush.msra.mxu0 %v1521
        %2149 = vmatpush.msra.mxu0 %v1520
        %2150 = vmatpush.msra.mxu0 %v1519
        %2151 = vmatpush.msra.mxu0 %v1518
        %2152 = vmatpush.msra.mxu0 %v1517
        %2153 = vmatpush.msra.mxu0 %v1516
        %2154 = vmatmul.f32.gmra.mxu0 %v2137
        %v2155 = vpop.f32.mrf.mxu0
        %v2156 = vadd.f32 0.0, %v2155
        %2157 = vdwg.mxu0
        %v2158 = vadd.f32 %v2115, %v2156
        %v2159 = vmax.f32 %v2158, 0.0
        %2160 = vmatpush.msra.mxu0 %v390
        %2161 = vmatpush.msra.mxu0 %v389
        %2162 = vmatpush.msra.mxu0 %v388
        %2163 = vmatpush.msra.mxu0 %v387
        %2164 = vmatpush.msra.mxu0 %v386
        %2165 = vmatpush.msra.mxu0 %v385
        %2166 = vmatpush.msra.mxu0 %v384
        %2167 = vmatpush.msra.mxu0 %v383
        %2168 = vmatpush.msra.mxu0 %v382
        %2169 = vmatpush.msra.mxu0 %v381
        %2170 = vmatpush.msra.mxu0 %v380
        %2171 = vmatpush.msra.mxu0 %v379
        %2172 = vmatpush.msra.mxu0 %v378
        %2173 = vmatpush.msra.mxu0 %v377
        %2174 = vmatpush.msra.mxu0 %v376
        %2175 = vmatpush.msra.mxu0 %v375
        %2176 = vmatmul.f32.gmra.mxu0 %v2159
        %v2177 = vpop.f32.mrf.mxu0
        %v2178 = vadd.f32 %v931, %v2177
        %2179 = vdwg.mxu0
        %2180 = vmatpush.msra.mxu0 %v1589
        %2181 = vmatpush.msra.mxu0 %v1588
        %2182 = vmatpush.msra.mxu0 %v1587
        %2183 = vmatpush.msra.mxu0 %v1586
        %2184 = vmatpush.msra.mxu0 %v1585
        %2185 = vmatpush.msra.mxu0 %v1584
        %2186 = vmatpush.msra.mxu0 %v1583
        %2187 = vmatpush.msra.mxu0 %v1582
        %2188 = vmatpush.msra.mxu0 %v1581
        %2189 = vmatpush.msra.mxu0 %v1580
        %2190 = vmatpush.msra.mxu0 %v1579
        %2191 = vmatpush.msra.mxu0 %v1578
        %2192 = vmatpush.msra.mxu0 %v1577
        %2193 = vmatpush.msra.mxu0 %v1576
        %2194 = vmatpush.msra.mxu0 %v1575
        %2195 = vmatpush.msra.mxu0 %v1574
        %2196 = vmatmul.f32.gmra.mxu0 %v2159
        %v2197 = vpop.f32.mrf.mxu0
        %v2198 = vadd.f32 0.0, %v2197
        %2199 = vdwg.mxu0
        %v2200 = vmul.f32 %v2198, %v1494
        %2201 = vmatpush.msra.mxu0 %v406
        %2202 = vmatpush.msra.mxu0 %v405
        %2203 = vmatpush.msra.mxu0 %v404
        %2204 = vmatpush.msra.mxu0 %v403
        %2205 = vmatpush.msra.mxu0 %v402
        %2206 = vmatpush.msra.mxu0 %v401
        %2207 = vmatpush.msra.mxu0 %v400
        %2208 = vmatpush.msra.mxu0 %v399
        %2209 = vmatpush.msra.mxu0 %v398
        %2210 = vmatpush.msra.mxu0 %v397
        %2211 = vmatpush.msra.mxu0 %v396
        %2212 = vmatpush.msra.mxu0 %v395
        %2213 = vmatpush.msra.mxu0 %v394
        %2214 = vmatpush.msra.mxu0 %v393
        %2215 = vmatpush.msra.mxu0 %v392
        %2216 = vmatpush.msra.mxu0 %v391
        %2217 = vmatmul.f32.gmra.mxu0 %v2200
        %v2218 = vpop.f32.mrf.mxu0
        %v2219 = vadd.f32 0.0, %v2218
        %2220 = vdwg.mxu0
        %v2221 = vadd.f32 %v2178, %v2219
        %v2222 = vadd.f32 %v2221, %v2068
        %v2223 = vld [vmem:[#allocation2 + $0x28] sm:$0xff]
        %v2224 = vld [vmem:[#allocation2 + $0x60] sm:$0xff]
        %v2225 = vld [vmem:[#allocation2 + $0x98] sm:$0xff]
        %v2226 = vld [vmem:[#allocation2 + $0xd0] sm:$0xff]
        %v2228 = vsel %vm415, %v2222, 0
        %2230 = vmatpush.msra.mxu0 0.0
        %2231 = vmatpush.msra.mxu0 0.0
        %2232 = vmatpush.msra.mxu0 0.0
        %2233 = vmatpush.msra.mxu0 0.0
        %2234 = vmatpush.msra.mxu0 0.0
        %2235 = vmatpush.msra.mxu0 0.0
        %2236 = vmatpush.msra.mxu0 0.0
        %2237 = vmatpush.msra.mxu0 0.0
        %2238 = vmatpush.msra.mxu0 0.0
        %2239 = vmatpush.msra.mxu0 0.0
        %2240 = vmatpush.msra.mxu0 0.0
        %2241 = vmatpush.msra.mxu0 0.0
        %2242 = vmatpush.msra.mxu0 %v2226
        %2243 = vmatpush.msra.mxu0 %v2225
        %2244 = vmatpush.msra.mxu0 %v2224
        %2245 = vmatpush.msra.mxu0 %v2223
        %2246 = vmatmul.f32.gmra.mxu0 %v2228
        %v2247 = vpop.f32.mrf.mxu0
        %v2248 = vadd.f32 0.0, %v2247
        %2249 = vdwg.mxu0
        %2250 = vmatpush.msra.mxu0 0.0
        %2251 = vmatpush.msra.mxu0 0.0
        %2252 = vmatpush.msra.mxu0 0.0
        %2253 = vmatpush.msra.mxu0 0.0
        %2254 = vmatpush.msra.mxu0 0.0
        %2255 = vmatpush.msra.mxu0 0.0
        %2256 = vmatpush.msra.mxu0 0.0
        %2257 = vmatpush.msra.mxu0 0.0
        %2258 = vmatpush.msra.mxu0 0.0
        %2259 = vmatpush.msra.mxu0 0.0
        %2260 = vmatpush.msra.mxu0 0.0
        %2261 = vmatpush.msra.mxu0 0.0
        %2262 = vmatpush.msra.mxu0 %v2226
        %2263 = vmatpush.msra.mxu0 %v2225
        %2264 = vmatpush.msra.mxu0 %v2224
        %2265 = vmatpush.msra.mxu0 %v2223
        %2266 = vmatmul.f32.gmra.mxu0 %v1398
        %v2267 = vpop.f32.mrf.mxu0
        %v2268 = vadd.f32 0.0, %v2267
        %2269 = vdwg.mxu0
        %2270 = vst.msk [vmem:[%s342] sm:$0xff] %vm415, %v2222
        %2271 = vrot.lane.b32.xlu0 %v1374, 32
        %v2272 = vpop.permute.xlu0 %2271
        %vm2274 = vcmask 523520
        %2275 = vst.msk [vmem:[%s342] sm:$0xff] %vm2274, %v2272
        %2277 = vrot.lane.b32.xlu0 %v2248, 64
        %v2278 = vpop.permute.xlu0 %2277
        %vm2280 = vcmask 785920
        %2281 = vst.msk [vmem:[%s342] sm:$0xff] %vm2280, %v2278
        %2283 = vrot.lane.b32.xlu0 %v2268, 96
        %v2284 = vpop.permute.xlu0 %2283
        %vm2286 = vcmask 1048320
        %2287 = vst.msk [vmem:[%s342] sm:$0xff] %vm2286, %v2284
        %2288 = vst.msk [vmem:[%s342 + $0x8] sm:$0xff] %vm784, %v2017
        %2290 = vrot.lane.b32.xlu0 %v1253, 64
        %v2291 = vpop.permute.xlu0 %2290
        %vm2293 = vcmask 1048064
        %2294 = vst.msk [vmem:[%s342 + $0x8] sm:$0xff] %vm2293, %v2291
        %vm2295 = vcmask 7168
        %2296 = vst.msk [vmem:[%s346] sm:$0xff] %vm2295, %v1443
        %2297 = vst.msk [vmem:[%s350] sm:$0xff] %vm2295, %v1487
        %p2298 = scmp.lt.s32.totalorder %s21, 1
        %s2299 = scalar_select %p2298, %s21, 1
        %s2300 = smul.addr %s2299, 2
        %s2301 = smul.addr %s2300, 8
        %s2302 = scalar_lea.vmem %s5, %s2301
        %p2303 = scmp.lt.s32.totalorder %s21, 1
        %s2304 = scalar_select %p2303, %s21, 1
        %s2305 = smul.addr %s2304, 8
        %s2306 = scalar_lea.vmem %s6, %s2305
        %p2307 = scmp.lt.s32.totalorder %s21, 1
        %s2308 = scalar_select %p2307, %s21, 1
        %s2309 = smul.addr %s2308, 8
        %s2310 = scalar_lea.vmem %s7, %s2309
        // Predicated region
        $region49: #{forward.1} parent=39 // pred_check
          %p2311 = pneg %p154
        $region50: #{forward.1} parent=39 // pred_check_branch
          %2313 = sbr.rel (%p2311) target = $region52
        $region51: #{forward.1} parent=39 // pred_region
          _
        $region52: #{forward.1} parent=39 // pred_fallthru
          _
        // Predicated region
        $region53: #{forward.1} parent=39 // pred_check
          %p2314 = pneg %p180
        $region54: #{forward.1} parent=39 // pred_check_branch
          %2316 = sbr.rel (%p2314) target = $region56
        $region55: #{forward.1} parent=39 // pred_region
          _
        $region56: #{forward.1} parent=39 // pred_fallthru
          _
        // Predicated region
        $region57: #{forward.1} parent=39 // pred_check
          %p2317 = pneg %p206
        $region58: #{forward.1} parent=39 // pred_check_branch
          %2319 = sbr.rel (%p2317) target = $region60
        $region59: #{forward.1} parent=39 // pred_region
          _
        $region60: #{forward.1} parent=39 // pred_fallthru
          _
      $region40: #{forward.1} parent=5 // pred_fallthru
        _
      %p2320 = scmp.le.s32.totalorder 2, %s16
      // Predicated region
      $region61: #{forward.1} parent=5 // pred_check
        %p2321 = pneg %p2320
      $region62: #{forward.1} parent=5 // pred_check_branch
        %2323 = sbr.rel (%p2321) target = $region64
      $region63: #{forward.1} parent=5 // pred_region
        %s2324 = ssub.s32 %s16, 2
        // Predicated region
        $region65: #{forward.1} parent=63 // pred_check
          %p2325 = pneg %p160
        $region66: #{forward.1} parent=63 // pred_check_branch
          %2327 = sbr.rel (%p2325) target = $region68
        $region67: #{forward.1} parent=63 // pred_region
          %p2328 = scmp.lt.s32.totalorder %s22, 1
          %s2329 = scalar_select %p2328, %s22, 1
          %s2330 = smul.addr %s2329, 2
          %s2331 = smul.addr %s2330, 8
          %s2332 = scalar_lea.vmem %s5, %s2331
        $region68: #{forward.1} parent=63 // pred_fallthru
          _
        // Predicated region
        $region69: #{forward.1} parent=63 // pred_check
          %p2333 = pneg %p186
        $region70: #{forward.1} parent=63 // pred_check_branch
          %2335 = sbr.rel (%p2333) target = $region72
        $region71: #{forward.1} parent=63 // pred_region
          %p2336 = scmp.lt.s32.totalorder %s22, 1
          %s2337 = scalar_select %p2336, %s22, 1
          %s2338 = smul.addr %s2337, 8
          %s2339 = scalar_lea.vmem %s6, %s2338
        $region72: #{forward.1} parent=63 // pred_fallthru
          _
        // Predicated region
        $region73: #{forward.1} parent=63 // pred_check
          %p2340 = pneg %p212
        $region74: #{forward.1} parent=63 // pred_check_branch
          %2342 = sbr.rel (%p2340) target = $region76
        $region75: #{forward.1} parent=63 // pred_region
          %p2343 = scmp.lt.s32.totalorder %s22, 1
          %s2344 = scalar_select %p2343, %s22, 1
          %s2345 = smul.addr %s2344, 8
          %s2346 = scalar_lea.vmem %s7, %s2345
        $region76: #{forward.1} parent=63 // pred_fallthru
          _
      $region64: #{forward.1} parent=5 // pred_fallthru
        _
    $region6: #{forward.1} parent=1 // loop_footer
      %s20 = sadd.s32 1, %s16
    $region7: #{forward.1} parent=1 // loop_footer_branch
      %15 = sbr.rel target = $region3
    $region8: #{forward.1} parent=1 // loop_exit
      _
    %2347 = vsyncpa [#allocation3], 1
    %s2348 = scalar_lea.sflag [#allocation3], 1
    %2349 = vsyncpa %s2348, 1
    %2350 = vsyncpa [#allocation5], 1

</llo_original>
